<compile_context>
chip_gen: v7x
topology: tpu7x:2x2x1
jax: 0.10.0
libtpu: 0.0.40
codegen_flags: <defaults>
</compile_context>

<pallas_src>
import jax
import jax.numpy as jnp
from jax import lax
from jax.experimental import pallas as pl
from jax.experimental.pallas import tpu as pltpu


# ------------------------------ fused kernel -------------------------------- #

def _fused_gnn_kernel(eps_ref,                                   # SMEM (L,)
                      h0_ref, vn0_ref, bid_ref,
                      smat_ref, dmat_ref, bmat_ref,
                      eoh_ref, btab_ref,
                      w1_ref, b1_ref, g1_ref, beta1_ref,
                      w2_ref, b2_ref, gn_ref, betan_ref,
                      vw1_ref, vb1_ref, vg1_ref, vbeta1_ref,
                      vw2_ref, vb2_ref, vg2_ref, vbeta2_ref,
                      hnode_ref, hgraph_ref,
                      vn_scr):
    f32 = jnp.float32
    bf16 = jnp.bfloat16
    layer = pl.program_id(0)
    nlayer = pl.num_programs(0)
    is_last = layer == nlayer - 1

    # Initialize carried state on the first layer.  hnode_ref has a constant block
    # index across the layer axis, so it stays VMEM-resident and doubles as the
    # carried node state (writeback to HBM happens once, after the last layer).
    @pl.when(layer == 0)
    def _():
        hnode_ref[...] = h0_ref[...]
        vn_scr[...] = vn0_ref[...]

    h = hnode_ref[...]                      # (N, HP) f32 node state
    vn = vn_scr[...]                        # (G, HP) f32 virtual-node state
    bmat = bmat_ref[...]                    # (N, G)  bf16 node->graph assignment

    # Broadcast virtual-node embedding to its nodes: (N,G)@(G,HP), bf16 MXU / f32 acc.
    vn_b = jnp.dot(bmat, vn.astype(bf16), preferred_element_type=f32)
    h_in = h + vn_b
    h_in_b = h_in.astype(bf16)
    # NOTE: message-passing operands are bf16-rounded (f32 accumulation); this is the
    # intended mixed-precision deviation from the f32 PyTorch reference.

    # Bond encoder fused in-kernel: bf16 (E, F*V) one-hot @ per-layer bf16 tables.
    eemb = jnp.dot(eoh_ref[...], btab_ref[0], preferred_element_type=f32)      # (E, HP)

    # GINConv message passing: gather src rows, relu(x_j + e_ij), scatter-add to dst.
    x_src = jnp.dot(smat_ref[...], h_in_b, preferred_element_type=f32)         # (E, HP)
    msg = jnp.maximum(x_src + eemb, 0.0)
    agg = jnp.dot(dmat_ref[...], msg.astype(bf16), preferred_element_type=f32)  # (N, HP)

    eps = eps_ref[layer]                    # scalar from SMEM
    pre = (1.0 + eps) * h_in + agg

    # GIN MLP: Linear -> BN(eval affine) -> ReLU -> Linear; then outer BN(eval affine).
    # All matmuls on the bf16 MXU path with f32 accumulation.
    t = jnp.dot(pre.astype(bf16), w1_ref[0], preferred_element_type=f32) + b1_ref[0]
    t = jnp.maximum(t * g1_ref[0] + beta1_ref[0], 0.0)
    z = jnp.dot(t.astype(bf16), w2_ref[0], preferred_element_type=f32) + b2_ref[0]
    z = z * gn_ref[0] + betan_ref[0]
    # ReLU on all but the last layer; dropout is identity in eval mode.
    z = jnp.where(is_last, z, jnp.maximum(z, 0.0))
    h_new = z + h_in                        # residual
    hnode_ref[...] = h_new                  # carried state + final output

    # Virtual-node update (all but last layer): add-pool + 2-layer MLP (BN+ReLU).
    @pl.when(layer < nlayer - 1)
    def _():
        # add-pool = bmat^T @ h_in, expressed as a TN dot_general (no bmatT input needed).
        pooled = lax.dot_general(bmat, h_in_b, (((0,), (0,)), ((), ())),
                                 preferred_element_type=f32)                   # (G, HP)
        temp = pooled + vn
        tt = jnp.dot(temp.astype(bf16), vw1_ref[0], preferred_element_type=f32) + vb1_ref[0]
        tt = jnp.maximum(tt * vg1_ref[0] + vbeta1_ref[0], 0.0)
        u = jnp.dot(tt.astype(bf16), vw2_ref[0], preferred_element_type=f32) + vb2_ref[0]
        u = jnp.maximum(u * vg2_ref[0] + vbeta2_ref[0], 0.0)
        vn_scr[...] = vn + u                # dropout identity (eval) + residual

    # JK='last' global max pool readout: per-graph masked 2-D reduce (unrolled over G),
    # lane-dense rows, no (N, G, H) temporary.
    @pl.when(is_last)
    def _():
        num_graphs = hgraph_ref.shape[0]
        neg = jnp.float32(jnp.finfo(jnp.float32).min)
        bid = bid_ref[...]                                      # (N, 1) graph id per node
        for g in range(num_graphs):                             # static, unrolled
            vals = jnp.where(bid == jnp.float32(g), h_new, neg)  # (N, HP)
            # NOTE: graphs with zero assigned nodes would read FLT_MIN rows (same caveat
            # as torch_geometric if padded empty graphs were ever used).
            hgraph_ref[pl.ds(g, 1), :] = jnp.max(vals, axis=0, keepdims=True)


# --------------------------------- wrapper ----------------------------------- #

def _round_up(x, m):
    return ((x + m - 1) // m) * m


def gnn_forward(params, x_atom, edge_attr, src, dst, batch, num_graphs,
                num_layer, hidden, single_buffer_consts=True):
    f32, bf16 = jnp.float32, jnp.bfloat16
    N, E, G, L, H = x_atom.shape[0], edge_attr.shape[0], num_graphs, num_layer, hidden
    if L < 2:
        raise ValueError("num_layer must be >= 2 (virtual-node GNN).")

    # Lane-dense padding of the feature dims (biggest measured layout lever on TPU).
    HP = _round_up(H, 128)
    HP2 = _round_up(2 * H, 128)

    def pad2(a, r, c):
        return jnp.pad(a, ((0, r - a.shape[0]), (0, c - a.shape[1])))

    def pad_cols(a, c):
        return jnp.pad(a, ((0, 0), (0, c - a.shape[1])))

    # Atom encoder (one-time, not per-layer): sum of per-feature embedding lookups.
    # Padded columns stay exactly zero through the whole network (zero-padded weights).
    h0 = jnp.zeros((N, HP), f32)
    for f in range(x_atom.shape[1]):
        h0 = h0 + pad_cols(params['atom_emb'][f], HP)[x_atom[:, f]]
    vn0 = jnp.broadcast_to(pad_cols(params['vn_emb'], HP), (G, HP)).astype(f32)

    # Incidence / assignment matrices, built via comparisons, bf16 (exact for 0/1).
    nodes = jnp.arange(N, dtype=jnp.int32)
    graphs = jnp.arange(G, dtype=jnp.int32)
    smat = (src[:, None] == nodes[None, :]).astype(bf16)        # (E, N) gather src
    dmat = (nodes[:, None] == dst[None, :]).astype(bf16)        # (N, E) scatter dst
    bmat = (batch[:, None] == graphs[None, :]).astype(bf16)     # (N, G)
    batch_col = batch.astype(f32)[:, None]                      # (N, 1) graph id per node

    # Bond encoder one-hot: built feature-by-feature with broadcast comparisons
    # (no (E, FB, FB*VB) intermediate), bf16 for the bf16 MXU path.
    FB = edge_attr.shape[1]
    VB = params['layers'][0]['bond_emb'][0].shape[0]
    FBV = FB * VB
    vocab_ids = jnp.arange(FBV, dtype=jnp.int32)[None, :]
    edge_oh = jnp.zeros((E, FBV), bf16)
    for f in range(FB):
        ids_f = edge_attr[:, f].astype(jnp.int32) + f * VB
        edge_oh = edge_oh + (ids_f[:, None] == vocab_ids).astype(bf16)

    layers = params['layers']
    btab_all = jnp.stack(
        [pad_cols(jnp.concatenate(lp['bond_emb'], axis=0), HP) for lp in layers], 0
    ).astype(bf16)                                                              # (L, FBV, HP)
    eps_all = jnp.stack([lp['eps'].reshape(()) for lp in layers]).astype(f32)   # (L,)

    def stack_w(ps, key, r, c):          # matmul weights -> bf16, zero-padded
        return jnp.stack([pad2(p[key], r, c) for p in ps], 0).astype(bf16)

    def stack_v(ps, key, c):             # bias / folded-BN affine -> f32 (VPU path), zero-padded
        return jnp.stack([pad2(p[key], 1, c) for p in ps], 0).astype(f32)

    w1 = stack_w(layers, 'w1', HP, HP2); b1 = stack_v(layers, 'b1', HP2)
    g1 = stack_v(layers, 'g1', HP2);     beta1 = stack_v(layers, 'beta1', HP2)
    w2 = stack_w(layers, 'w2', HP2, HP); b2 = stack_v(layers, 'b2', HP)
    gn = stack_v(layers, 'gn', HP);      betan = stack_v(layers, 'betan', HP)

    vns = params['vn_mlps']              # length L-1, no dummy padding
    vw1 = stack_w(vns, 'w1', HP, HP2);   vb1 = stack_v(vns, 'b1', HP2)
    vg1 = stack_v(vns, 'g1', HP2);       vbeta1 = stack_v(vns, 'beta1', HP2)
    vw2 = stack_w(vns, 'w2', HP2, HP);   vb2 = stack_v(vns, 'b2', HP)
    vg2 = stack_v(vns, 'g2', HP);        vbeta2 = stack_v(vns, 'beta2', HP)

    # Layer-invariant inputs: constant block index, single-buffered (no pipelining benefit,
    # halves their VMEM footprint).
    def const_spec(shape):
        imap = lambda l: (0,) * len(shape)
        if single_buffer_consts:
            return pl.BlockSpec(shape, imap, pipeline_mode=pl.Buffered(1))
        return pl.BlockSpec(shape, imap)

    # Per-layer weights: default double-buffering so next layer's weight DMA overlaps compute.
    def gin_spec(shape2):
        return pl.BlockSpec((1,) + shape2, lambda l: (l, 0, 0))

    vn_last = L - 2                      # clamp: last layer re-selects block L-2 (DMA skipped)
    def vn_spec(shape2):
        return pl.BlockSpec((1,) + shape2, lambda l: (jnp.minimum(l, vn_last), 0, 0))

    in_specs = [
        pl.BlockSpec(memory_space=pltpu.MemorySpace.SMEM),       # eps (L,) scalar path
        const_spec((N, HP)), const_spec((G, HP)), const_spec((N, 1)),
        const_spec((E, N)), const_spec((N, E)), const_spec((N, G)),
        const_spec((E, FBV)),
        gin_spec((FBV, HP)),                                     # bond tables
        gin_spec((HP, HP2)), gin_spec((1, HP2)), gin_spec((1, HP2)), gin_spec((1, HP2)),
        gin_spec((HP2, HP)), gin_spec((1, HP)), gin_spec((1, HP)), gin_spec((1, HP)),
        vn_spec((HP, HP2)), vn_spec((1, HP2)), vn_spec((1, HP2)), vn_spec((1, HP2)),
        vn_spec((HP2, HP)), vn_spec((1, HP)), vn_spec((1, HP)), vn_spec((1, HP)),
    ]
    out_specs = (pl.BlockSpec((N, HP), lambda l: (0, 0)),
                 pl.BlockSpec((G, HP), lambda l: (0, 0)))
    out_shape = (jax.ShapeDtypeStruct((N, HP), f32),
                 jax.ShapeDtypeStruct((G, HP), f32))

    # TODO(synk): for realistic graph sizes, tile the E (edge) axis with an extra
    # "arbitrary" grid dim + VMEM accumulator (and tile N), and add a dst-partitioned
    # "parallel" node-tile axis for v7x's 2-TC megacore; dense O(E*N) incidence is only
    # viable at these toy shapes.
    h_node, h_graph = pl.pallas_call(
        _fused_gnn_kernel,
        grid=(L,),
        in_specs=in_specs,
        out_specs=out_specs,
        out_shape=out_shape,
        scratch_shapes=[pltpu.VMEM((G, HP), f32)],   # carried virtual-node state
        compiler_params=pltpu.CompilerParams(
            dimension_semantics=("arbitrary",),
            # 48 MiB: headroom under v7x's 64 MiB physical VMEM; raise toward ~100 MiB on
            # v5e/v6e once larger (edge-tiled) blocks are used.
            vmem_limit_bytes=48 * 1024 * 1024),
    )(eps_all, h0, vn0, batch_col, smat, dmat, bmat, edge_oh, btab_all,
      w1, b1, g1, beta1, w2, b2, gn, betan,
      vw1, vb1, vg1, vbeta1, vw2, vb2, vg2, vbeta2)

    # Strip lane padding back to the logical hidden size.
    return {'graph': h_graph[:, :H], 'node': h_node[:, :H]}


# --------------------------- deterministic parameters ------------------------ #

def init_params(key, num_layer, hidden, num_atom_feats=9, atom_vocab=16,
                num_bond_feats=3, bond_vocab=8):
    keys = iter(jax.random.split(key, 512))

    def nrm(shape, scale=0.1):
        return scale * jax.random.normal(next(keys), shape, jnp.float32)

    params = {
        'atom_emb': [nrm((atom_vocab, hidden)) for _ in range(num_atom_feats)],
        'vn_emb': jnp.zeros((1, hidden), jnp.float32),   # OGB virtual-node init = 0
        'layers': [],
        'vn_mlps': [],
    }
    for _ in range(num_layer):
        params['layers'].append({
            'bond_emb': [nrm((bond_vocab, hidden)) for _ in range(num_bond_feats)],
            'w1': nrm((hidden, 2 * hidden)), 'b1': nrm((1, 2 * hidden)),
            'g1': jnp.ones((1, 2 * hidden), jnp.float32),
            'beta1': jnp.zeros((1, 2 * hidden), jnp.float32),
            'w2': nrm((2 * hidden, hidden)), 'b2': nrm((1, hidden)),
            'gn': jnp.ones((1, hidden), jnp.float32),
            'betan': jnp.zeros((1, hidden), jnp.float32),
            'eps': jnp.zeros((1, 1), jnp.float32),        # GINConv eps init = 0
        })
    for _ in range(num_layer - 1):
        params['vn_mlps'].append({
            'w1': nrm((hidden, 2 * hidden)), 'b1': nrm((1, 2 * hidden)),
            'g1': jnp.ones((1, 2 * hidden), jnp.float32),
            'beta1': jnp.zeros((1, 2 * hidden), jnp.float32),
            'w2': nrm((2 * hidden, hidden)), 'b2': nrm((1, hidden)),
            'g2': jnp.ones((1, hidden), jnp.float32),
            'beta2': jnp.zeros((1, hidden), jnp.float32),
        })
    return params


# ------------------------------------ main ------------------------------------ #

if __name__ == "__main__":
    num_layer, hidden = 3, 32
    N, E, G = 16, 32, 2                      # nodes, edges, graphs

    k1, k2, k3, k4 = jax.random.split(jax.random.PRNGKey(0), 4)
    x_atom = jax.random.randint(k1, (N, 9), 0, 16)       # atom features (int)
    edge_attr = jax.random.randint(k2, (E, 3), 0, 8)     # bond features (int)
    batch = jnp.repeat(jnp.arange(G, dtype=jnp.int32), N // G)
    # random intra-graph edges (first half in graph 0, second half in graph 1)
    src = jax.random.randint(k3, (E,), 0, N // G)
    dst = jax.random.randint(k4, (E,), 0, N // G)
    offset = jnp.where(jnp.arange(E) < E // 2, 0, N // G)
    src = (src + offset).astype(jnp.int32)
    dst = (dst + offset).astype(jnp.int32)

    params = init_params(jax.random.PRNGKey(42), num_layer, hidden)

    fwd = jax.jit(gnn_forward, static_argnums=(6, 7, 8, 9))
    try:
        out = fwd(params, x_atom, edge_attr, src, dst, batch, G, num_layer, hidden, True)
    except Exception:
        # pipeline_mode=pl.Buffered(1) single-buffering is a recent API; if this jax
        # build rejects it, fall back to default double-buffered const inputs.
        out = fwd(params, x_atom, edge_attr, src, dst, batch, G, num_layer, hidden, False)
    jax.block_until_ready(out)

    assert out['graph'].shape == (G, hidden)
    assert out['node'].shape == (N, hidden)
    assert jnp.all(jnp.isfinite(out['graph'])) and jnp.all(jnp.isfinite(out['node']))
    # TODO(synk): training-mode dropout and batch-statistics BatchNorm are not implemented
    # (eval-mode forward only; trained running stats must be pre-folded into g*/beta*).
    print("KERNEL_OK")
</pallas_src>

<mosaic_0001>
module attributes {stable_mosaic.version = 11 : i64} {
  func.func @_fused_gnn_kernel(%arg0: i32, %arg1: memref<3xf32, #tpu.memory_space<smem>>, %arg2: memref<16x128xf32, #tpu.memory_space<vmem>>, %arg3: memref<2x128xf32, #tpu.memory_space<vmem>>, %arg4: memref<16x1xf32, #tpu.memory_space<vmem>>, %arg5: memref<32x16xbf16, #tpu.memory_space<vmem>>, %arg6: memref<16x32xbf16, #tpu.memory_space<vmem>>, %arg7: memref<16x2xbf16, #tpu.memory_space<vmem>>, %arg8: memref<32x24xbf16, #tpu.memory_space<vmem>>, %arg9: memref<1x24x128xbf16, #tpu.memory_space<vmem>>, %arg10: memref<1x128x128xbf16, #tpu.memory_space<vmem>>, %arg11: memref<1x1x128xf32, #tpu.memory_space<vmem>>, %arg12: memref<1x1x128xf32, #tpu.memory_space<vmem>>, %arg13: memref<1x1x128xf32, #tpu.memory_space<vmem>>, %arg14: memref<1x128x128xbf16, #tpu.memory_space<vmem>>, %arg15: memref<1x1x128xf32, #tpu.memory_space<vmem>>, %arg16: memref<1x1x128xf32, #tpu.memory_space<vmem>>, %arg17: memref<1x1x128xf32, #tpu.memory_space<vmem>>, %arg18: memref<1x128x128xbf16, #tpu.memory_space<vmem>>, %arg19: memref<1x1x128xf32, #tpu.memory_space<vmem>>, %arg20: memref<1x1x128xf32, #tpu.memory_space<vmem>>, %arg21: memref<1x1x128xf32, #tpu.memory_space<vmem>>, %arg22: memref<1x128x128xbf16, #tpu.memory_space<vmem>>, %arg23: memref<1x1x128xf32, #tpu.memory_space<vmem>>, %arg24: memref<1x1x128xf32, #tpu.memory_space<vmem>>, %arg25: memref<1x1x128xf32, #tpu.memory_space<vmem>>, %arg26: memref<16x128xf32, #tpu.memory_space<vmem>>, %arg27: memref<2x128xf32, #tpu.memory_space<vmem>>, %arg28: memref<2x128xf32, #tpu.memory_space<vmem>>) attributes {dimension_semantics = [#tpu.dimension_semantics<arbitrary>], iteration_bounds = array<i64: 3>, scalar_prefetch = 0 : i64, scratch_operands = 1 : i64, tpu.core_type = #tpu.core_type<tc>, window_params = [{transform_indices = @transform_0, window_bounds = array<i64: 3>}, {pipeline_mode = #tpu.pipeline_mode<synchronous>, transform_indices = @transform_1, window_bounds = array<i64: 16, 128>}, {pipeline_mode = #tpu.pipeline_mode<synchronous>, transform_indices = @transform_2, window_bounds = array<i64: 2, 128>}, {pipeline_mode = #tpu.pipeline_mode<synchronous>, transform_indices = @transform_3, window_bounds = array<i64: 16, 1>}, {pipeline_mode = #tpu.pipeline_mode<synchronous>, transform_indices = @transform_4, window_bounds = array<i64: 32, 16>}, {pipeline_mode = #tpu.pipeline_mode<synchronous>, transform_indices = @transform_5, window_bounds = array<i64: 16, 32>}, {pipeline_mode = #tpu.pipeline_mode<synchronous>, transform_indices = @transform_6, window_bounds = array<i64: 16, 2>}, {pipeline_mode = #tpu.pipeline_mode<synchronous>, transform_indices = @transform_7, window_bounds = array<i64: 32, 24>}, {transform_indices = @transform_8, window_bounds = array<i64: 1, 24, 128>}, {transform_indices = @transform_9, window_bounds = array<i64: 1, 128, 128>}, {transform_indices = @transform_10, window_bounds = array<i64: 1, 1, 128>}, {transform_indices = @transform_11, window_bounds = array<i64: 1, 1, 128>}, {transform_indices = @transform_12, window_bounds = array<i64: 1, 1, 128>}, {transform_indices = @transform_13, window_bounds = array<i64: 1, 128, 128>}, {transform_indices = @transform_14, window_bounds = array<i64: 1, 1, 128>}, {transform_indices = @transform_15, window_bounds = array<i64: 1, 1, 128>}, {transform_indices = @transform_16, window_bounds = array<i64: 1, 1, 128>}, {transform_indices = @transform_17, window_bounds = array<i64: 1, 128, 128>}, {transform_indices = @transform_18, window_bounds = array<i64: 1, 1, 128>}, {transform_indices = @transform_19, window_bounds = array<i64: 1, 1, 128>}, {transform_indices = @transform_20, window_bounds = array<i64: 1, 1, 128>}, {transform_indices = @transform_21, window_bounds = array<i64: 1, 128, 128>}, {transform_indices = @transform_22, window_bounds = array<i64: 1, 1, 128>}, {transform_indices = @transform_23, window_bounds = array<i64: 1, 1, 128>}, {transform_indices = @transform_24, window_bounds = array<i64: 1, 1, 128>}, {pipeline_mode = #tpu.pipeline_mode<synchronous>, transform_indices = @transform_25, window_bounds = array<i64: 16, 128>}, {pipeline_mode = #tpu.pipeline_mode<synchronous>, transform_indices = @transform_26, window_bounds = array<i64: 2, 128>}]} {
    %c2_i32 = arith.constant 2 : i32
    %0 = arith.cmpi eq, %arg0, %c2_i32 : i32
    %c0_i32 = arith.constant 0 : i32
    %1 = arith.cmpi eq, %arg0, %c0_i32 : i32
    %2 = arith.extui %1 : i1 to i32
    %c0_i32_0 = arith.constant 0 : i32
    %3 = arith.cmpi ne, %2, %c0_i32_0 : i32
    scf.if %3 {
      %c0_53 = arith.constant 0 : index
      %c0_54 = arith.constant 0 : index
      %73 = vector.load %arg2[%c0_53, %c0_54] : memref<16x128xf32, #tpu.memory_space<vmem>>, vector<16x128xf32>
      %c0_55 = arith.constant 0 : index
      %c0_56 = arith.constant 0 : index
      %74 = vector.load %arg26[%c0_55, %c0_56] : memref<16x128xf32, #tpu.memory_space<vmem>>, vector<16x128xf32>
      tpu.vector_store %arg26[%c0_55, %c0_56], %73 {strides = array<i32>} : memref<16x128xf32, #tpu.memory_space<vmem>>, vector<16x128xf32>,
      %c0_57 = arith.constant 0 : index
      %c0_58 = arith.constant 0 : index
      %75 = vector.load %arg3[%c0_57, %c0_58] : memref<2x128xf32, #tpu.memory_space<vmem>>, vector<2x128xf32>
      %c0_59 = arith.constant 0 : index
      %c0_60 = arith.constant 0 : index
      %76 = vector.load %arg28[%c0_59, %c0_60] : memref<2x128xf32, #tpu.memory_space<vmem>>, vector<2x128xf32>
      tpu.vector_store %arg28[%c0_59, %c0_60], %75 {strides = array<i32>} : memref<2x128xf32, #tpu.memory_space<vmem>>, vector<2x128xf32>,
    } else {
    }
    %c0 = arith.constant 0 : index
    %c0_1 = arith.constant 0 : index
    %4 = vector.load %arg26[%c0, %c0_1] : memref<16x128xf32, #tpu.memory_space<vmem>>, vector<16x128xf32>
    %c0_2 = arith.constant 0 : index
    %c0_3 = arith.constant 0 : index
    %5 = vector.load %arg28[%c0_2, %c0_3] : memref<2x128xf32, #tpu.memory_space<vmem>>, vector<2x128xf32>
    %c0_4 = arith.constant 0 : index
    %c0_5 = arith.constant 0 : index
    %6 = vector.load %arg7[%c0_4, %c0_5] : memref<16x2xbf16, #tpu.memory_space<vmem>>, vector<16x2xbf16>
    %7 = arith.truncf %5 : vector<2x128xf32> to vector<2x128xbf16>
    %cst = arith.constant dense<0.000000e+00> : vector<16x128xf32>
    %8 = tpu.matmul %6, %7, %cst {dimension_numbers = #tpu.dot_dimension_numbers<[1], [0], [0], [1], [0, 0, 1, 1], [], []>} : vector<16x2xbf16>, vector<2x128xbf16>, vector<16x128xf32> -> vector<16x128xf32>
    %9 = arith.addf %4, %8 : vector<16x128xf32>
    %10 = arith.truncf %9 : vector<16x128xf32> to vector<16x128xbf16>
    %c0_6 = arith.constant 0 : index
    %c0_7 = arith.constant 0 : index
    %11 = vector.load %arg8[%c0_6, %c0_7] : memref<32x24xbf16, #tpu.memory_space<vmem>>, vector<32x24xbf16>
    %c0_8 = arith.constant 0 : index
    %c0_9 = arith.constant 0 : index
    %c0_10 = arith.constant 0 : index
    %12 = vector.load %arg9[%c0_8, %c0_9, %c0_10] : memref<1x24x128xbf16, #tpu.memory_space<vmem>>, vector<1x24x128xbf16>
    %13 = vector.shape_cast %12 : vector<1x24x128xbf16> to vector<24x128xbf16>
    %cst_11 = arith.constant dense<0.000000e+00> : vector<32x128xf32>
    %14 = tpu.matmul %11, %13, %cst_11 {dimension_numbers = #tpu.dot_dimension_numbers<[1], [0], [0], [1], [0, 0, 1, 1], [], []>} : vector<32x24xbf16>, vector<24x128xbf16>, vector<32x128xf32> -> vector<32x128xf32>
    %c0_12 = arith.constant 0 : index
    %c0_13 = arith.constant 0 : index
    %15 = vector.load %arg5[%c0_12, %c0_13] : memref<32x16xbf16, #tpu.memory_space<vmem>>, vector<32x16xbf16>
    %cst_14 = arith.constant dense<0.000000e+00> : vector<32x128xf32>
    %16 = tpu.matmul %15, %10, %cst_14 {dimension_numbers = #tpu.dot_dimension_numbers<[1], [0], [0], [1], [0, 0, 1, 1], [], []>} : vector<32x16xbf16>, vector<16x128xbf16>, vector<32x128xf32> -> vector<32x128xf32>
    %17 = arith.addf %16, %14 : vector<32x128xf32>
    %cst_15 = arith.constant 0.000000e+00 : f32
    %18 = vector.broadcast %cst_15 : f32 to vector<32x128xf32>
    %19 = arith.maximumf %17, %18 : vector<32x128xf32>
    %c0_16 = arith.constant 0 : index
    %c0_17 = arith.constant 0 : index
    %20 = vector.load %arg6[%c0_16, %c0_17] : memref<16x32xbf16, #tpu.memory_space<vmem>>, vector<16x32xbf16>
    %21 = arith.truncf %19 : vector<32x128xf32> to vector<32x128xbf16>
    %cst_18 = arith.constant dense<0.000000e+00> : vector<16x128xf32>
    %22 = tpu.matmul %20, %21, %cst_18 {dimension_numbers = #tpu.dot_dimension_numbers<[1], [0], [0], [1], [0, 0, 1, 1], [], []>} : vector<16x32xbf16>, vector<32x128xbf16>, vector<16x128xf32> -> vector<16x128xf32>
    %23 = arith.index_cast %arg0 : i32 to index
    %24 = memref.load %arg1[%23] : memref<3xf32, #tpu.memory_space<smem>>
    %cst_19 = arith.constant 1.000000e+00 : f32
    %25 = arith.addf %cst_19, %24 : f32
    %26 = vector.broadcast %25 : f32 to vector<16x128xf32>
    %27 = arith.mulf %26, %9 : vector<16x128xf32>
    %28 = arith.addf %27, %22 : vector<16x128xf32>
    %29 = arith.truncf %28 : vector<16x128xf32> to vector<16x128xbf16>
    %c0_20 = arith.constant 0 : index
    %c0_21 = arith.constant 0 : index
    %c0_22 = arith.constant 0 : index
    %30 = vector.load %arg10[%c0_20, %c0_21, %c0_22] : memref<1x128x128xbf16, #tpu.memory_space<vmem>>, vector<1x128x128xbf16>
    %31 = vector.shape_cast %30 : vector<1x128x128xbf16> to vector<128x128xbf16>
    %cst_23 = arith.constant dense<0.000000e+00> : vector<16x128xf32>
    %32 = tpu.matmul %29, %31, %cst_23 {dimension_numbers = #tpu.dot_dimension_numbers<[1], [0], [0], [1], [0, 0, 1, 1], [], []>} : vector<16x128xbf16>, vector<128x128xbf16>, vector<16x128xf32> -> vector<16x128xf32>
    %c0_24 = arith.constant 0 : index
    %c0_25 = arith.constant 0 : index
    %c0_26 = arith.constant 0 : index
    %33 = vector.load %arg11[%c0_24, %c0_25, %c0_26] : memref<1x1x128xf32, #tpu.memory_space<vmem>>, vector<1x1x128xf32>
    %34 = vector.shape_cast %33 : vector<1x1x128xf32> to vector<1x128xf32>
    %35 = vector.broadcast %34 : vector<1x128xf32> to vector<16x128xf32>
    %36 = arith.addf %32, %35 : vector<16x128xf32>
    %c0_27 = arith.constant 0 : index
    %c0_28 = arith.constant 0 : index
    %c0_29 = arith.constant 0 : index
    %37 = vector.load %arg12[%c0_27, %c0_28, %c0_29] : memref<1x1x128xf32, #tpu.memory_space<vmem>>, vector<1x1x128xf32>
    %38 = vector.shape_cast %37 : vector<1x1x128xf32> to vector<1x128xf32>
    %39 = vector.broadcast %38 : vector<1x128xf32> to vector<16x128xf32>
    %40 = arith.mulf %36, %39 : vector<16x128xf32>
    %c0_30 = arith.constant 0 : index
    %c0_31 = arith.constant 0 : index
    %c0_32 = arith.constant 0 : index
    %41 = vector.load %arg13[%c0_30, %c0_31, %c0_32] : memref<1x1x128xf32, #tpu.memory_space<vmem>>, vector<1x1x128xf32>
    %42 = vector.shape_cast %41 : vector<1x1x128xf32> to vector<1x128xf32>
    %43 = vector.broadcast %42 : vector<1x128xf32> to vector<16x128xf32>
    %44 = arith.addf %40, %43 : vector<16x128xf32>
    %cst_33 = arith.constant 0.000000e+00 : f32
    %45 = vector.broadcast %cst_33 : f32 to vector<16x128xf32>
    %46 = arith.maximumf %44, %45 : vector<16x128xf32>
    %47 = arith.truncf %46 : vector<16x128xf32> to vector<16x128xbf16>
    %c0_34 = arith.constant 0 : index
    %c0_35 = arith.constant 0 : index
    %c0_36 = arith.constant 0 : index
    %48 = vector.load %arg14[%c0_34, %c0_35, %c0_36] : memref<1x128x128xbf16, #tpu.memory_space<vmem>>, vector<1x128x128xbf16>
    %49 = vector.shape_cast %48 : vector<1x128x128xbf16> to vector<128x128xbf16>
    %cst_37 = arith.constant dense<0.000000e+00> : vector<16x128xf32>
    %50 = tpu.matmul %47, %49, %cst_37 {dimension_numbers = #tpu.dot_dimension_numbers<[1], [0], [0], [1], [0, 0, 1, 1], [], []>} : vector<16x128xbf16>, vector<128x128xbf16>, vector<16x128xf32> -> vector<16x128xf32>
    %c0_38 = arith.constant 0 : index
    %c0_39 = arith.constant 0 : index
    %c0_40 = arith.constant 0 : index
    %51 = vector.load %arg15[%c0_38, %c0_39, %c0_40] : memref<1x1x128xf32, #tpu.memory_space<vmem>>, vector<1x1x128xf32>
    %52 = vector.shape_cast %51 : vector<1x1x128xf32> to vector<1x128xf32>
    %53 = vector.broadcast %52 : vector<1x128xf32> to vector<16x128xf32>
    %54 = arith.addf %50, %53 : vector<16x128xf32>
    %c0_41 = arith.constant 0 : index
    %c0_42 = arith.constant 0 : index
    %c0_43 = arith.constant 0 : index
    %55 = vector.load %arg16[%c0_41, %c0_42, %c0_43] : memref<1x1x128xf32, #tpu.memory_space<vmem>>, vector<1x1x128xf32>
    %56 = vector.shape_cast %55 : vector<1x1x128xf32> to vector<1x128xf32>
    %57 = vector.broadcast %56 : vector<1x128xf32> to vector<16x128xf32>
    %58 = arith.mulf %54, %57 : vector<16x128xf32>
    %c0_44 = arith.constant 0 : index
    %c0_45 = arith.constant 0 : index
    %c0_46 = arith.constant 0 : index
    %59 = vector.load %arg17[%c0_44, %c0_45, %c0_46] : memref<1x1x128xf32, #tpu.memory_space<vmem>>, vector<1x1x128xf32>
    %60 = vector.shape_cast %59 : vector<1x1x128xf32> to vector<1x128xf32>
    %61 = vector.broadcast %60 : vector<1x128xf32> to vector<16x128xf32>
    %62 = arith.addf %58, %61 : vector<16x128xf32>
    %cst_47 = arith.constant 0.000000e+00 : f32
    %63 = vector.broadcast %cst_47 : f32 to vector<16x128xf32>
    %64 = arith.maximumf %62, %63 : vector<16x128xf32>
    %65 = arith.select %0, %62, %64 : vector<16x128xf32>
    %66 = arith.addf %65, %9 : vector<16x128xf32>
    %c0_48 = arith.constant 0 : index
    %c0_49 = arith.constant 0 : index
    %67 = vector.load %arg26[%c0_48, %c0_49] : memref<16x128xf32, #tpu.memory_space<vmem>>, vector<16x128xf32>
    tpu.vector_store %arg26[%c0_48, %c0_49], %66 {strides = array<i32>} : memref<16x128xf32, #tpu.memory_space<vmem>>, vector<16x128xf32>,
    %c2_i32_50 = arith.constant 2 : i32
    %68 = arith.cmpi slt, %arg0, %c2_i32_50 : i32
    %69 = arith.extui %68 : i1 to i32
    %c0_i32_51 = arith.constant 0 : i32
    %70 = arith.cmpi ne, %69, %c0_i32_51 : i32
    scf.if %70 {
      %cst_53 = arith.constant dense<0.000000e+00> : vector<2x128xf32>
      %73 = tpu.matmul %6, %10, %cst_53 {dimension_numbers = #tpu.dot_dimension_numbers<[0], [0], [1], [1], [0, 1, 1, 1], [], []>} : vector<16x2xbf16>, vector<16x128xbf16>, vector<2x128xf32> -> vector<2x128xf32>
      %74 = arith.addf %73, %5 : vector<2x128xf32>
      %75 = arith.truncf %74 : vector<2x128xf32> to vector<2x128xbf16>
      %c0_54 = arith.constant 0 : index
      %c0_55 = arith.constant 0 : index
      %c0_56 = arith.constant 0 : index
      %76 = vector.load %arg18[%c0_54, %c0_55, %c0_56] : memref<1x128x128xbf16, #tpu.memory_space<vmem>>, vector<1x128x128xbf16>
      %77 = vector.shape_cast %76 : vector<1x128x128xbf16> to vector<128x128xbf16>
      %cst_57 = arith.constant dense<0.000000e+00> : vector<2x128xf32>
      %78 = tpu.matmul %75, %77, %cst_57 {dimension_numbers = #tpu.dot_dimension_numbers<[1], [0], [0], [1], [0, 0, 1, 1], [], []>} : vector<2x128xbf16>, vector<128x128xbf16>, vector<2x128xf32> -> vector<2x128xf32>
      %c0_58 = arith.constant 0 : index
      %c0_59 = arith.constant 0 : index
      %c0_60 = arith.constant 0 : index
      %79 = vector.load %arg19[%c0_58, %c0_59, %c0_60] : memref<1x1x128xf32, #tpu.memory_space<vmem>>, vector<1x1x128xf32>
      %80 = vector.shape_cast %79 : vector<1x1x128xf32> to vector<1x128xf32>
      %81 = vector.broadcast %80 : vector<1x128xf32> to vector<2x128xf32>
      %82 = arith.addf %78, %81 : vector<2x128xf32>
      %c0_61 = arith.constant 0 : index
      %c0_62 = arith.constant 0 : index
      %c0_63 = arith.constant 0 : index
      %83 = vector.load %arg20[%c0_61, %c0_62, %c0_63] : memref<1x1x128xf32, #tpu.memory_space<vmem>>, vector<1x1x128xf32>
      %84 = vector.shape_cast %83 : vector<1x1x128xf32> to vector<1x128xf32>
      %85 = vector.broadcast %84 : vector<1x128xf32> to vector<2x128xf32>
      %86 = arith.mulf %82, %85 : vector<2x128xf32>
      %c0_64 = arith.constant 0 : index
      %c0_65 = arith.constant 0 : index
      %c0_66 = arith.constant 0 : index
      %87 = vector.load %arg21[%c0_64, %c0_65, %c0_66] : memref<1x1x128xf32, #tpu.memory_space<vmem>>, vector<1x1x128xf32>
      %88 = vector.shape_cast %87 : vector<1x1x128xf32> to vector<1x128xf32>
      %89 = vector.broadcast %88 : vector<1x128xf32> to vector<2x128xf32>
      %90 = arith.addf %86, %89 : vector<2x128xf32>
      %cst_67 = arith.constant 0.000000e+00 : f32
      %91 = vector.broadcast %cst_67 : f32 to vector<2x128xf32>
      %92 = arith.maximumf %90, %91 : vector<2x128xf32>
      %93 = arith.truncf %92 : vector<2x128xf32> to vector<2x128xbf16>
      %c0_68 = arith.constant 0 : index
      %c0_69 = arith.constant 0 : index
      %c0_70 = arith.constant 0 : index
      %94 = vector.load %arg22[%c0_68, %c0_69, %c0_70] : memref<1x128x128xbf16, #tpu.memory_space<vmem>>, vector<1x128x128xbf16>
      %95 = vector.shape_cast %94 : vector<1x128x128xbf16> to vector<128x128xbf16>
      %cst_71 = arith.constant dense<0.000000e+00> : vector<2x128xf32>
      %96 = tpu.matmul %93, %95, %cst_71 {dimension_numbers = #tpu.dot_dimension_numbers<[1], [0], [0], [1], [0, 0, 1, 1], [], []>} : vector<2x128xbf16>, vector<128x128xbf16>, vector<2x128xf32> -> vector<2x128xf32>
      %c0_72 = arith.constant 0 : index
      %c0_73 = arith.constant 0 : index
      %c0_74 = arith.constant 0 : index
      %97 = vector.load %arg23[%c0_72, %c0_73, %c0_74] : memref<1x1x128xf32, #tpu.memory_space<vmem>>, vector<1x1x128xf32>
      %98 = vector.shape_cast %97 : vector<1x1x128xf32> to vector<1x128xf32>
      %99 = vector.broadcast %98 : vector<1x128xf32> to vector<2x128xf32>
      %100 = arith.addf %96, %99 : vector<2x128xf32>
      %c0_75 = arith.constant 0 : index
      %c0_76 = arith.constant 0 : index
      %c0_77 = arith.constant 0 : index
      %101 = vector.load %arg24[%c0_75, %c0_76, %c0_77] : memref<1x1x128xf32, #tpu.memory_space<vmem>>, vector<1x1x128xf32>
      %102 = vector.shape_cast %101 : vector<1x1x128xf32> to vector<1x128xf32>
      %103 = vector.broadcast %102 : vector<1x128xf32> to vector<2x128xf32>
      %104 = arith.mulf %100, %103 : vector<2x128xf32>
      %c0_78 = arith.constant 0 : index
      %c0_79 = arith.constant 0 : index
      %c0_80 = arith.constant 0 : index
      %105 = vector.load %arg25[%c0_78, %c0_79, %c0_80] : memref<1x1x128xf32, #tpu.memory_space<vmem>>, vector<1x1x128xf32>
      %106 = vector.shape_cast %105 : vector<1x1x128xf32> to vector<1x128xf32>
      %107 = vector.broadcast %106 : vector<1x128xf32> to vector<2x128xf32>
      %108 = arith.addf %104, %107 : vector<2x128xf32>
      %cst_81 = arith.constant 0.000000e+00 : f32
      %109 = vector.broadcast %cst_81 : f32 to vector<2x128xf32>
      %110 = arith.maximumf %108, %109 : vector<2x128xf32>
      %111 = arith.addf %5, %110 : vector<2x128xf32>
      %c0_82 = arith.constant 0 : index
      %c0_83 = arith.constant 0 : index
      %112 = vector.load %arg28[%c0_82, %c0_83] : memref<2x128xf32, #tpu.memory_space<vmem>>, vector<2x128xf32>
      tpu.vector_store %arg28[%c0_82, %c0_83], %111 {strides = array<i32>} : memref<2x128xf32, #tpu.memory_space<vmem>>, vector<2x128xf32>,
    } else {
    }
    %71 = arith.extui %0 : i1 to i32
    %c0_i32_52 = arith.constant 0 : i32
    %72 = arith.cmpi ne, %71, %c0_i32_52 : i32
    scf.if %72 {
      %c0_53 = arith.constant 0 : index
      %c0_54 = arith.constant 0 : index
      %73 = vector.load %arg4[%c0_53, %c0_54] : memref<16x1xf32, #tpu.memory_space<vmem>>, vector<16x1xf32>
      %cst_55 = arith.constant 0.000000e+00 : f32
      %74 = vector.broadcast %cst_55 : f32 to vector<16x1xf32>
      %75 = arith.cmpf oeq, %73, %74 : vector<16x1xf32>
      %cst_56 = arith.constant -3.40282347E+38 : f32
      %76 = vector.shape_cast %75 : vector<16x1xi1> to vector<16x1xi1>
      %77 = vector.broadcast %76 : vector<16x1xi1> to vector<16x128xi1>
      %78 = vector.broadcast %cst_56 : f32 to vector<16x128xf32>
      %79 = arith.select %77, %66, %78 : vector<16x128xi1>, vector<16x128xf32>
      %cst_57 = arith.constant dense<0xFF800000> : vector<128xf32>
      %80 = vector.multi_reduction <maximumf>, %79, %cst_57 [0] : vector<16x128xf32> to vector<128xf32>
      %81 = vector.shape_cast %80 : vector<128xf32> to vector<1x128xf32>
      %c0_58 = arith.constant 0 : index
      %c0_59 = arith.constant 0 : index
      %82 = vector.load %arg27[%c0_58, %c0_59] : memref<2x128xf32, #tpu.memory_space<vmem>>, vector<1x128xf32>
      tpu.vector_store %arg27[%c0_58, %c0_59], %81 {strides = array<i32>} : memref<2x128xf32, #tpu.memory_space<vmem>>, vector<1x128xf32>,
      %cst_60 = arith.constant 1.000000e+00 : f32
      %83 = vector.broadcast %cst_60 : f32 to vector<16x1xf32>
      %84 = arith.cmpf oeq, %73, %83 : vector<16x1xf32>
      %cst_61 = arith.constant -3.40282347E+38 : f32
      %85 = vector.shape_cast %84 : vector<16x1xi1> to vector<16x1xi1>
      %86 = vector.broadcast %85 : vector<16x1xi1> to vector<16x128xi1>
      %87 = vector.broadcast %cst_61 : f32 to vector<16x128xf32>
      %88 = arith.select %86, %66, %87 : vector<16x128xi1>, vector<16x128xf32>
      %cst_62 = arith.constant dense<0xFF800000> : vector<128xf32>
      %89 = vector.multi_reduction <maximumf>, %88, %cst_62 [0] : vector<16x128xf32> to vector<128xf32>
      %90 = vector.shape_cast %89 : vector<128xf32> to vector<1x128xf32>
      %c1 = arith.constant 1 : index
      %c0_63 = arith.constant 0 : index
      %91 = vector.load %arg27[%c1, %c0_63] : memref<2x128xf32, #tpu.memory_space<vmem>>, vector<1x128xf32>
      tpu.vector_store %arg27[%c1, %c0_63], %90 {strides = array<i32>} : memref<2x128xf32, #tpu.memory_space<vmem>>, vector<1x128xf32>,
    } else {
    }
    return
  }
  func.func @transform_0(%arg0: i32) -> i32 {
    %c0_i32 = arith.constant 0 : i32
    %c0_i32_0 = arith.constant 0 : i32
    return %c0_i32 : i32
  }
  func.func @transform_1(%arg0: i32) -> (i32, i32) {
    %c0_i32 = arith.constant 0 : i32
    %c0_i32_0 = arith.constant 0 : i32
    %c0_i32_1 = arith.constant 0 : i32
    return %c0_i32, %c0_i32_0 : i32, i32
  }
  func.func @transform_2(%arg0: i32) -> (i32, i32) {
    %c0_i32 = arith.constant 0 : i32
    %c0_i32_0 = arith.constant 0 : i32
    %c0_i32_1 = arith.constant 0 : i32
    return %c0_i32, %c0_i32_0 : i32, i32
  }
  func.func @transform_3(%arg0: i32) -> (i32, i32) {
    %c0_i32 = arith.constant 0 : i32
    %c0_i32_0 = arith.constant 0 : i32
    %c0_i32_1 = arith.constant 0 : i32
    return %c0_i32, %c0_i32_0 : i32, i32
  }
  func.func @transform_4(%arg0: i32) -> (i32, i32) {
    %c0_i32 = arith.constant 0 : i32
    %c0_i32_0 = arith.constant 0 : i32
    %c0_i32_1 = arith.constant 0 : i32
    return %c0_i32, %c0_i32_0 : i32, i32
  }
  func.func @transform_5(%arg0: i32) -> (i32, i32) {
    %c0_i32 = arith.constant 0 : i32
    %c0_i32_0 = arith.constant 0 : i32
    %c0_i32_1 = arith.constant 0 : i32
    return %c0_i32, %c0_i32_0 : i32, i32
  }
  func.func @transform_6(%arg0: i32) -> (i32, i32) {
    %c0_i32 = arith.constant 0 : i32
    %c0_i32_0 = arith.constant 0 : i32
    %c0_i32_1 = arith.constant 0 : i32
    return %c0_i32, %c0_i32_0 : i32, i32
  }
  func.func @transform_7(%arg0: i32) -> (i32, i32) {
    %c0_i32 = arith.constant 0 : i32
    %c0_i32_0 = arith.constant 0 : i32
    %c0_i32_1 = arith.constant 0 : i32
    return %c0_i32, %c0_i32_0 : i32, i32
  }
  func.func @transform_8(%arg0: i32) -> (i32, i32, i32) {
    %c0_i32 = arith.constant 0 : i32
    %c0_i32_0 = arith.constant 0 : i32
    %c0_i32_1 = arith.constant 0 : i32
    return %arg0, %c0_i32, %c0_i32_0 : i32, i32, i32
  }
  func.func @transform_9(%arg0: i32) -> (i32, i32, i32) {
    %c0_i32 = arith.constant 0 : i32
    %c0_i32_0 = arith.constant 0 : i32
    %c0_i32_1 = arith.constant 0 : i32
    return %arg0, %c0_i32, %c0_i32_0 : i32, i32, i32
  }
  func.func @transform_10(%arg0: i32) -> (i32, i32, i32) {
    %c0_i32 = arith.constant 0 : i32
    %c0_i32_0 = arith.constant 0 : i32
    %c0_i32_1 = arith.constant 0 : i32
    return %arg0, %c0_i32, %c0_i32_0 : i32, i32, i32
  }
  func.func @transform_11(%arg0: i32) -> (i32, i32, i32) {
    %c0_i32 = arith.constant 0 : i32
    %c0_i32_0 = arith.constant 0 : i32
    %c0_i32_1 = arith.constant 0 : i32
    return %arg0, %c0_i32, %c0_i32_0 : i32, i32, i32
  }
  func.func @transform_12(%arg0: i32) -> (i32, i32, i32) {
    %c0_i32 = arith.constant 0 : i32
    %c0_i32_0 = arith.constant 0 : i32
    %c0_i32_1 = arith.constant 0 : i32
    return %arg0, %c0_i32, %c0_i32_0 : i32, i32, i32
  }
  func.func @transform_13(%arg0: i32) -> (i32, i32, i32) {
    %c0_i32 = arith.constant 0 : i32
    %c0_i32_0 = arith.constant 0 : i32
    %c0_i32_1 = arith.constant 0 : i32
    return %arg0, %c0_i32, %c0_i32_0 : i32, i32, i32
  }
  func.func @transform_14(%arg0: i32) -> (i32, i32, i32) {
    %c0_i32 = arith.constant 0 : i32
    %c0_i32_0 = arith.constant 0 : i32
    %c0_i32_1 = arith.constant 0 : i32
    return %arg0, %c0_i32, %c0_i32_0 : i32, i32, i32
  }
  func.func @transform_15(%arg0: i32) -> (i32, i32, i32) {
    %c0_i32 = arith.constant 0 : i32
    %c0_i32_0 = arith.constant 0 : i32
    %c0_i32_1 = arith.constant 0 : i32
    return %arg0, %c0_i32, %c0_i32_0 : i32, i32, i32
  }
  func.func @transform_16(%arg0: i32) -> (i32, i32, i32) {
    %c0_i32 = arith.constant 0 : i32
    %c0_i32_0 = arith.constant 0 : i32
    %c0_i32_1 = arith.constant 0 : i32
    return %arg0, %c0_i32, %c0_i32_0 : i32, i32, i32
  }
  func.func @transform_17(%arg0: i32) -> (i32, i32, i32) {
    %c1_i32 = arith.constant 1 : i32
    %0 = arith.minsi %arg0, %c1_i32 : i32
    %c0_i32 = arith.constant 0 : i32
    %c0_i32_0 = arith.constant 0 : i32
    %c0_i32_1 = arith.constant 0 : i32
    return %0, %c0_i32, %c0_i32_0 : i32, i32, i32
  }
  func.func @transform_18(%arg0: i32) -> (i32, i32, i32) {
    %c1_i32 = arith.constant 1 : i32
    %0 = arith.minsi %arg0, %c1_i32 : i32
    %c0_i32 = arith.constant 0 : i32
    %c0_i32_0 = arith.constant 0 : i32
    %c0_i32_1 = arith.constant 0 : i32
    return %0, %c0_i32, %c0_i32_0 : i32, i32, i32
  }
  func.func @transform_19(%arg0: i32) -> (i32, i32, i32) {
    %c1_i32 = arith.constant 1 : i32
    %0 = arith.minsi %arg0, %c1_i32 : i32
    %c0_i32 = arith.constant 0 : i32
    %c0_i32_0 = arith.constant 0 : i32
    %c0_i32_1 = arith.constant 0 : i32
    return %0, %c0_i32, %c0_i32_0 : i32, i32, i32
  }
  func.func @transform_20(%arg0: i32) -> (i32, i32, i32) {
    %c1_i32 = arith.constant 1 : i32
    %0 = arith.minsi %arg0, %c1_i32 : i32
    %c0_i32 = arith.constant 0 : i32
    %c0_i32_0 = arith.constant 0 : i32
    %c0_i32_1 = arith.constant 0 : i32
    return %0, %c0_i32, %c0_i32_0 : i32, i32, i32
  }
  func.func @transform_21(%arg0: i32) -> (i32, i32, i32) {
    %c1_i32 = arith.constant 1 : i32
    %0 = arith.minsi %arg0, %c1_i32 : i32
    %c0_i32 = arith.constant 0 : i32
    %c0_i32_0 = arith.constant 0 : i32
    %c0_i32_1 = arith.constant 0 : i32
    return %0, %c0_i32, %c0_i32_0 : i32, i32, i32
  }
  func.func @transform_22(%arg0: i32) -> (i32, i32, i32) {
    %c1_i32 = arith.constant 1 : i32
    %0 = arith.minsi %arg0, %c1_i32 : i32
    %c0_i32 = arith.constant 0 : i32
    %c0_i32_0 = arith.constant 0 : i32
    %c0_i32_1 = arith.constant 0 : i32
    return %0, %c0_i32, %c0_i32_0 : i32, i32, i32
  }
  func.func @transform_23(%arg0: i32) -> (i32, i32, i32) {
    %c1_i32 = arith.constant 1 : i32
    %0 = arith.minsi %arg0, %c1_i32 : i32
    %c0_i32 = arith.constant 0 : i32
    %c0_i32_0 = arith.constant 0 : i32
    %c0_i32_1 = arith.constant 0 : i32
    return %0, %c0_i32, %c0_i32_0 : i32, i32, i32
  }
  func.func @transform_24(%arg0: i32) -> (i32, i32, i32) {
    %c1_i32 = arith.constant 1 : i32
    %0 = arith.minsi %arg0, %c1_i32 : i32
    %c0_i32 = arith.constant 0 : i32
    %c0_i32_0 = arith.constant 0 : i32
    %c0_i32_1 = arith.constant 0 : i32
    return %0, %c0_i32, %c0_i32_0 : i32, i32, i32
  }
  func.func @transform_25(%arg0: i32) -> (i32, i32) {
    %c0_i32 = arith.constant 0 : i32
    %c0_i32_0 = arith.constant 0 : i32
    %c0_i32_1 = arith.constant 0 : i32
    return %c0_i32, %c0_i32_0 : i32, i32
  }
  func.func @transform_26(%arg0: i32) -> (i32, i32) {
    %c0_i32 = arith.constant 0 : i32
    %c0_i32_0 = arith.constant 0 : i32
    %c0_i32_1 = arith.constant 0 : i32
    return %c0_i32, %c0_i32_0 : i32, i32
  }
}

module attributes {stable_mosaic.version = 11 : i64} {
  func.func @_fused_gnn_kernel(%arg0: i32, %arg1: memref<3xf32, #tpu.memory_space<smem>>, %arg2: memref<16x128xf32, #tpu.memory_space<vmem>>, %arg3: memref<2x128xf32, #tpu.memory_space<vmem>>, %arg4: memref<16x1xf32, #tpu.memory_space<vmem>>, %arg5: memref<32x16xbf16, #tpu.memory_space<vmem>>, %arg6: memref<16x32xbf16, #tpu.memory_space<vmem>>, %arg7: memref<16x2xbf16, #tpu.memory_space<vmem>>, %arg8: memref<32x24xbf16, #tpu.memory_space<vmem>>, %arg9: memref<1x24x128xbf16, #tpu.memory_space<vmem>>, %arg10: memref<1x128x128xbf16, #tpu.memory_space<vmem>>, %arg11: memref<1x1x128xf32, #tpu.memory_space<vmem>>, %arg12: memref<1x1x128xf32, #tpu.memory_space<vmem>>, %arg13: memref<1x1x128xf32, #tpu.memory_space<vmem>>, %arg14: memref<1x128x128xbf16, #tpu.memory_space<vmem>>, %arg15: memref<1x1x128xf32, #tpu.memory_space<vmem>>, %arg16: memref<1x1x128xf32, #tpu.memory_space<vmem>>, %arg17: memref<1x1x128xf32, #tpu.memory_space<vmem>>, %arg18: memref<1x128x128xbf16, #tpu.memory_space<vmem>>, %arg19: memref<1x1x128xf32, #tpu.memory_space<vmem>>, %arg20: memref<1x1x128xf32, #tpu.memory_space<vmem>>, %arg21: memref<1x1x128xf32, #tpu.memory_space<vmem>>, %arg22: memref<1x128x128xbf16, #tpu.memory_space<vmem>>, %arg23: memref<1x1x128xf32, #tpu.memory_space<vmem>>, %arg24: memref<1x1x128xf32, #tpu.memory_space<vmem>>, %arg25: memref<1x1x128xf32, #tpu.memory_space<vmem>>, %arg26: memref<16x128xf32, #tpu.memory_space<vmem>>, %arg27: memref<2x128xf32, #tpu.memory_space<vmem>>, %arg28: memref<2x128xf32, #tpu.memory_space<vmem>>) attributes {dimension_semantics = [#tpu.dimension_semantics<arbitrary>], iteration_bounds = array<i64: 3>, scalar_prefetch = 0 : i64, scratch_operands = 1 : i64, tpu.core_type = #tpu.core_type<tc>, window_params = [{transform_indices = @transform_0, window_bounds = array<i64: 3>}, {pipeline_mode = #tpu.pipeline_mode<synchronous>, transform_indices = @transform_1, window_bounds = array<i64: 16, 128>}, {pipeline_mode = #tpu.pipeline_mode<synchronous>, transform_indices = @transform_2, window_bounds = array<i64: 2, 128>}, {pipeline_mode = #tpu.pipeline_mode<synchronous>, transform_indices = @transform_3, window_bounds = array<i64: 16, 1>}, {pipeline_mode = #tpu.pipeline_mode<synchronous>, transform_indices = @transform_4, window_bounds = array<i64: 32, 16>}, {pipeline_mode = #tpu.pipeline_mode<synchronous>, transform_indices = @transform_5, window_bounds = array<i64: 16, 32>}, {pipeline_mode = #tpu.pipeline_mode<synchronous>, transform_indices = @transform_6, window_bounds = array<i64: 16, 2>}, {pipeline_mode = #tpu.pipeline_mode<synchronous>, transform_indices = @transform_7, window_bounds = array<i64: 32, 24>}, {transform_indices = @transform_8, window_bounds = array<i64: 1, 24, 128>}, {transform_indices = @transform_9, window_bounds = array<i64: 1, 128, 128>}, {transform_indices = @transform_10, window_bounds = array<i64: 1, 1, 128>}, {transform_indices = @transform_11, window_bounds = array<i64: 1, 1, 128>}, {transform_indices = @transform_12, window_bounds = array<i64: 1, 1, 128>}, {transform_indices = @transform_13, window_bounds = array<i64: 1, 128, 128>}, {transform_indices = @transform_14, window_bounds = array<i64: 1, 1, 128>}, {transform_indices = @transform_15, window_bounds = array<i64: 1, 1, 128>}, {transform_indices = @transform_16, window_bounds = array<i64: 1, 1, 128>}, {transform_indices = @transform_17, window_bounds = array<i64: 1, 128, 128>}, {transform_indices = @transform_18, window_bounds = array<i64: 1, 1, 128>}, {transform_indices = @transform_19, window_bounds = array<i64: 1, 1, 128>}, {transform_indices = @transform_20, window_bounds = array<i64: 1, 1, 128>}, {transform_indices = @transform_21, window_bounds = array<i64: 1, 128, 128>}, {transform_indices = @transform_22, window_bounds = array<i64: 1, 1, 128>}, {transform_indices = @transform_23, window_bounds = array<i64: 1, 1, 128>}, {transform_indices = @transform_24, window_bounds = array<i64: 1, 1, 128>}, {pipeline_mode = #tpu.pipeline_mode<synchronous>, transform_indices = @transform_25, window_bounds = array<i64: 16, 128>}, {pipeline_mode = #tpu.pipeline_mode<synchronous>, transform_indices = @transform_26, window_bounds = array<i64: 2, 128>}]} {
    %c2_i32 = arith.constant 2 : i32
    %0 = arith.cmpi eq, %arg0, %c2_i32 : i32
    %c0_i32 = arith.constant 0 : i32
    %1 = arith.cmpi eq, %arg0, %c0_i32 : i32
    %2 = arith.extui %1 : i1 to i32
    %c0_i32_0 = arith.constant 0 : i32
    %3 = arith.cmpi ne, %2, %c0_i32_0 : i32
    scf.if %3 {
      %c0_53 = arith.constant 0 : index
      %c0_54 = arith.constant 0 : index
      %73 = vector.load %arg2[%c0_53, %c0_54] : memref<16x128xf32, #tpu.memory_space<vmem>>, vector<16x128xf32>
      %c0_55 = arith.constant 0 : index
      %c0_56 = arith.constant 0 : index
      %74 = vector.load %arg26[%c0_55, %c0_56] : memref<16x128xf32, #tpu.memory_space<vmem>>, vector<16x128xf32>
      tpu.vector_store %arg26[%c0_55, %c0_56], %73 {strides = array<i32>} : memref<16x128xf32, #tpu.memory_space<vmem>>, vector<16x128xf32>,
      %c0_57 = arith.constant 0 : index
      %c0_58 = arith.constant 0 : index
      %75 = vector.load %arg3[%c0_57, %c0_58] : memref<2x128xf32, #tpu.memory_space<vmem>>, vector<2x128xf32>
      %c0_59 = arith.constant 0 : index
      %c0_60 = arith.constant 0 : index
      %76 = vector.load %arg28[%c0_59, %c0_60] : memref<2x128xf32, #tpu.memory_space<vmem>>, vector<2x128xf32>
      tpu.vector_store %arg28[%c0_59, %c0_60], %75 {strides = array<i32>} : memref<2x128xf32, #tpu.memory_space<vmem>>, vector<2x128xf32>,
    } else {
    }
    %c0 = arith.constant 0 : index
    %c0_1 = arith.constant 0 : index
    %4 = vector.load %arg26[%c0, %c0_1] : memref<16x128xf32, #tpu.memory_space<vmem>>, vector<16x128xf32>
    %c0_2 = arith.constant 0 : index
    %c0_3 = arith.constant 0 : index
    %5 = vector.load %arg28[%c0_2, %c0_3] : memref<2x128xf32, #tpu.memory_space<vmem>>, vector<2x128xf32>
    %c0_4 = arith.constant 0 : index
    %c0_5 = arith.constant 0 : index
    %6 = vector.load %arg7[%c0_4, %c0_5] : memref<16x2xbf16, #tpu.memory_space<vmem>>, vector<16x2xbf16>
    %7 = arith.truncf %5 : vector<2x128xf32> to vector<2x128xbf16>
    %cst = arith.constant dense<0.000000e+00> : vector<16x128xf32>
    %8 = tpu.matmul %6, %7, %cst {dimension_numbers = #tpu.dot_dimension_numbers<[1], [0], [0], [1], [0, 0, 1, 1], [], []>} : vector<16x2xbf16>, vector<2x128xbf16>, vector<16x128xf32> -> vector<16x128xf32>
    %9 = arith.addf %4, %8 : vector<16x128xf32>
    %10 = arith.truncf %9 : vector<16x128xf32> to vector<16x128xbf16>
    %c0_6 = arith.constant 0 : index
    %c0_7 = arith.constant 0 : index
    %11 = vector.load %arg8[%c0_6, %c0_7] : memref<32x24xbf16, #tpu.memory_space<vmem>>, vector<32x24xbf16>
    %c0_8 = arith.constant 0 : index
    %c0_9 = arith.constant 0 : index
    %c0_10 = arith.constant 0 : index
    %12 = vector.load %arg9[%c0_8, %c0_9, %c0_10] : memref<1x24x128xbf16, #tpu.memory_space<vmem>>, vector<1x24x128xbf16>
    %13 = vector.shape_cast %12 : vector<1x24x128xbf16> to vector<24x128xbf16>
    %cst_11 = arith.constant dense<0.000000e+00> : vector<32x128xf32>
    %14 = tpu.matmul %11, %13, %cst_11 {dimension_numbers = #tpu.dot_dimension_numbers<[1], [0], [0], [1], [0, 0, 1, 1], [], []>} : vector<32x24xbf16>, vector<24x128xbf16>, vector<32x128xf32> -> vector<32x128xf32>
    %c0_12 = arith.constant 0 : index
    %c0_13 = arith.constant 0 : index
    %15 = vector.load %arg5[%c0_12, %c0_13] : memref<32x16xbf16, #tpu.memory_space<vmem>>, vector<32x16xbf16>
    %cst_14 = arith.constant dense<0.000000e+00> : vector<32x128xf32>
    %16 = tpu.matmul %15, %10, %cst_14 {dimension_numbers = #tpu.dot_dimension_numbers<[1], [0], [0], [1], [0, 0, 1, 1], [], []>} : vector<32x16xbf16>, vector<16x128xbf16>, vector<32x128xf32> -> vector<32x128xf32>
    %17 = arith.addf %16, %14 : vector<32x128xf32>
    %cst_15 = arith.constant 0.000000e+00 : f32
    %18 = vector.broadcast %cst_15 : f32 to vector<32x128xf32>
    %19 = arith.maximumf %17, %18 : vector<32x128xf32>
    %c0_16 = arith.constant 0 : index
    %c0_17 = arith.constant 0 : index
    %20 = vector.load %arg6[%c0_16, %c0_17] : memref<16x32xbf16, #tpu.memory_space<vmem>>, vector<16x32xbf16>
    %21 = arith.truncf %19 : vector<32x128xf32> to vector<32x128xbf16>
    %cst_18 = arith.constant dense<0.000000e+00> : vector<16x128xf32>
    %22 = tpu.matmul %20, %21, %cst_18 {dimension_numbers = #tpu.dot_dimension_numbers<[1], [0], [0], [1], [0, 0, 1, 1], [], []>} : vector<16x32xbf16>, vector<32x128xbf16>, vector<16x128xf32> -> vector<16x128xf32>
    %23 = arith.index_cast %arg0 : i32 to index
    %24 = memref.load %arg1[%23] : memref<3xf32, #tpu.memory_space<smem>>
    %cst_19 = arith.constant 1.000000e+00 : f32
    %25 = arith.addf %cst_19, %24 : f32
    %26 = vector.broadcast %25 : f32 to vector<16x128xf32>
    %27 = arith.mulf %26, %9 : vector<16x128xf32>
    %28 = arith.addf %27, %22 : vector<16x128xf32>
    %29 = arith.truncf %28 : vector<16x128xf32> to vector<16x128xbf16>
    %c0_20 = arith.constant 0 : index
    %c0_21 = arith.constant 0 : index
    %c0_22 = arith.constant 0 : index
    %30 = vector.load %arg10[%c0_20, %c0_21, %c0_22] : memref<1x128x128xbf16, #tpu.memory_space<vmem>>, vector<1x128x128xbf16>
    %31 = vector.shape_cast %30 : vector<1x128x128xbf16> to vector<128x128xbf16>
    %cst_23 = arith.constant dense<0.000000e+00> : vector<16x128xf32>
    %32 = tpu.matmul %29, %31, %cst_23 {dimension_numbers = #tpu.dot_dimension_numbers<[1], [0], [0], [1], [0, 0, 1, 1], [], []>} : vector<16x128xbf16>, vector<128x128xbf16>, vector<16x128xf32> -> vector<16x128xf32>
    %c0_24 = arith.constant 0 : index
    %c0_25 = arith.constant 0 : index
    %c0_26 = arith.constant 0 : index
    %33 = vector.load %arg11[%c0_24, %c0_25, %c0_26] : memref<1x1x128xf32, #tpu.memory_space<vmem>>, vector<1x1x128xf32>
    %34 = vector.shape_cast %33 : vector<1x1x128xf32> to vector<1x128xf32>
    %35 = vector.broadcast %34 : vector<1x128xf32> to vector<16x128xf32>
    %36 = arith.addf %32, %35 : vector<16x128xf32>
    %c0_27 = arith.constant 0 : index
    %c0_28 = arith.constant 0 : index
    %c0_29 = arith.constant 0 : index
    %37 = vector.load %arg12[%c0_27, %c0_28, %c0_29] : memref<1x1x128xf32, #tpu.memory_space<vmem>>, vector<1x1x128xf32>
    %38 = vector.shape_cast %37 : vector<1x1x128xf32> to vector<1x128xf32>
    %39 = vector.broadcast %38 : vector<1x128xf32> to vector<16x128xf32>
    %40 = arith.mulf %36, %39 : vector<16x128xf32>
    %c0_30 = arith.constant 0 : index
    %c0_31 = arith.constant 0 : index
    %c0_32 = arith.constant 0 : index
    %41 = vector.load %arg13[%c0_30, %c0_31, %c0_32] : memref<1x1x128xf32, #tpu.memory_space<vmem>>, vector<1x1x128xf32>
    %42 = vector.shape_cast %41 : vector<1x1x128xf32> to vector<1x128xf32>
    %43 = vector.broadcast %42 : vector<1x128xf32> to vector<16x128xf32>
    %44 = arith.addf %40, %43 : vector<16x128xf32>
    %cst_33 = arith.constant 0.000000e+00 : f32
    %45 = vector.broadcast %cst_33 : f32 to vector<16x128xf32>
    %46 = arith.maximumf %44, %45 : vector<16x128xf32>
    %47 = arith.truncf %46 : vector<16x128xf32> to vector<16x128xbf16>
    %c0_34 = arith.constant 0 : index
    %c0_35 = arith.constant 0 : index
    %c0_36 = arith.constant 0 : index
    %48 = vector.load %arg14[%c0_34, %c0_35, %c0_36] : memref<1x128x128xbf16, #tpu.memory_space<vmem>>, vector<1x128x128xbf16>
    %49 = vector.shape_cast %48 : vector<1x128x128xbf16> to vector<128x128xbf16>
    %cst_37 = arith.constant dense<0.000000e+00> : vector<16x128xf32>
    %50 = tpu.matmul %47, %49, %cst_37 {dimension_numbers = #tpu.dot_dimension_numbers<[1], [0], [0], [1], [0, 0, 1, 1], [], []>} : vector<16x128xbf16>, vector<128x128xbf16>, vector<16x128xf32> -> vector<16x128xf32>
    %c0_38 = arith.constant 0 : index
    %c0_39 = arith.constant 0 : index
    %c0_40 = arith.constant 0 : index
    %51 = vector.load %arg15[%c0_38, %c0_39, %c0_40] : memref<1x1x128xf32, #tpu.memory_space<vmem>>, vector<1x1x128xf32>
    %52 = vector.shape_cast %51 : vector<1x1x128xf32> to vector<1x128xf32>
    %53 = vector.broadcast %52 : vector<1x128xf32> to vector<16x128xf32>
    %54 = arith.addf %50, %53 : vector<16x128xf32>
    %c0_41 = arith.constant 0 : index
    %c0_42 = arith.constant 0 : index
    %c0_43 = arith.constant 0 : index
    %55 = vector.load %arg16[%c0_41, %c0_42, %c0_43] : memref<1x1x128xf32, #tpu.memory_space<vmem>>, vector<1x1x128xf32>
    %56 = vector.shape_cast %55 : vector<1x1x128xf32> to vector<1x128xf32>
    %57 = vector.broadcast %56 : vector<1x128xf32> to vector<16x128xf32>
    %58 = arith.mulf %54, %57 : vector<16x128xf32>
    %c0_44 = arith.constant 0 : index
    %c0_45 = arith.constant 0 : index
    %c0_46 = arith.constant 0 : index
    %59 = vector.load %arg17[%c0_44, %c0_45, %c0_46] : memref<1x1x128xf32, #tpu.memory_space<vmem>>, vector<1x1x128xf32>
    %60 = vector.shape_cast %59 : vector<1x1x128xf32> to vector<1x128xf32>
    %61 = vector.broadcast %60 : vector<1x128xf32> to vector<16x128xf32>
    %62 = arith.addf %58, %61 : vector<16x128xf32>
    %cst_47 = arith.constant 0.000000e+00 : f32
    %63 = vector.broadcast %cst_47 : f32 to vector<16x128xf32>
    %64 = arith.maximumf %62, %63 : vector<16x128xf32>
    %65 = arith.select %0, %62, %64 : vector<16x128xf32>
    %66 = arith.addf %65, %9 : vector<16x128xf32>
    %c0_48 = arith.constant 0 : index
    %c0_49 = arith.constant 0 : index
    %67 = vector.load %arg26[%c0_48, %c0_49] : memref<16x128xf32, #tpu.memory_space<vmem>>, vector<16x128xf32>
    tpu.vector_store %arg26[%c0_48, %c0_49], %66 {strides = array<i32>} : memref<16x128xf32, #tpu.memory_space<vmem>>, vector<16x128xf32>,
    %c2_i32_50 = arith.constant 2 : i32
    %68 = arith.cmpi slt, %arg0, %c2_i32_50 : i32
    %69 = arith.extui %68 : i1 to i32
    %c0_i32_51 = arith.constant 0 : i32
    %70 = arith.cmpi ne, %69, %c0_i32_51 : i32
    scf.if %70 {
      %cst_53 = arith.constant dense<0.000000e+00> : vector<2x128xf32>
      %73 = tpu.matmul %6, %10, %cst_53 {dimension_numbers = #tpu.dot_dimension_numbers<[0], [0], [1], [1], [0, 1, 1, 1], [], []>} : vector<16x2xbf16>, vector<16x128xbf16>, vector<2x128xf32> -> vector<2x128xf32>
      %74 = arith.addf %73, %5 : vector<2x128xf32>
      %75 = arith.truncf %74 : vector<2x128xf32> to vector<2x128xbf16>
      %c0_54 = arith.constant 0 : index
      %c0_55 = arith.constant 0 : index
      %c0_56 = arith.constant 0 : index
      %76 = vector.load %arg18[%c0_54, %c0_55, %c0_56] : memref<1x128x128xbf16, #tpu.memory_space<vmem>>, vector<1x128x128xbf16>
      %77 = vector.shape_cast %76 : vector<1x128x128xbf16> to vector<128x128xbf16>
      %cst_57 = arith.constant dense<0.000000e+00> : vector<2x128xf32>
      %78 = tpu.matmul %75, %77, %cst_57 {dimension_numbers = #tpu.dot_dimension_numbers<[1], [0], [0], [1], [0, 0, 1, 1], [], []>} : vector<2x128xbf16>, vector<128x128xbf16>, vector<2x128xf32> -> vector<2x128xf32>
      %c0_58 = arith.constant 0 : index
      %c0_59 = arith.constant 0 : index
      %c0_60 = arith.constant 0 : index
      %79 = vector.load %arg19[%c0_58, %c0_59, %c0_60] : memref<1x1x128xf32, #tpu.memory_space<vmem>>, vector<1x1x128xf32>
      %80 = vector.shape_cast %79 : vector<1x1x128xf32> to vector<1x128xf32>
      %81 = vector.broadcast %80 : vector<1x128xf32> to vector<2x128xf32>
      %82 = arith.addf %78, %81 : vector<2x128xf32>
      %c0_61 = arith.constant 0 : index
      %c0_62 = arith.constant 0 : index
      %c0_63 = arith.constant 0 : index
      %83 = vector.load %arg20[%c0_61, %c0_62, %c0_63] : memref<1x1x128xf32, #tpu.memory_space<vmem>>, vector<1x1x128xf32>
      %84 = vector.shape_cast %83 : vector<1x1x128xf32> to vector<1x128xf32>
      %85 = vector.broadcast %84 : vector<1x128xf32> to vector<2x128xf32>
      %86 = arith.mulf %82, %85 : vector<2x128xf32>
      %c0_64 = arith.constant 0 : index
      %c0_65 = arith.constant 0 : index
      %c0_66 = arith.constant 0 : index
      %87 = vector.load %arg21[%c0_64, %c0_65, %c0_66] : memref<1x1x128xf32, #tpu.memory_space<vmem>>, vector<1x1x128xf32>
      %88 = vector.shape_cast %87 : vector<1x1x128xf32> to vector<1x128xf32>
      %89 = vector.broadcast %88 : vector<1x128xf32> to vector<2x128xf32>
      %90 = arith.addf %86, %89 : vector<2x128xf32>
      %cst_67 = arith.constant 0.000000e+00 : f32
      %91 = vector.broadcast %cst_67 : f32 to vector<2x128xf32>
      %92 = arith.maximumf %90, %91 : vector<2x128xf32>
      %93 = arith.truncf %92 : vector<2x128xf32> to vector<2x128xbf16>
      %c0_68 = arith.constant 0 : index
      %c0_69 = arith.constant 0 : index
      %c0_70 = arith.constant 0 : index
      %94 = vector.load %arg22[%c0_68, %c0_69, %c0_70] : memref<1x128x128xbf16, #tpu.memory_space<vmem>>, vector<1x128x128xbf16>
      %95 = vector.shape_cast %94 : vector<1x128x128xbf16> to vector<128x128xbf16>
      %cst_71 = arith.constant dense<0.000000e+00> : vector<2x128xf32>
      %96 = tpu.matmul %93, %95, %cst_71 {dimension_numbers = #tpu.dot_dimension_numbers<[1], [0], [0], [1], [0, 0, 1, 1], [], []>} : vector<2x128xbf16>, vector<128x128xbf16>, vector<2x128xf32> -> vector<2x128xf32>
      %c0_72 = arith.constant 0 : index
      %c0_73 = arith.constant 0 : index
      %c0_74 = arith.constant 0 : index
      %97 = vector.load %arg23[%c0_72, %c0_73, %c0_74] : memref<1x1x128xf32, #tpu.memory_space<vmem>>, vector<1x1x128xf32>
      %98 = vector.shape_cast %97 : vector<1x1x128xf32> to vector<1x128xf32>
      %99 = vector.broadcast %98 : vector<1x128xf32> to vector<2x128xf32>
      %100 = arith.addf %96, %99 : vector<2x128xf32>
      %c0_75 = arith.constant 0 : index
      %c0_76 = arith.constant 0 : index
      %c0_77 = arith.constant 0 : index
      %101 = vector.load %arg24[%c0_75, %c0_76, %c0_77] : memref<1x1x128xf32, #tpu.memory_space<vmem>>, vector<1x1x128xf32>
      %102 = vector.shape_cast %101 : vector<1x1x128xf32> to vector<1x128xf32>
      %103 = vector.broadcast %102 : vector<1x128xf32> to vector<2x128xf32>
      %104 = arith.mulf %100, %103 : vector<2x128xf32>
      %c0_78 = arith.constant 0 : index
      %c0_79 = arith.constant 0 : index
      %c0_80 = arith.constant 0 : index
      %105 = vector.load %arg25[%c0_78, %c0_79, %c0_80] : memref<1x1x128xf32, #tpu.memory_space<vmem>>, vector<1x1x128xf32>
      %106 = vector.shape_cast %105 : vector<1x1x128xf32> to vector<1x128xf32>
      %107 = vector.broadcast %106 : vector<1x128xf32> to vector<2x128xf32>
      %108 = arith.addf %104, %107 : vector<2x128xf32>
      %cst_81 = arith.constant 0.000000e+00 : f32
      %109 = vector.broadcast %cst_81 : f32 to vector<2x128xf32>
      %110 = arith.maximumf %108, %109 : vector<2x128xf32>
      %111 = arith.addf %5, %110 : vector<2x128xf32>
      %c0_82 = arith.constant 0 : index
      %c0_83 = arith.constant 0 : index
      %112 = vector.load %arg28[%c0_82, %c0_83] : memref<2x128xf32, #tpu.memory_space<vmem>>, vector<2x128xf32>
      tpu.vector_store %arg28[%c0_82, %c0_83], %111 {strides = array<i32>} : memref<2x128xf32, #tpu.memory_space<vmem>>, vector<2x128xf32>,
    } else {
    }
    %71 = arith.extui %0 : i1 to i32
    %c0_i32_52 = arith.constant 0 : i32
    %72 = arith.cmpi ne, %71, %c0_i32_52 : i32
    scf.if %72 {
      %c0_53 = arith.constant 0 : index
      %c0_54 = arith.constant 0 : index
      %73 = vector.load %arg4[%c0_53, %c0_54] : memref<16x1xf32, #tpu.memory_space<vmem>>, vector<16x1xf32>
      %cst_55 = arith.constant 0.000000e+00 : f32
      %74 = vector.broadcast %cst_55 : f32 to vector<16x1xf32>
      %75 = arith.cmpf oeq, %73, %74 : vector<16x1xf32>
      %cst_56 = arith.constant -3.40282347E+38 : f32
      %76 = vector.shape_cast %75 : vector<16x1xi1> to vector<16x1xi1>
      %77 = vector.broadcast %76 : vector<16x1xi1> to vector<16x128xi1>
      %78 = vector.broadcast %cst_56 : f32 to vector<16x128xf32>
      %79 = arith.select %77, %66, %78 : vector<16x128xi1>, vector<16x128xf32>
      %cst_57 = arith.constant dense<0xFF800000> : vector<128xf32>
      %80 = vector.multi_reduction <maximumf>, %79, %cst_57 [0] : vector<16x128xf32> to vector<128xf32>
      %81 = vector.shape_cast %80 : vector<128xf32> to vector<1x128xf32>
      %c0_58 = arith.constant 0 : index
      %c0_59 = arith.constant 0 : index
      %82 = vector.load %arg27[%c0_58, %c0_59] : memref<2x128xf32, #tpu.memory_space<vmem>>, vector<1x128xf32>
      tpu.vector_store %arg27[%c0_58, %c0_59], %81 {strides = array<i32>} : memref<2x128xf32, #tpu.memory_space<vmem>>, vector<1x128xf32>,
      %cst_60 = arith.constant 1.000000e+00 : f32
      %83 = vector.broadcast %cst_60 : f32 to vector<16x1xf32>
      %84 = arith.cmpf oeq, %73, %83 : vector<16x1xf32>
      %cst_61 = arith.constant -3.40282347E+38 : f32
      %85 = vector.shape_cast %84 : vector<16x1xi1> to vector<16x1xi1>
      %86 = vector.broadcast %85 : vector<16x1xi1> to vector<16x128xi1>
      %87 = vector.broadcast %cst_61 : f32 to vector<16x128xf32>
      %88 = arith.select %86, %66, %87 : vector<16x128xi1>, vector<16x128xf32>
      %cst_62 = arith.constant dense<0xFF800000> : vector<128xf32>
      %89 = vector.multi_reduction <maximumf>, %88, %cst_62 [0] : vector<16x128xf32> to vector<128xf32>
      %90 = vector.shape_cast %89 : vector<128xf32> to vector<1x128xf32>
      %c1 = arith.constant 1 : index
      %c0_63 = arith.constant 0 : index
      %91 = vector.load %arg27[%c1, %c0_63] : memref<2x128xf32, #tpu.memory_space<vmem>>, vector<1x128xf32>
      tpu.vector_store %arg27[%c1, %c0_63], %90 {strides = array<i32>} : memref<2x128xf32, #tpu.memory_space<vmem>>, vector<1x128xf32>,
    } else {
    }
    return
  }
  func.func @transform_0(%arg0: i32) -> i32 {
    %c0_i32 = arith.constant 0 : i32
    %c0_i32_0 = arith.constant 0 : i32
    return %c0_i32 : i32
  }
  func.func @transform_1(%arg0: i32) -> (i32, i32) {
    %c0_i32 = arith.constant 0 : i32
    %c0_i32_0 = arith.constant 0 : i32
    %c0_i32_1 = arith.constant 0 : i32
    return %c0_i32, %c0_i32_0 : i32, i32
  }
  func.func @transform_2(%arg0: i32) -> (i32, i32) {
    %c0_i32 = arith.constant 0 : i32
    %c0_i32_0 = arith.constant 0 : i32
    %c0_i32_1 = arith.constant 0 : i32
    return %c0_i32, %c0_i32_0 : i32, i32
  }
  func.func @transform_3(%arg0: i32) -> (i32, i32) {
    %c0_i32 = arith.constant 0 : i32
    %c0_i32_0 = arith.constant 0 : i32
    %c0_i32_1 = arith.constant 0 : i32
    return %c0_i32, %c0_i32_0 : i32, i32
  }
  func.func @transform_4(%arg0: i32) -> (i32, i32) {
    %c0_i32 = arith.constant 0 : i32
    %c0_i32_0 = arith.constant 0 : i32
    %c0_i32_1 = arith.constant 0 : i32
    return %c0_i32, %c0_i32_0 : i32, i32
  }
  func.func @transform_5(%arg0: i32) -> (i32, i32) {
    %c0_i32 = arith.constant 0 : i32
    %c0_i32_0 = arith.constant 0 : i32
    %c0_i32_1 = arith.constant 0 : i32
    return %c0_i32, %c0_i32_0 : i32, i32
  }
  func.func @transform_6(%arg0: i32) -> (i32, i32) {
    %c0_i32 = arith.constant 0 : i32
    %c0_i32_0 = arith.constant 0 : i32
    %c0_i32_1 = arith.constant 0 : i32
    return %c0_i32, %c0_i32_0 : i32, i32
  }
  func.func @transform_7(%arg0: i32) -> (i32, i32) {
    %c0_i32 = arith.constant 0 : i32
    %c0_i32_0 = arith.constant 0 : i32
    %c0_i32_1 = arith.constant 0 : i32
    return %c0_i32, %c0_i32_0 : i32, i32
  }
  func.func @transform_8(%arg0: i32) -> (i32, i32, i32) {
    %c0_i32 = arith.constant 0 : i32
    %c0_i32_0 = arith.constant 0 : i32
    %c0_i32_1 = arith.constant 0 : i32
    return %arg0, %c0_i32, %c0_i32_0 : i32, i32, i32
  }
  func.func @transform_9(%arg0: i32) -> (i32, i32, i32) {
    %c0_i32 = arith.constant 0 : i32
    %c0_i32_0 = arith.constant 0 : i32
    %c0_i32_1 = arith.constant 0 : i32
    return %arg0, %c0_i32, %c0_i32_0 : i32, i32, i32
  }
  func.func @transform_10(%arg0: i32) -> (i32, i32, i32) {
    %c0_i32 = arith.constant 0 : i32
    %c0_i32_0 = arith.constant 0 : i32
    %c0_i32_1 = arith.constant 0 : i32
    return %arg0, %c0_i32, %c0_i32_0 : i32, i32, i32
  }
  func.func @transform_11(%arg0: i32) -> (i32, i32, i32) {
    %c0_i32 = arith.constant 0 : i32
    %c0_i32_0 = arith.constant 0 : i32
    %c0_i32_1 = arith.constant 0 : i32
    return %arg0, %c0_i32, %c0_i32_0 : i32, i32, i32
  }
  func.func @transform_12(%arg0: i32) -> (i32, i32, i32) {
    %c0_i32 = arith.constant 0 : i32
    %c0_i32_0 = arith.constant 0 : i32
    %c0_i32_1 = arith.constant 0 : i32
    return %arg0, %c0_i32, %c0_i32_0 : i32, i32, i32
  }
  func.func @transform_13(%arg0: i32) -> (i32, i32, i32) {
    %c0_i32 = arith.constant 0 : i32
    %c0_i32_0 = arith.constant 0 : i32
    %c0_i32_1 = arith.constant 0 : i32
    return %arg0, %c0_i32, %c0_i32_0 : i32, i32, i32
  }
  func.func @transform_14(%arg0: i32) -> (i32, i32, i32) {
    %c0_i32 = arith.constant 0 : i32
    %c0_i32_0 = arith.constant 0 : i32
    %c0_i32_1 = arith.constant 0 : i32
    return %arg0, %c0_i32, %c0_i32_0 : i32, i32, i32
  }
  func.func @transform_15(%arg0: i32) -> (i32, i32, i32) {
    %c0_i32 = arith.constant 0 : i32
    %c0_i32_0 = arith.constant 0 : i32
    %c0_i32_1 = arith.constant 0 : i32
    return %arg0, %c0_i32, %c0_i32_0 : i32, i32, i32
  }
  func.func @transform_16(%arg0: i32) -> (i32, i32, i32) {
    %c0_i32 = arith.constant 0 : i32
    %c0_i32_0 = arith.constant 0 : i32
    %c0_i32_1 = arith.constant 0 : i32
    return %arg0, %c0_i32, %c0_i32_0 : i32, i32, i32
  }
  func.func @transform_17(%arg0: i32) -> (i32, i32, i32) {
    %c1_i32 = arith.constant 1 : i32
    %0 = arith.minsi %arg0, %c1_i32 : i32
    %c0_i32 = arith.constant 0 : i32
    %c0_i32_0 = arith.constant 0 : i32
    %c0_i32_1 = arith.constant 0 : i32
    return %0, %c0_i32, %c0_i32_0 : i32, i32, i32
  }
  func.func @transform_18(%arg0: i32) -> (i32, i32, i32) {
    %c1_i32 = arith.constant 1 : i32
    %0 = arith.minsi %arg0, %c1_i32 : i32
    %c0_i32 = arith.constant 0 : i32
    %c0_i32_0 = arith.constant 0 : i32
    %c0_i32_1 = arith.constant 0 : i32
    return %0, %c0_i32, %c0_i32_0 : i32, i32, i32
  }
  func.func @transform_19(%arg0: i32) -> (i32, i32, i32) {
    %c1_i32 = arith.constant 1 : i32
    %0 = arith.minsi %arg0, %c1_i32 : i32
    %c0_i32 = arith.constant 0 : i32
    %c0_i32_0 = arith.constant 0 : i32
    %c0_i32_1 = arith.constant 0 : i32
    return %0, %c0_i32, %c0_i32_0 : i32, i32, i32
  }
  func.func @transform_20(%arg0: i32) -> (i32, i32, i32) {
    %c1_i32 = arith.constant 1 : i32
    %0 = arith.minsi %arg0, %c1_i32 : i32
    %c0_i32 = arith.constant 0 : i32
    %c0_i32_0 = arith.constant 0 : i32
    %c0_i32_1 = arith.constant 0 : i32
    return %0, %c0_i32, %c0_i32_0 : i32, i32, i32
  }
  func.func @transform_21(%arg0: i32) -> (i32, i32, i32) {
    %c1_i32 = arith.constant 1 : i32
    %0 = arith.minsi %arg0, %c1_i32 : i32
    %c0_i32 = arith.constant 0 : i32
    %c0_i32_0 = arith.constant 0 : i32
    %c0_i32_1 = arith.constant 0 : i32
    return %0, %c0_i32, %c0_i32_0 : i32, i32, i32
  }
  func.func @transform_22(%arg0: i32) -> (i32, i32, i32) {
    %c1_i32 = arith.constant 1 : i32
    %0 = arith.minsi %arg0, %c1_i32 : i32
    %c0_i32 = arith.constant 0 : i32
    %c0_i32_0 = arith.constant 0 : i32
    %c0_i32_1 = arith.constant 0 : i32
    return %0, %c0_i32, %c0_i32_0 : i32, i32, i32
  }
  func.func @transform_23(%arg0: i32) -> (i32, i32, i32) {
    %c1_i32 = arith.constant 1 : i32
    %0 = arith.minsi %arg0, %c1_i32 : i32
    %c0_i32 = arith.constant 0 : i32
    %c0_i32_0 = arith.constant 0 : i32
    %c0_i32_1 = arith.constant 0 : i32
    return %0, %c0_i32, %c0_i32_0 : i32, i32, i32
  }
  func.func @transform_24(%arg0: i32) -> (i32, i32, i32) {
    %c1_i32 = arith.constant 1 : i32
    %0 = arith.minsi %arg0, %c1_i32 : i32
    %c0_i32 = arith.constant 0 : i32
    %c0_i32_0 = arith.constant 0 : i32
    %c0_i32_1 = arith.constant 0 : i32
    return %0, %c0_i32, %c0_i32_0 : i32, i32, i32
  }
  func.func @transform_25(%arg0: i32) -> (i32, i32) {
    %c0_i32 = arith.constant 0 : i32
    %c0_i32_0 = arith.constant 0 : i32
    %c0_i32_1 = arith.constant 0 : i32
    return %c0_i32, %c0_i32_0 : i32, i32
  }
  func.func @transform_26(%arg0: i32) -> (i32, i32) {
    %c0_i32 = arith.constant 0 : i32
    %c0_i32_0 = arith.constant 0 : i32
    %c0_i32_1 = arith.constant 0 : i32
    return %c0_i32, %c0_i32_0 : i32, i32
  }
}

</mosaic_0001>

<llo_original>
// kernel: gnn_forward.1
$region0: #{gnn_forward.1}
  #allocation0 [shape = 'u32[]', space=smem, size = 0x4, offset = 0x4, fixed_abs, tag = 'smem constant byte address 0x4 - core index']
  #allocation1 [shape = 'u32[144,128]{1,0:T(1,128)}', space=vmem, size = 0x12000, scoped, tag = 'internal scratch']
  #allocation2 [shape = 'f32[2,128]{1,0:T(2,128)}', space=vmem, size = 0x400, scoped, tag = 'scratch operand']
  %s0 = inlined_call_operand.vmem [shape: f32[3], index: 0, kind: input, shape index: {}]
  %s1 = inlined_call_operand.vmem [shape: f32[16,128], index: 1, kind: input, shape index: {}]
  %s2 = inlined_call_operand.vmem [shape: f32[2,128], index: 2, kind: input, shape index: {}]
  %s3 = inlined_call_operand.vmem [shape: f32[16,1], index: 3, kind: input, shape index: {}]
  %s4 = inlined_call_operand.vmem [shape: bf16[32,16], index: 4, kind: input, shape index: {}]
  %s5 = inlined_call_operand.vmem [shape: bf16[16,32], index: 5, kind: input, shape index: {}]
  %s6 = inlined_call_operand.vmem [shape: bf16[16,2], index: 6, kind: input, shape index: {}]
  %s7 = inlined_call_operand.vmem [shape: bf16[32,24], index: 7, kind: input, shape index: {}]
  %s8 = inlined_call_operand.vmem [shape: bf16[3,24,128], index: 8, kind: input, shape index: {}]
  %s9 = inlined_call_operand.vmem [shape: bf16[3,128,128], index: 9, kind: input, shape index: {}]
  %s10 = inlined_call_operand.vmem [shape: f32[3,1,128], index: 10, kind: input, shape index: {}]
  %s11 = inlined_call_operand.vmem [shape: f32[3,1,128], index: 11, kind: input, shape index: {}]
  %s12 = inlined_call_operand.vmem [shape: f32[3,1,128], index: 12, kind: input, shape index: {}]
  %s13 = inlined_call_operand.vmem [shape: bf16[3,128,128], index: 13, kind: input, shape index: {}]
  %s14 = inlined_call_operand.vmem [shape: f32[3,1,128], index: 14, kind: input, shape index: {}]
  %s15 = inlined_call_operand.vmem [shape: f32[3,1,128], index: 15, kind: input, shape index: {}]
  %s16 = inlined_call_operand.vmem [shape: f32[3,1,128], index: 16, kind: input, shape index: {}]
  %s17 = inlined_call_operand.vmem [shape: bf16[2,128,128], index: 17, kind: input, shape index: {}]
  %s18 = inlined_call_operand.vmem [shape: f32[2,1,128], index: 18, kind: input, shape index: {}]
  %s19 = inlined_call_operand.vmem [shape: f32[2,1,128], index: 19, kind: input, shape index: {}]
  %s20 = inlined_call_operand.vmem [shape: f32[2,1,128], index: 20, kind: input, shape index: {}]
  %s21 = inlined_call_operand.vmem [shape: bf16[2,128,128], index: 21, kind: input, shape index: {}]
  %s22 = inlined_call_operand.vmem [shape: f32[2,1,128], index: 22, kind: input, shape index: {}]
  %s23 = inlined_call_operand.vmem [shape: f32[2,1,128], index: 23, kind: input, shape index: {}]
  %s24 = inlined_call_operand.vmem [shape: f32[2,1,128], index: 24, kind: input, shape index: {}]
  %s25 = inlined_call_operand.hbm [shape: f32[16,128], index: 25, kind: output, shape index: {0}]
  %s26 = inlined_call_operand.hbm [shape: f32[2,128], index: 26, kind: output, shape index: {1}]
  %27 = xla_tuple %s25, %s26
  %s28 = sld [smem:[#allocation0]]
  $region157: #{gnn_forward.1} parent=0
    _
  %s30 = ssub.s32 1, %s28
  %s31 = scalar_select 0, %s30, %s28
  $region1: #{gnn_forward.1} parent=0
    #allocation3 [shape = 'u8[512]{0}', space=smem, size = 0x200, scoped, tag = 'input window, operand 0, single buffered']
    #allocation4 [shape = 's32[2]{0}', space=sflag, size = 0x8, scoped, tag = 'scoped memory for gnn_forward.1']
    #allocation5 [shape = 's32[2]{0}', space=sflag, size = 0x8, scoped, tag = 'scoped memory for gnn_forward.1']
    #allocation6 [shape = 'u8[8192]{0}', space=vmem, size = 0x2000, scoped, tag = 'output window, operand 0, single buffered']
    #allocation7 [shape = 'u8[1024]{0}', space=vmem, size = 0x400, scoped, tag = 'output window, operand 1, single buffered']
    #allocation8 [shape = 's32[1]{0}', space=sflag, size = 0x4, scoped, tag = 'scoped memory for gnn_forward.1']
    %32 = vsyncpa [#allocation5], 0
    %33 = vsyncpa [#allocation4], 0
    %34 = vsyncpa [#allocation8], 0
    loop: start=0, step=1, limit=5
    $region2: #{gnn_forward.1} parent=1 // loop_pre_header
      _
    $region3: #{gnn_forward.1} parent=1 // loop_header
      %s36 = sphi 0, %s40
      %p37 = scmp.ge.s32.totalorder %s36, 5
      %s44 = sphi 0, %s44
      %s46 = sphi 0, %s44
      %s47 = sphi 0, %s46
      %s61 = sphi 0, %s47
      %s65 = sphi 0, %s65
      %s67 = sphi 0, %s65
      %s68 = sphi 0, %s67
      %s82 = sphi 0, %s68
      %s86 = sphi 0, %s86
      %s88 = sphi 0, %s86
      %s89 = sphi 0, %s88
      %s103 = sphi 0, %s89
      %s107 = sphi 0, %s107
      %s109 = sphi 0, %s107
      %s110 = sphi 0, %s109
      %s124 = sphi 0, %s110
      %s128 = sphi 0, %s128
      %s130 = sphi 0, %s128
      %s131 = sphi 0, %s130
      %s145 = sphi 0, %s131
      %s149 = sphi 0, %s149
      %s151 = sphi 0, %s149
      %s152 = sphi 0, %s151
      %s166 = sphi 0, %s152
      %s170 = sphi 0, %s170
      %s172 = sphi 0, %s170
      %s173 = sphi 0, %s172
      %s187 = sphi 0, %s173
      %s191 = sphi 0, %s191
      %s193 = sphi 0, %s191
      %s194 = sphi 0, %s193
      %s208 = sphi 0, %s194
      %s214 = sphi 0, %s216
      %s217 = sphi 0, %s214
      %s218 = sphi 0, %s217
      %s234 = sphi 0, %s218
      %s240 = sphi 0, %s242
      %s243 = sphi 0, %s240
      %s244 = sphi 0, %s243
      %s260 = sphi 0, %s244
      %s266 = sphi 0, %s268
      %s269 = sphi 0, %s266
      %s270 = sphi 0, %s269
      %s286 = sphi 0, %s270
      %s292 = sphi 0, %s294
      %s295 = sphi 0, %s292
      %s296 = sphi 0, %s295
      %s312 = sphi 0, %s296
      %s318 = sphi 0, %s320
      %s321 = sphi 0, %s318
      %s322 = sphi 0, %s321
      %s338 = sphi 0, %s322
      %s344 = sphi 0, %s346
      %s347 = sphi 0, %s344
      %s348 = sphi 0, %s347
      %s364 = sphi 0, %s348
      %s370 = sphi 0, %s372
      %s373 = sphi 0, %s370
      %s374 = sphi 0, %s373
      %s390 = sphi 0, %s374
      %s396 = sphi 0, %s398
      %s399 = sphi 0, %s396
      %s400 = sphi 0, %s399
      %s416 = sphi 0, %s400
      %s422 = sphi 0, %s424
      %s425 = sphi 0, %s422
      %s426 = sphi 0, %s425
      %s442 = sphi 0, %s426
      %s452 = sphi 0, %s454
      %s455 = sphi 0, %s452
      %s456 = sphi 0, %s455
      %s472 = sphi 0, %s456
      %s482 = sphi 0, %s484
      %s485 = sphi 0, %s482
      %s486 = sphi 0, %s485
      %s502 = sphi 0, %s486
      %s512 = sphi 0, %s514
      %s515 = sphi 0, %s512
      %s516 = sphi 0, %s515
      %s532 = sphi 0, %s516
      %s542 = sphi 0, %s544
      %s545 = sphi 0, %s542
      %s546 = sphi 0, %s545
      %s562 = sphi 0, %s546
      %s572 = sphi 0, %s574
      %s575 = sphi 0, %s572
      %s576 = sphi 0, %s575
      %s592 = sphi 0, %s576
      %s602 = sphi 0, %s604
      %s605 = sphi 0, %s602
      %s606 = sphi 0, %s605
      %s622 = sphi 0, %s606
      %s632 = sphi 0, %s634
      %s635 = sphi 0, %s632
      %s636 = sphi 0, %s635
      %s652 = sphi 0, %s636
      %s662 = sphi 0, %s664
      %s665 = sphi 0, %s662
      %s666 = sphi 0, %s665
      %s682 = sphi 0, %s666
      %s686 = sphi 0, %s686
      %s688 = sphi 0, %s686
      %s689 = sphi 0, %s688
      %s703 = sphi 0, %s689
      %s707 = sphi 0, %s707
      %s709 = sphi 0, %s707
      %s710 = sphi 0, %s709
      %s724 = sphi 0, %s710
    $region4: #{gnn_forward.1} parent=1 // loop_header_branch
      %39 = sbr.rel (%p37) target = $region8
    $region5: #{gnn_forward.1} parent=1 // loop_body
      %s41 = ssub.s32 %s36, 1
      %s42 = ssub.s32 %s36, 2
      %s43 = sadd.s32 %s36, 1
      %s45 = sadd.s32 %s44, 1
      %p48 = scmp.eq.s32.totalorder %s36, 2
      %p49 = scmp.ne.s32.totalorder %s44, %s46
      %p50 = scmp.eq.s32.totalorder %s36, 0
      %p51 = por %p49, %p50
      %p52 = scmp.ne.s32.totalorder %s44, %s46
      %p53 = scmp.eq.s32.totalorder %s41, 2
      %p54 = por %p52, %p53
      %p55 = scmp.ne.s32.totalorder %s46, %s47
      %p56 = scmp.eq.s32.totalorder %s41, 0
      %p57 = por %p55, %p56
      %p58 = scmp.ne.s32.totalorder %s46, %s47
      %p59 = scmp.eq.s32.totalorder %s42, 2
      %p60 = por %p58, %p59
      %p62 = scmp.ne.s32.totalorder %s47, %s61
      %p63 = scmp.eq.s32.totalorder %s42, 0
      %p64 = por %p62, %p63
      %s66 = sadd.s32 %s65, 1
      %p69 = scmp.eq.s32.totalorder %s36, 2
      %p70 = scmp.ne.s32.totalorder %s65, %s67
      %p71 = scmp.eq.s32.totalorder %s36, 0
      %p72 = por %p70, %p71
      %p73 = scmp.ne.s32.totalorder %s65, %s67
      %p74 = scmp.eq.s32.totalorder %s41, 2
      %p75 = por %p73, %p74
      %p76 = scmp.ne.s32.totalorder %s67, %s68
      %p77 = scmp.eq.s32.totalorder %s41, 0
      %p78 = por %p76, %p77
      %p79 = scmp.ne.s32.totalorder %s67, %s68
      %p80 = scmp.eq.s32.totalorder %s42, 2
      %p81 = por %p79, %p80
      %p83 = scmp.ne.s32.totalorder %s68, %s82
      %p84 = scmp.eq.s32.totalorder %s42, 0
      %p85 = por %p83, %p84
      %s87 = sadd.s32 %s86, 1
      %p90 = scmp.eq.s32.totalorder %s36, 2
      %p91 = scmp.ne.s32.totalorder %s86, %s88
      %p92 = scmp.eq.s32.totalorder %s36, 0
      %p93 = por %p91, %p92
      %p94 = scmp.ne.s32.totalorder %s86, %s88
      %p95 = scmp.eq.s32.totalorder %s41, 2
      %p96 = por %p94, %p95
      %p97 = scmp.ne.s32.totalorder %s88, %s89
      %p98 = scmp.eq.s32.totalorder %s41, 0
      %p99 = por %p97, %p98
      %p100 = scmp.ne.s32.totalorder %s88, %s89
      %p101 = scmp.eq.s32.totalorder %s42, 2
      %p102 = por %p100, %p101
      %p104 = scmp.ne.s32.totalorder %s89, %s103
      %p105 = scmp.eq.s32.totalorder %s42, 0
      %p106 = por %p104, %p105
      %s108 = sadd.s32 %s107, 1
      %p111 = scmp.eq.s32.totalorder %s36, 2
      %p112 = scmp.ne.s32.totalorder %s107, %s109
      %p113 = scmp.eq.s32.totalorder %s36, 0
      %p114 = por %p112, %p113
      %p115 = scmp.ne.s32.totalorder %s107, %s109
      %p116 = scmp.eq.s32.totalorder %s41, 2
      %p117 = por %p115, %p116
      %p118 = scmp.ne.s32.totalorder %s109, %s110
      %p119 = scmp.eq.s32.totalorder %s41, 0
      %p120 = por %p118, %p119
      %p121 = scmp.ne.s32.totalorder %s109, %s110
      %p122 = scmp.eq.s32.totalorder %s42, 2
      %p123 = por %p121, %p122
      %p125 = scmp.ne.s32.totalorder %s110, %s124
      %p126 = scmp.eq.s32.totalorder %s42, 0
      %p127 = por %p125, %p126
      %s129 = sadd.s32 %s128, 1
      %p132 = scmp.eq.s32.totalorder %s36, 2
      %p133 = scmp.ne.s32.totalorder %s128, %s130
      %p134 = scmp.eq.s32.totalorder %s36, 0
      %p135 = por %p133, %p134
      %p136 = scmp.ne.s32.totalorder %s128, %s130
      %p137 = scmp.eq.s32.totalorder %s41, 2
      %p138 = por %p136, %p137
      %p139 = scmp.ne.s32.totalorder %s130, %s131
      %p140 = scmp.eq.s32.totalorder %s41, 0
      %p141 = por %p139, %p140
      %p142 = scmp.ne.s32.totalorder %s130, %s131
      %p143 = scmp.eq.s32.totalorder %s42, 2
      %p144 = por %p142, %p143
      %p146 = scmp.ne.s32.totalorder %s131, %s145
      %p147 = scmp.eq.s32.totalorder %s42, 0
      %p148 = por %p146, %p147
      %s150 = sadd.s32 %s149, 1
      %p153 = scmp.eq.s32.totalorder %s36, 2
      %p154 = scmp.ne.s32.totalorder %s149, %s151
      %p155 = scmp.eq.s32.totalorder %s36, 0
      %p156 = por %p154, %p155
      %p157 = scmp.ne.s32.totalorder %s149, %s151
      %p158 = scmp.eq.s32.totalorder %s41, 2
      %p159 = por %p157, %p158
      %p160 = scmp.ne.s32.totalorder %s151, %s152
      %p161 = scmp.eq.s32.totalorder %s41, 0
      %p162 = por %p160, %p161
      %p163 = scmp.ne.s32.totalorder %s151, %s152
      %p164 = scmp.eq.s32.totalorder %s42, 2
      %p165 = por %p163, %p164
      %p167 = scmp.ne.s32.totalorder %s152, %s166
      %p168 = scmp.eq.s32.totalorder %s42, 0
      %p169 = por %p167, %p168
      %s171 = sadd.s32 %s170, 1
      %p174 = scmp.eq.s32.totalorder %s36, 2
      %p175 = scmp.ne.s32.totalorder %s170, %s172
      %p176 = scmp.eq.s32.totalorder %s36, 0
      %p177 = por %p175, %p176
      %p178 = scmp.ne.s32.totalorder %s170, %s172
      %p179 = scmp.eq.s32.totalorder %s41, 2
      %p180 = por %p178, %p179
      %p181 = scmp.ne.s32.totalorder %s172, %s173
      %p182 = scmp.eq.s32.totalorder %s41, 0
      %p183 = por %p181, %p182
      %p184 = scmp.ne.s32.totalorder %s172, %s173
      %p185 = scmp.eq.s32.totalorder %s42, 2
      %p186 = por %p184, %p185
      %p188 = scmp.ne.s32.totalorder %s173, %s187
      %p189 = scmp.eq.s32.totalorder %s42, 0
      %p190 = por %p188, %p189
      %s192 = sadd.s32 %s191, 1
      %p195 = scmp.eq.s32.totalorder %s36, 2
      %p196 = scmp.ne.s32.totalorder %s191, %s193
      %p197 = scmp.eq.s32.totalorder %s36, 0
      %p198 = por %p196, %p197
      %p199 = scmp.ne.s32.totalorder %s191, %s193
      %p200 = scmp.eq.s32.totalorder %s41, 2
      %p201 = por %p199, %p200
      %p202 = scmp.ne.s32.totalorder %s193, %s194
      %p203 = scmp.eq.s32.totalorder %s41, 0
      %p204 = por %p202, %p203
      %p205 = scmp.ne.s32.totalorder %s193, %s194
      %p206 = scmp.eq.s32.totalorder %s42, 2
      %p207 = por %p205, %p206
      %p209 = scmp.ne.s32.totalorder %s194, %s208
      %p210 = scmp.eq.s32.totalorder %s42, 0
      %p211 = por %p209, %p210
      %s212 = ssub.s32 %s36, %s43
      %p213 = scmp.eq.s32.totalorder %s212, 0
      %s215 = sadd.s32 %s214, 1
      %s216 = scalar_select %p213, %s214, %s215
      %p219 = pneg %p213
      %p220 = scmp.eq.s32.totalorder %s36, 2
      %p221 = por %p219, %p220
      %p222 = scmp.ne.s32.totalorder %s214, %s217
      %p223 = scmp.eq.s32.totalorder %s36, 0
      %p224 = por %p222, %p223
      %p225 = scmp.ne.s32.totalorder %s214, %s217
      %p226 = scmp.eq.s32.totalorder %s41, 2
      %p227 = por %p225, %p226
      %p228 = scmp.ne.s32.totalorder %s217, %s218
      %p229 = scmp.eq.s32.totalorder %s41, 0
      %p230 = por %p228, %p229
      %p231 = scmp.ne.s32.totalorder %s217, %s218
      %p232 = scmp.eq.s32.totalorder %s42, 2
      %p233 = por %p231, %p232
      %p235 = scmp.ne.s32.totalorder %s218, %s234
      %p236 = scmp.eq.s32.totalorder %s42, 0
      %p237 = por %p235, %p236
      %s238 = ssub.s32 %s36, %s43
      %p239 = scmp.eq.s32.totalorder %s238, 0
      %s241 = sadd.s32 %s240, 1
      %s242 = scalar_select %p239, %s240, %s241
      %p245 = pneg %p239
      %p246 = scmp.eq.s32.totalorder %s36, 2
      %p247 = por %p245, %p246
      %p248 = scmp.ne.s32.totalorder %s240, %s243
      %p249 = scmp.eq.s32.totalorder %s36, 0
      %p250 = por %p248, %p249
      %p251 = scmp.ne.s32.totalorder %s240, %s243
      %p252 = scmp.eq.s32.totalorder %s41, 2
      %p253 = por %p251, %p252
      %p254 = scmp.ne.s32.totalorder %s243, %s244
      %p255 = scmp.eq.s32.totalorder %s41, 0
      %p256 = por %p254, %p255
      %p257 = scmp.ne.s32.totalorder %s243, %s244
      %p258 = scmp.eq.s32.totalorder %s42, 2
      %p259 = por %p257, %p258
      %p261 = scmp.ne.s32.totalorder %s244, %s260
      %p262 = scmp.eq.s32.totalorder %s42, 0
      %p263 = por %p261, %p262
      %s264 = ssub.s32 %s36, %s43
      %p265 = scmp.eq.s32.totalorder %s264, 0
      %s267 = sadd.s32 %s266, 1
      %s268 = scalar_select %p265, %s266, %s267
      %p271 = pneg %p265
      %p272 = scmp.eq.s32.totalorder %s36, 2
      %p273 = por %p271, %p272
      %p274 = scmp.ne.s32.totalorder %s266, %s269
      %p275 = scmp.eq.s32.totalorder %s36, 0
      %p276 = por %p274, %p275
      %p277 = scmp.ne.s32.totalorder %s266, %s269
      %p278 = scmp.eq.s32.totalorder %s41, 2
      %p279 = por %p277, %p278
      %p280 = scmp.ne.s32.totalorder %s269, %s270
      %p281 = scmp.eq.s32.totalorder %s41, 0
      %p282 = por %p280, %p281
      %p283 = scmp.ne.s32.totalorder %s269, %s270
      %p284 = scmp.eq.s32.totalorder %s42, 2
      %p285 = por %p283, %p284
      %p287 = scmp.ne.s32.totalorder %s270, %s286
      %p288 = scmp.eq.s32.totalorder %s42, 0
      %p289 = por %p287, %p288
      %s290 = ssub.s32 %s36, %s43
      %p291 = scmp.eq.s32.totalorder %s290, 0
      %s293 = sadd.s32 %s292, 1
      %s294 = scalar_select %p291, %s292, %s293
      %p297 = pneg %p291
      %p298 = scmp.eq.s32.totalorder %s36, 2
      %p299 = por %p297, %p298
      %p300 = scmp.ne.s32.totalorder %s292, %s295
      %p301 = scmp.eq.s32.totalorder %s36, 0
      %p302 = por %p300, %p301
      %p303 = scmp.ne.s32.totalorder %s292, %s295
      %p304 = scmp.eq.s32.totalorder %s41, 2
      %p305 = por %p303, %p304
      %p306 = scmp.ne.s32.totalorder %s295, %s296
      %p307 = scmp.eq.s32.totalorder %s41, 0
      %p308 = por %p306, %p307
      %p309 = scmp.ne.s32.totalorder %s295, %s296
      %p310 = scmp.eq.s32.totalorder %s42, 2
      %p311 = por %p309, %p310
      %p313 = scmp.ne.s32.totalorder %s296, %s312
      %p314 = scmp.eq.s32.totalorder %s42, 0
      %p315 = por %p313, %p314
      %s316 = ssub.s32 %s36, %s43
      %p317 = scmp.eq.s32.totalorder %s316, 0
      %s319 = sadd.s32 %s318, 1
      %s320 = scalar_select %p317, %s318, %s319
      %p323 = pneg %p317
      %p324 = scmp.eq.s32.totalorder %s36, 2
      %p325 = por %p323, %p324
      %p326 = scmp.ne.s32.totalorder %s318, %s321
      %p327 = scmp.eq.s32.totalorder %s36, 0
      %p328 = por %p326, %p327
      %p329 = scmp.ne.s32.totalorder %s318, %s321
      %p330 = scmp.eq.s32.totalorder %s41, 2
      %p331 = por %p329, %p330
      %p332 = scmp.ne.s32.totalorder %s321, %s322
      %p333 = scmp.eq.s32.totalorder %s41, 0
      %p334 = por %p332, %p333
      %p335 = scmp.ne.s32.totalorder %s321, %s322
      %p336 = scmp.eq.s32.totalorder %s42, 2
      %p337 = por %p335, %p336
      %p339 = scmp.ne.s32.totalorder %s322, %s338
      %p340 = scmp.eq.s32.totalorder %s42, 0
      %p341 = por %p339, %p340
      %s342 = ssub.s32 %s36, %s43
      %p343 = scmp.eq.s32.totalorder %s342, 0
      %s345 = sadd.s32 %s344, 1
      %s346 = scalar_select %p343, %s344, %s345
      %p349 = pneg %p343
      %p350 = scmp.eq.s32.totalorder %s36, 2
      %p351 = por %p349, %p350
      %p352 = scmp.ne.s32.totalorder %s344, %s347
      %p353 = scmp.eq.s32.totalorder %s36, 0
      %p354 = por %p352, %p353
      %p355 = scmp.ne.s32.totalorder %s344, %s347
      %p356 = scmp.eq.s32.totalorder %s41, 2
      %p357 = por %p355, %p356
      %p358 = scmp.ne.s32.totalorder %s347, %s348
      %p359 = scmp.eq.s32.totalorder %s41, 0
      %p360 = por %p358, %p359
      %p361 = scmp.ne.s32.totalorder %s347, %s348
      %p362 = scmp.eq.s32.totalorder %s42, 2
      %p363 = por %p361, %p362
      %p365 = scmp.ne.s32.totalorder %s348, %s364
      %p366 = scmp.eq.s32.totalorder %s42, 0
      %p367 = por %p365, %p366
      %s368 = ssub.s32 %s36, %s43
      %p369 = scmp.eq.s32.totalorder %s368, 0
      %s371 = sadd.s32 %s370, 1
      %s372 = scalar_select %p369, %s370, %s371
      %p375 = pneg %p369
      %p376 = scmp.eq.s32.totalorder %s36, 2
      %p377 = por %p375, %p376
      %p378 = scmp.ne.s32.totalorder %s370, %s373
      %p379 = scmp.eq.s32.totalorder %s36, 0
      %p380 = por %p378, %p379
      %p381 = scmp.ne.s32.totalorder %s370, %s373
      %p382 = scmp.eq.s32.totalorder %s41, 2
      %p383 = por %p381, %p382
      %p384 = scmp.ne.s32.totalorder %s373, %s374
      %p385 = scmp.eq.s32.totalorder %s41, 0
      %p386 = por %p384, %p385
      %p387 = scmp.ne.s32.totalorder %s373, %s374
      %p388 = scmp.eq.s32.totalorder %s42, 2
      %p389 = por %p387, %p388
      %p391 = scmp.ne.s32.totalorder %s374, %s390
      %p392 = scmp.eq.s32.totalorder %s42, 0
      %p393 = por %p391, %p392
      %s394 = ssub.s32 %s36, %s43
      %p395 = scmp.eq.s32.totalorder %s394, 0
      %s397 = sadd.s32 %s396, 1
      %s398 = scalar_select %p395, %s396, %s397
      %p401 = pneg %p395
      %p402 = scmp.eq.s32.totalorder %s36, 2
      %p403 = por %p401, %p402
      %p404 = scmp.ne.s32.totalorder %s396, %s399
      %p405 = scmp.eq.s32.totalorder %s36, 0
      %p406 = por %p404, %p405
      %p407 = scmp.ne.s32.totalorder %s396, %s399
      %p408 = scmp.eq.s32.totalorder %s41, 2
      %p409 = por %p407, %p408
      %p410 = scmp.ne.s32.totalorder %s399, %s400
      %p411 = scmp.eq.s32.totalorder %s41, 0
      %p412 = por %p410, %p411
      %p413 = scmp.ne.s32.totalorder %s399, %s400
      %p414 = scmp.eq.s32.totalorder %s42, 2
      %p415 = por %p413, %p414
      %p417 = scmp.ne.s32.totalorder %s400, %s416
      %p418 = scmp.eq.s32.totalorder %s42, 0
      %p419 = por %p417, %p418
      %s420 = ssub.s32 %s36, %s43
      %p421 = scmp.eq.s32.totalorder %s420, 0
      %s423 = sadd.s32 %s422, 1
      %s424 = scalar_select %p421, %s422, %s423
      %p427 = pneg %p421
      %p428 = scmp.eq.s32.totalorder %s36, 2
      %p429 = por %p427, %p428
      %p430 = scmp.ne.s32.totalorder %s422, %s425
      %p431 = scmp.eq.s32.totalorder %s36, 0
      %p432 = por %p430, %p431
      %p433 = scmp.ne.s32.totalorder %s422, %s425
      %p434 = scmp.eq.s32.totalorder %s41, 2
      %p435 = por %p433, %p434
      %p436 = scmp.ne.s32.totalorder %s425, %s426
      %p437 = scmp.eq.s32.totalorder %s41, 0
      %p438 = por %p436, %p437
      %p439 = scmp.ne.s32.totalorder %s425, %s426
      %p440 = scmp.eq.s32.totalorder %s42, 2
      %p441 = por %p439, %p440
      %p443 = scmp.ne.s32.totalorder %s426, %s442
      %p444 = scmp.eq.s32.totalorder %s42, 0
      %p445 = por %p443, %p444
      %p446 = scmp.lt.s32.totalorder %s36, 1
      %s447 = scalar_select %p446, %s36, 1
      %p448 = scmp.lt.s32.totalorder %s43, 1
      %s449 = scalar_select %p448, %s43, 1
      %s450 = ssub.s32 %s447, %s449
      %p451 = scmp.eq.s32.totalorder %s450, 0
      %s453 = sadd.s32 %s452, 1
      %s454 = scalar_select %p451, %s452, %s453
      %p457 = pneg %p451
      %p458 = scmp.eq.s32.totalorder %s36, 2
      %p459 = por %p457, %p458
      %p460 = scmp.ne.s32.totalorder %s452, %s455
      %p461 = scmp.eq.s32.totalorder %s36, 0
      %p462 = por %p460, %p461
      %p463 = scmp.ne.s32.totalorder %s452, %s455
      %p464 = scmp.eq.s32.totalorder %s41, 2
      %p465 = por %p463, %p464
      %p466 = scmp.ne.s32.totalorder %s455, %s456
      %p467 = scmp.eq.s32.totalorder %s41, 0
      %p468 = por %p466, %p467
      %p469 = scmp.ne.s32.totalorder %s455, %s456
      %p470 = scmp.eq.s32.totalorder %s42, 2
      %p471 = por %p469, %p470
      %p473 = scmp.ne.s32.totalorder %s456, %s472
      %p474 = scmp.eq.s32.totalorder %s42, 0
      %p475 = por %p473, %p474
      %p476 = scmp.lt.s32.totalorder %s36, 1
      %s477 = scalar_select %p476, %s36, 1
      %p478 = scmp.lt.s32.totalorder %s43, 1
      %s479 = scalar_select %p478, %s43, 1
      %s480 = ssub.s32 %s477, %s479
      %p481 = scmp.eq.s32.totalorder %s480, 0
      %s483 = sadd.s32 %s482, 1
      %s484 = scalar_select %p481, %s482, %s483
      %p487 = pneg %p481
      %p488 = scmp.eq.s32.totalorder %s36, 2
      %p489 = por %p487, %p488
      %p490 = scmp.ne.s32.totalorder %s482, %s485
      %p491 = scmp.eq.s32.totalorder %s36, 0
      %p492 = por %p490, %p491
      %p493 = scmp.ne.s32.totalorder %s482, %s485
      %p494 = scmp.eq.s32.totalorder %s41, 2
      %p495 = por %p493, %p494
      %p496 = scmp.ne.s32.totalorder %s485, %s486
      %p497 = scmp.eq.s32.totalorder %s41, 0
      %p498 = por %p496, %p497
      %p499 = scmp.ne.s32.totalorder %s485, %s486
      %p500 = scmp.eq.s32.totalorder %s42, 2
      %p501 = por %p499, %p500
      %p503 = scmp.ne.s32.totalorder %s486, %s502
      %p504 = scmp.eq.s32.totalorder %s42, 0
      %p505 = por %p503, %p504
      %p506 = scmp.lt.s32.totalorder %s36, 1
      %s507 = scalar_select %p506, %s36, 1
      %p508 = scmp.lt.s32.totalorder %s43, 1
      %s509 = scalar_select %p508, %s43, 1
      %s510 = ssub.s32 %s507, %s509
      %p511 = scmp.eq.s32.totalorder %s510, 0
      %s513 = sadd.s32 %s512, 1
      %s514 = scalar_select %p511, %s512, %s513
      %p517 = pneg %p511
      %p518 = scmp.eq.s32.totalorder %s36, 2
      %p519 = por %p517, %p518
      %p520 = scmp.ne.s32.totalorder %s512, %s515
      %p521 = scmp.eq.s32.totalorder %s36, 0
      %p522 = por %p520, %p521
      %p523 = scmp.ne.s32.totalorder %s512, %s515
      %p524 = scmp.eq.s32.totalorder %s41, 2
      %p525 = por %p523, %p524
      %p526 = scmp.ne.s32.totalorder %s515, %s516
      %p527 = scmp.eq.s32.totalorder %s41, 0
      %p528 = por %p526, %p527
      %p529 = scmp.ne.s32.totalorder %s515, %s516
      %p530 = scmp.eq.s32.totalorder %s42, 2
      %p531 = por %p529, %p530
      %p533 = scmp.ne.s32.totalorder %s516, %s532
      %p534 = scmp.eq.s32.totalorder %s42, 0
      %p535 = por %p533, %p534
      %p536 = scmp.lt.s32.totalorder %s36, 1
      %s537 = scalar_select %p536, %s36, 1
      %p538 = scmp.lt.s32.totalorder %s43, 1
      %s539 = scalar_select %p538, %s43, 1
      %s540 = ssub.s32 %s537, %s539
      %p541 = scmp.eq.s32.totalorder %s540, 0
      %s543 = sadd.s32 %s542, 1
      %s544 = scalar_select %p541, %s542, %s543
      %p547 = pneg %p541
      %p548 = scmp.eq.s32.totalorder %s36, 2
      %p549 = por %p547, %p548
      %p550 = scmp.ne.s32.totalorder %s542, %s545
      %p551 = scmp.eq.s32.totalorder %s36, 0
      %p552 = por %p550, %p551
      %p553 = scmp.ne.s32.totalorder %s542, %s545
      %p554 = scmp.eq.s32.totalorder %s41, 2
      %p555 = por %p553, %p554
      %p556 = scmp.ne.s32.totalorder %s545, %s546
      %p557 = scmp.eq.s32.totalorder %s41, 0
      %p558 = por %p556, %p557
      %p559 = scmp.ne.s32.totalorder %s545, %s546
      %p560 = scmp.eq.s32.totalorder %s42, 2
      %p561 = por %p559, %p560
      %p563 = scmp.ne.s32.totalorder %s546, %s562
      %p564 = scmp.eq.s32.totalorder %s42, 0
      %p565 = por %p563, %p564
      %p566 = scmp.lt.s32.totalorder %s36, 1
      %s567 = scalar_select %p566, %s36, 1
      %p568 = scmp.lt.s32.totalorder %s43, 1
      %s569 = scalar_select %p568, %s43, 1
      %s570 = ssub.s32 %s567, %s569
      %p571 = scmp.eq.s32.totalorder %s570, 0
      %s573 = sadd.s32 %s572, 1
      %s574 = scalar_select %p571, %s572, %s573
      %p577 = pneg %p571
      %p578 = scmp.eq.s32.totalorder %s36, 2
      %p579 = por %p577, %p578
      %p580 = scmp.ne.s32.totalorder %s572, %s575
      %p581 = scmp.eq.s32.totalorder %s36, 0
      %p582 = por %p580, %p581
      %p583 = scmp.ne.s32.totalorder %s572, %s575
      %p584 = scmp.eq.s32.totalorder %s41, 2
      %p585 = por %p583, %p584
      %p586 = scmp.ne.s32.totalorder %s575, %s576
      %p587 = scmp.eq.s32.totalorder %s41, 0
      %p588 = por %p586, %p587
      %p589 = scmp.ne.s32.totalorder %s575, %s576
      %p590 = scmp.eq.s32.totalorder %s42, 2
      %p591 = por %p589, %p590
      %p593 = scmp.ne.s32.totalorder %s576, %s592
      %p594 = scmp.eq.s32.totalorder %s42, 0
      %p595 = por %p593, %p594
      %p596 = scmp.lt.s32.totalorder %s36, 1
      %s597 = scalar_select %p596, %s36, 1
      %p598 = scmp.lt.s32.totalorder %s43, 1
      %s599 = scalar_select %p598, %s43, 1
      %s600 = ssub.s32 %s597, %s599
      %p601 = scmp.eq.s32.totalorder %s600, 0
      %s603 = sadd.s32 %s602, 1
      %s604 = scalar_select %p601, %s602, %s603
      %p607 = pneg %p601
      %p608 = scmp.eq.s32.totalorder %s36, 2
      %p609 = por %p607, %p608
      %p610 = scmp.ne.s32.totalorder %s602, %s605
      %p611 = scmp.eq.s32.totalorder %s36, 0
      %p612 = por %p610, %p611
      %p613 = scmp.ne.s32.totalorder %s602, %s605
      %p614 = scmp.eq.s32.totalorder %s41, 2
      %p615 = por %p613, %p614
      %p616 = scmp.ne.s32.totalorder %s605, %s606
      %p617 = scmp.eq.s32.totalorder %s41, 0
      %p618 = por %p616, %p617
      %p619 = scmp.ne.s32.totalorder %s605, %s606
      %p620 = scmp.eq.s32.totalorder %s42, 2
      %p621 = por %p619, %p620
      %p623 = scmp.ne.s32.totalorder %s606, %s622
      %p624 = scmp.eq.s32.totalorder %s42, 0
      %p625 = por %p623, %p624
      %p626 = scmp.lt.s32.totalorder %s36, 1
      %s627 = scalar_select %p626, %s36, 1
      %p628 = scmp.lt.s32.totalorder %s43, 1
      %s629 = scalar_select %p628, %s43, 1
      %s630 = ssub.s32 %s627, %s629
      %p631 = scmp.eq.s32.totalorder %s630, 0
      %s633 = sadd.s32 %s632, 1
      %s634 = scalar_select %p631, %s632, %s633
      %p637 = pneg %p631
      %p638 = scmp.eq.s32.totalorder %s36, 2
      %p639 = por %p637, %p638
      %p640 = scmp.ne.s32.totalorder %s632, %s635
      %p641 = scmp.eq.s32.totalorder %s36, 0
      %p642 = por %p640, %p641
      %p643 = scmp.ne.s32.totalorder %s632, %s635
      %p644 = scmp.eq.s32.totalorder %s41, 2
      %p645 = por %p643, %p644
      %p646 = scmp.ne.s32.totalorder %s635, %s636
      %p647 = scmp.eq.s32.totalorder %s41, 0
      %p648 = por %p646, %p647
      %p649 = scmp.ne.s32.totalorder %s635, %s636
      %p650 = scmp.eq.s32.totalorder %s42, 2
      %p651 = por %p649, %p650
      %p653 = scmp.ne.s32.totalorder %s636, %s652
      %p654 = scmp.eq.s32.totalorder %s42, 0
      %p655 = por %p653, %p654
      %p656 = scmp.lt.s32.totalorder %s36, 1
      %s657 = scalar_select %p656, %s36, 1
      %p658 = scmp.lt.s32.totalorder %s43, 1
      %s659 = scalar_select %p658, %s43, 1
      %s660 = ssub.s32 %s657, %s659
      %p661 = scmp.eq.s32.totalorder %s660, 0
      %s663 = sadd.s32 %s662, 1
      %s664 = scalar_select %p661, %s662, %s663
      %p667 = pneg %p661
      %p668 = scmp.eq.s32.totalorder %s36, 2
      %p669 = por %p667, %p668
      %p670 = scmp.ne.s32.totalorder %s662, %s665
      %p671 = scmp.eq.s32.totalorder %s36, 0
      %p672 = por %p670, %p671
      %p673 = scmp.ne.s32.totalorder %s662, %s665
      %p674 = scmp.eq.s32.totalorder %s41, 2
      %p675 = por %p673, %p674
      %p676 = scmp.ne.s32.totalorder %s665, %s666
      %p677 = scmp.eq.s32.totalorder %s41, 0
      %p678 = por %p676, %p677
      %p679 = scmp.ne.s32.totalorder %s665, %s666
      %p680 = scmp.eq.s32.totalorder %s42, 2
      %p681 = por %p679, %p680
      %p683 = scmp.ne.s32.totalorder %s666, %s682
      %p684 = scmp.eq.s32.totalorder %s42, 0
      %p685 = por %p683, %p684
      %s687 = sadd.s32 %s686, 1
      %p690 = scmp.eq.s32.totalorder %s36, 2
      %p691 = scmp.ne.s32.totalorder %s686, %s688
      %p692 = scmp.eq.s32.totalorder %s36, 0
      %p693 = por %p691, %p692
      %p694 = scmp.ne.s32.totalorder %s686, %s688
      %p695 = scmp.eq.s32.totalorder %s41, 2
      %p696 = por %p694, %p695
      %p697 = scmp.ne.s32.totalorder %s688, %s689
      %p698 = scmp.eq.s32.totalorder %s41, 0
      %p699 = por %p697, %p698
      %p700 = scmp.ne.s32.totalorder %s688, %s689
      %p701 = scmp.eq.s32.totalorder %s42, 2
      %p702 = por %p700, %p701
      %p704 = scmp.ne.s32.totalorder %s689, %s703
      %p705 = scmp.eq.s32.totalorder %s42, 0
      %p706 = por %p704, %p705
      %s708 = sadd.s32 %s707, 1
      %p711 = scmp.eq.s32.totalorder %s36, 2
      %p712 = scmp.ne.s32.totalorder %s707, %s709
      %p713 = scmp.eq.s32.totalorder %s36, 0
      %p714 = por %p712, %p713
      %p715 = scmp.ne.s32.totalorder %s707, %s709
      %p716 = scmp.eq.s32.totalorder %s41, 2
      %p717 = por %p715, %p716
      %p718 = scmp.ne.s32.totalorder %s709, %s710
      %p719 = scmp.eq.s32.totalorder %s41, 0
      %p720 = por %p718, %p719
      %p721 = scmp.ne.s32.totalorder %s709, %s710
      %p722 = scmp.eq.s32.totalorder %s42, 2
      %p723 = por %p721, %p722
      %p725 = scmp.ne.s32.totalorder %s710, %s724
      %p726 = scmp.eq.s32.totalorder %s42, 0
      %p727 = por %p725, %p726
      %p728 = scmp.le.s32.totalorder 1, %s36
      %p729 = scmp.lt.s32.totalorder %s36, 4
      %p730 = pnand %p728, %p729
      %p731 = pneg %p730
      // Predicated region
      $region9: #{gnn_forward.1} parent=5 // pred_check
        _
      $region10: #{gnn_forward.1} parent=5 // pred_check_branch
        %733 = sbr.rel (%p730) target = $region12
      $region11: #{gnn_forward.1} parent=5 // pred_region
        %s734 = ssub.s32 %s36, 1
        // Predicated region
        $region13: #{gnn_forward.1} parent=11 // pred_check
          %p735 = pneg %p57
        $region14: #{gnn_forward.1} parent=11 // pred_check_branch
          %737 = sbr.rel (%p735) target = $region16
        $region15: #{gnn_forward.1} parent=11 // pred_region
          %s739 = ssub.s32 16, 16
          %740 = vsyncadd [#allocation5], %s739
          %s742 = sshll.u32 %s0, 4
          %s743 = int_to_ptr.vmem [resolvable:$true] %s742
          %745 = dma.vmem_to_smem %s743, 16, [#allocation3], [#allocation5]
        $region16: #{gnn_forward.1} parent=11 // pred_fallthru
          _
        // Predicated region
        $region17: #{gnn_forward.1} parent=11 // pred_check
          %p746 = pneg %p78
        $region18: #{gnn_forward.1} parent=11 // pred_check_branch
          %748 = sbr.rel (%p746) target = $region20
        $region19: #{gnn_forward.1} parent=11 // pred_region
          _
        $region20: #{gnn_forward.1} parent=11 // pred_fallthru
          _
        // Predicated region
        $region21: #{gnn_forward.1} parent=11 // pred_check
          %p749 = pneg %p99
        $region22: #{gnn_forward.1} parent=11 // pred_check_branch
          %751 = sbr.rel (%p749) target = $region24
        $region23: #{gnn_forward.1} parent=11 // pred_region
          _
        $region24: #{gnn_forward.1} parent=11 // pred_fallthru
          _
        // Predicated region
        $region25: #{gnn_forward.1} parent=11 // pred_check
          %p752 = pneg %p120
        $region26: #{gnn_forward.1} parent=11 // pred_check_branch
          %754 = sbr.rel (%p752) target = $region28
        $region27: #{gnn_forward.1} parent=11 // pred_region
          _
        $region28: #{gnn_forward.1} parent=11 // pred_fallthru
          _
        // Predicated region
        $region29: #{gnn_forward.1} parent=11 // pred_check
          %p755 = pneg %p141
        $region30: #{gnn_forward.1} parent=11 // pred_check_branch
          %757 = sbr.rel (%p755) target = $region32
        $region31: #{gnn_forward.1} parent=11 // pred_region
          _
        $region32: #{gnn_forward.1} parent=11 // pred_fallthru
          _
        // Predicated region
        $region33: #{gnn_forward.1} parent=11 // pred_check
          %p758 = pneg %p162
        $region34: #{gnn_forward.1} parent=11 // pred_check_branch
          %760 = sbr.rel (%p758) target = $region36
        $region35: #{gnn_forward.1} parent=11 // pred_region
          _
        $region36: #{gnn_forward.1} parent=11 // pred_fallthru
          _
        // Predicated region
        $region37: #{gnn_forward.1} parent=11 // pred_check
          %p761 = pneg %p183
        $region38: #{gnn_forward.1} parent=11 // pred_check_branch
          %763 = sbr.rel (%p761) target = $region40
        $region39: #{gnn_forward.1} parent=11 // pred_region
          _
        $region40: #{gnn_forward.1} parent=11 // pred_fallthru
          _
        // Predicated region
        $region41: #{gnn_forward.1} parent=11 // pred_check
          %p764 = pneg %p204
        $region42: #{gnn_forward.1} parent=11 // pred_check_branch
          %766 = sbr.rel (%p764) target = $region44
        $region43: #{gnn_forward.1} parent=11 // pred_region
          _
        $region44: #{gnn_forward.1} parent=11 // pred_fallthru
          _
      $region12: #{gnn_forward.1} parent=5 // pred_fallthru
        _
      %p767 = scmp.lt.s32.totalorder %s36, 3
      // Predicated region
      $region45: #{gnn_forward.1} parent=5 // pred_check
        %p768 = pneg %p767
      $region46: #{gnn_forward.1} parent=5 // pred_check_branch
        %770 = sbr.rel (%p768) target = $region48
      $region47: #{gnn_forward.1} parent=5 // pred_region
        // Predicated region
        $region49: #{gnn_forward.1} parent=47 // pred_check
          %p771 = pneg %p224
        $region50: #{gnn_forward.1} parent=47 // pred_check_branch
          %773 = sbr.rel (%p771) target = $region52
        $region51: #{gnn_forward.1} parent=47 // pred_region
          %p774 = scmp.lt.s32.totalorder %s36, 2
          %s775 = scalar_select %p774, %s36, 2
          %s776 = smul.addr %s775, 3
          %s777 = smul.addr %s776, 4
          %s778 = scalar_lea.vmem %s8, %s777
        $region52: #{gnn_forward.1} parent=47 // pred_fallthru
          _
        // Predicated region
        $region53: #{gnn_forward.1} parent=47 // pred_check
          %p779 = pneg %p250
        $region54: #{gnn_forward.1} parent=47 // pred_check_branch
          %781 = sbr.rel (%p779) target = $region56
        $region55: #{gnn_forward.1} parent=47 // pred_region
          %p782 = scmp.lt.s32.totalorder %s36, 2
          %s783 = scalar_select %p782, %s36, 2
          %s784 = smul.addr %s783, 16
          %s785 = smul.addr %s784, 4
          %s786 = scalar_lea.vmem %s9, %s785
        $region56: #{gnn_forward.1} parent=47 // pred_fallthru
          _
        // Predicated region
        $region57: #{gnn_forward.1} parent=47 // pred_check
          %p787 = pneg %p276
        $region58: #{gnn_forward.1} parent=47 // pred_check_branch
          %789 = sbr.rel (%p787) target = $region60
        $region59: #{gnn_forward.1} parent=47 // pred_region
          %p790 = scmp.lt.s32.totalorder %s36, 2
          %s791 = scalar_select %p790, %s36, 2
          %s792 = scalar_lea.vmem %s10, %s791
        $region60: #{gnn_forward.1} parent=47 // pred_fallthru
          _
        // Predicated region
        $region61: #{gnn_forward.1} parent=47 // pred_check
          %p793 = pneg %p302
        $region62: #{gnn_forward.1} parent=47 // pred_check_branch
          %795 = sbr.rel (%p793) target = $region64
        $region63: #{gnn_forward.1} parent=47 // pred_region
          %p796 = scmp.lt.s32.totalorder %s36, 2
          %s797 = scalar_select %p796, %s36, 2
          %s798 = scalar_lea.vmem %s11, %s797
        $region64: #{gnn_forward.1} parent=47 // pred_fallthru
          _
        // Predicated region
        $region65: #{gnn_forward.1} parent=47 // pred_check
          %p799 = pneg %p328
        $region66: #{gnn_forward.1} parent=47 // pred_check_branch
          %801 = sbr.rel (%p799) target = $region68
        $region67: #{gnn_forward.1} parent=47 // pred_region
          %p802 = scmp.lt.s32.totalorder %s36, 2
          %s803 = scalar_select %p802, %s36, 2
          %s804 = scalar_lea.vmem %s12, %s803
        $region68: #{gnn_forward.1} parent=47 // pred_fallthru
          _
        // Predicated region
        $region69: #{gnn_forward.1} parent=47 // pred_check
          %p805 = pneg %p354
        $region70: #{gnn_forward.1} parent=47 // pred_check_branch
          %807 = sbr.rel (%p805) target = $region72
        $region71: #{gnn_forward.1} parent=47 // pred_region
          %p808 = scmp.lt.s32.totalorder %s36, 2
          %s809 = scalar_select %p808, %s36, 2
          %s810 = smul.addr %s809, 16
          %s811 = smul.addr %s810, 4
          %s812 = scalar_lea.vmem %s13, %s811
        $region72: #{gnn_forward.1} parent=47 // pred_fallthru
          _
        // Predicated region
        $region73: #{gnn_forward.1} parent=47 // pred_check
          %p813 = pneg %p380
        $region74: #{gnn_forward.1} parent=47 // pred_check_branch
          %815 = sbr.rel (%p813) target = $region76
        $region75: #{gnn_forward.1} parent=47 // pred_region
          %p816 = scmp.lt.s32.totalorder %s36, 2
          %s817 = scalar_select %p816, %s36, 2
          %s818 = scalar_lea.vmem %s14, %s817
        $region76: #{gnn_forward.1} parent=47 // pred_fallthru
          _
        // Predicated region
        $region77: #{gnn_forward.1} parent=47 // pred_check
          %p819 = pneg %p406
        $region78: #{gnn_forward.1} parent=47 // pred_check_branch
          %821 = sbr.rel (%p819) target = $region80
        $region79: #{gnn_forward.1} parent=47 // pred_region
          %p822 = scmp.lt.s32.totalorder %s36, 2
          %s823 = scalar_select %p822, %s36, 2
          %s824 = scalar_lea.vmem %s15, %s823
        $region80: #{gnn_forward.1} parent=47 // pred_fallthru
          _
        // Predicated region
        $region81: #{gnn_forward.1} parent=47 // pred_check
          %p825 = pneg %p432
        $region82: #{gnn_forward.1} parent=47 // pred_check_branch
          %827 = sbr.rel (%p825) target = $region84
        $region83: #{gnn_forward.1} parent=47 // pred_region
          %p828 = scmp.lt.s32.totalorder %s36, 2
          %s829 = scalar_select %p828, %s36, 2
          %s830 = scalar_lea.vmem %s16, %s829
        $region84: #{gnn_forward.1} parent=47 // pred_fallthru
          _
        // Predicated region
        $region85: #{gnn_forward.1} parent=47 // pred_check
          %p831 = pneg %p462
        $region86: #{gnn_forward.1} parent=47 // pred_check_branch
          %833 = sbr.rel (%p831) target = $region88
        $region87: #{gnn_forward.1} parent=47 // pred_region
          %p834 = scmp.lt.s32.totalorder %s36, 1
          %s835 = scalar_select %p834, %s36, 1
          %p836 = scmp.lt.s32.totalorder %s835, 1
          %s837 = scalar_select %p836, %s835, 1
          %s838 = smul.addr %s837, 16
          %s839 = smul.addr %s838, 4
          %s840 = scalar_lea.vmem %s17, %s839
          %p841 = scmp.lt.s32.totalorder %s36, 1
          %s842 = scalar_select %p841, %s36, 1
        $region88: #{gnn_forward.1} parent=47 // pred_fallthru
          _
        // Predicated region
        $region89: #{gnn_forward.1} parent=47 // pred_check
          %p843 = pneg %p492
        $region90: #{gnn_forward.1} parent=47 // pred_check_branch
          %845 = sbr.rel (%p843) target = $region92
        $region91: #{gnn_forward.1} parent=47 // pred_region
          %p846 = scmp.lt.s32.totalorder %s36, 1
          %s847 = scalar_select %p846, %s36, 1
          %p848 = scmp.lt.s32.totalorder %s847, 1
          %s849 = scalar_select %p848, %s847, 1
          %s850 = scalar_lea.vmem %s18, %s849
          %p851 = scmp.lt.s32.totalorder %s36, 1
          %s852 = scalar_select %p851, %s36, 1
        $region92: #{gnn_forward.1} parent=47 // pred_fallthru
          _
        // Predicated region
        $region93: #{gnn_forward.1} parent=47 // pred_check
          %p853 = pneg %p522
        $region94: #{gnn_forward.1} parent=47 // pred_check_branch
          %855 = sbr.rel (%p853) target = $region96
        $region95: #{gnn_forward.1} parent=47 // pred_region
          %p856 = scmp.lt.s32.totalorder %s36, 1
          %s857 = scalar_select %p856, %s36, 1
          %p858 = scmp.lt.s32.totalorder %s857, 1
          %s859 = scalar_select %p858, %s857, 1
          %s860 = scalar_lea.vmem %s19, %s859
          %p861 = scmp.lt.s32.totalorder %s36, 1
          %s862 = scalar_select %p861, %s36, 1
        $region96: #{gnn_forward.1} parent=47 // pred_fallthru
          _
        // Predicated region
        $region97: #{gnn_forward.1} parent=47 // pred_check
          %p863 = pneg %p552
        $region98: #{gnn_forward.1} parent=47 // pred_check_branch
          %865 = sbr.rel (%p863) target = $region100
        $region99: #{gnn_forward.1} parent=47 // pred_region
          %p866 = scmp.lt.s32.totalorder %s36, 1
          %s867 = scalar_select %p866, %s36, 1
          %p868 = scmp.lt.s32.totalorder %s867, 1
          %s869 = scalar_select %p868, %s867, 1
          %s870 = scalar_lea.vmem %s20, %s869
          %p871 = scmp.lt.s32.totalorder %s36, 1
          %s872 = scalar_select %p871, %s36, 1
        $region100: #{gnn_forward.1} parent=47 // pred_fallthru
          _
        // Predicated region
        $region101: #{gnn_forward.1} parent=47 // pred_check
          %p873 = pneg %p582
        $region102: #{gnn_forward.1} parent=47 // pred_check_branch
          %875 = sbr.rel (%p873) target = $region104
        $region103: #{gnn_forward.1} parent=47 // pred_region
          %p876 = scmp.lt.s32.totalorder %s36, 1
          %s877 = scalar_select %p876, %s36, 1
          %p878 = scmp.lt.s32.totalorder %s877, 1
          %s879 = scalar_select %p878, %s877, 1
          %s880 = smul.addr %s879, 16
          %s881 = smul.addr %s880, 4
          %s882 = scalar_lea.vmem %s21, %s881
          %p883 = scmp.lt.s32.totalorder %s36, 1
          %s884 = scalar_select %p883, %s36, 1
        $region104: #{gnn_forward.1} parent=47 // pred_fallthru
          _
        // Predicated region
        $region105: #{gnn_forward.1} parent=47 // pred_check
          %p885 = pneg %p612
        $region106: #{gnn_forward.1} parent=47 // pred_check_branch
          %887 = sbr.rel (%p885) target = $region108
        $region107: #{gnn_forward.1} parent=47 // pred_region
          %p888 = scmp.lt.s32.totalorder %s36, 1
          %s889 = scalar_select %p888, %s36, 1
          %p890 = scmp.lt.s32.totalorder %s889, 1
          %s891 = scalar_select %p890, %s889, 1
          %s892 = scalar_lea.vmem %s22, %s891
          %p893 = scmp.lt.s32.totalorder %s36, 1
          %s894 = scalar_select %p893, %s36, 1
        $region108: #{gnn_forward.1} parent=47 // pred_fallthru
          _
        // Predicated region
        $region109: #{gnn_forward.1} parent=47 // pred_check
          %p895 = pneg %p642
        $region110: #{gnn_forward.1} parent=47 // pred_check_branch
          %897 = sbr.rel (%p895) target = $region112
        $region111: #{gnn_forward.1} parent=47 // pred_region
          %p898 = scmp.lt.s32.totalorder %s36, 1
          %s899 = scalar_select %p898, %s36, 1
          %p900 = scmp.lt.s32.totalorder %s899, 1
          %s901 = scalar_select %p900, %s899, 1
          %s902 = scalar_lea.vmem %s23, %s901
          %p903 = scmp.lt.s32.totalorder %s36, 1
          %s904 = scalar_select %p903, %s36, 1
        $region112: #{gnn_forward.1} parent=47 // pred_fallthru
          _
        // Predicated region
        $region113: #{gnn_forward.1} parent=47 // pred_check
          %p905 = pneg %p672
        $region114: #{gnn_forward.1} parent=47 // pred_check_branch
          %907 = sbr.rel (%p905) target = $region116
        $region115: #{gnn_forward.1} parent=47 // pred_region
          %p908 = scmp.lt.s32.totalorder %s36, 1
          %s909 = scalar_select %p908, %s36, 1
          %p910 = scmp.lt.s32.totalorder %s909, 1
          %s911 = scalar_select %p910, %s909, 1
          %s912 = scalar_lea.vmem %s24, %s911
          %p913 = scmp.lt.s32.totalorder %s36, 1
          %s914 = scalar_select %p913, %s36, 1
        $region116: #{gnn_forward.1} parent=47 // pred_fallthru
          _
      $region48: #{gnn_forward.1} parent=5 // pred_fallthru
        _
      %p915 = scmp.le.s32.totalorder 1, %s36
      %p916 = scmp.lt.s32.totalorder %s36, 4
      %p917 = pnand %p915, %p916
      %p918 = pneg %p917
      // Predicated region
      $region117: #{gnn_forward.1} parent=5 // pred_check
        _
      $region118: #{gnn_forward.1} parent=5 // pred_check_branch
        %920 = sbr.rel (%p917) target = $region120
      $region119: #{gnn_forward.1} parent=5 // pred_region
        %s921 = ssub.s32 %s36, 1
        // Predicated region
        $region121: #{gnn_forward.1} parent=119 // pred_check
          %p922 = pneg %p57
        $region122: #{gnn_forward.1} parent=119 // pred_check_branch
          %924 = sbr.rel (%p922) target = $region124
        $region123: #{gnn_forward.1} parent=119 // pred_region
          %925 = dma.done [#allocation5], 16
        $region124: #{gnn_forward.1} parent=119 // pred_fallthru
          _
        %926 = sfence
        %p927 = pneg %p57
        %p928 = pneg %p54
        %p929 = pneg %p78
        %p930 = pneg %p75
        %p931 = pneg %p99
        %p932 = pneg %p96
        %p933 = pneg %p120
        %p934 = pneg %p117
        %p935 = pneg %p141
        %p936 = pneg %p138
        %p937 = pneg %p162
        %p938 = pneg %p159
        %p939 = pneg %p183
        %p940 = pneg %p180
        %p941 = pneg %p204
        %p942 = pneg %p201
        %p943 = scmp.lt.s32.totalorder %s41, 2
        %s944 = scalar_select %p943, %s41, 2
        %s945 = smul.addr %s944, 3
        %s946 = smul.addr %s945, 4
        %s947 = scalar_lea.vmem %s8, %s946
        %p948 = pneg %p230
        %p949 = pneg %p227
        %p950 = scmp.lt.s32.totalorder %s41, 2
        %s951 = scalar_select %p950, %s41, 2
        %s952 = smul.addr %s951, 16
        %s953 = smul.addr %s952, 4
        %s954 = scalar_lea.vmem %s9, %s953
        %p955 = pneg %p256
        %p956 = pneg %p253
        %p957 = scmp.lt.s32.totalorder %s41, 2
        %s958 = scalar_select %p957, %s41, 2
        %s959 = scalar_lea.vmem %s10, %s958
        %p960 = pneg %p282
        %p961 = pneg %p279
        %p962 = scmp.lt.s32.totalorder %s41, 2
        %s963 = scalar_select %p962, %s41, 2
        %s964 = scalar_lea.vmem %s11, %s963
        %p965 = pneg %p308
        %p966 = pneg %p305
        %p967 = scmp.lt.s32.totalorder %s41, 2
        %s968 = scalar_select %p967, %s41, 2
        %s969 = scalar_lea.vmem %s12, %s968
        %p970 = pneg %p334
        %p971 = pneg %p331
        %p972 = scmp.lt.s32.totalorder %s41, 2
        %s973 = scalar_select %p972, %s41, 2
        %s974 = smul.addr %s973, 16
        %s975 = smul.addr %s974, 4
        %s976 = scalar_lea.vmem %s13, %s975
        %p977 = pneg %p360
        %p978 = pneg %p357
        %p979 = scmp.lt.s32.totalorder %s41, 2
        %s980 = scalar_select %p979, %s41, 2
        %s981 = scalar_lea.vmem %s14, %s980
        %p982 = pneg %p386
        %p983 = pneg %p383
        %p984 = scmp.lt.s32.totalorder %s41, 2
        %s985 = scalar_select %p984, %s41, 2
        %s986 = scalar_lea.vmem %s15, %s985
        %p987 = pneg %p412
        %p988 = pneg %p409
        %p989 = scmp.lt.s32.totalorder %s41, 2
        %s990 = scalar_select %p989, %s41, 2
        %s991 = scalar_lea.vmem %s16, %s990
        %p992 = pneg %p438
        %p993 = pneg %p435
        %p994 = scmp.lt.s32.totalorder %s41, 1
        %s995 = scalar_select %p994, %s41, 1
        %p996 = scmp.lt.s32.totalorder %s995, 1
        %s997 = scalar_select %p996, %s995, 1
        %s998 = smul.addr %s997, 16
        %s999 = smul.addr %s998, 4
        %s1000 = scalar_lea.vmem %s17, %s999
        %p1001 = pneg %p468
        %p1002 = pneg %p465
        %p1003 = scmp.lt.s32.totalorder %s41, 1
        %s1004 = scalar_select %p1003, %s41, 1
        %p1005 = scmp.lt.s32.totalorder %s1004, 1
        %s1006 = scalar_select %p1005, %s1004, 1
        %s1007 = scalar_lea.vmem %s18, %s1006
        %p1008 = pneg %p498
        %p1009 = pneg %p495
        %p1010 = scmp.lt.s32.totalorder %s41, 1
        %s1011 = scalar_select %p1010, %s41, 1
        %p1012 = scmp.lt.s32.totalorder %s1011, 1
        %s1013 = scalar_select %p1012, %s1011, 1
        %s1014 = scalar_lea.vmem %s19, %s1013
        %p1015 = pneg %p528
        %p1016 = pneg %p525
        %p1017 = scmp.lt.s32.totalorder %s41, 1
        %s1018 = scalar_select %p1017, %s41, 1
        %p1019 = scmp.lt.s32.totalorder %s1018, 1
        %s1020 = scalar_select %p1019, %s1018, 1
        %s1021 = scalar_lea.vmem %s20, %s1020
        %p1022 = pneg %p558
        %p1023 = pneg %p555
        %p1024 = scmp.lt.s32.totalorder %s41, 1
        %s1025 = scalar_select %p1024, %s41, 1
        %p1026 = scmp.lt.s32.totalorder %s1025, 1
        %s1027 = scalar_select %p1026, %s1025, 1
        %s1028 = smul.addr %s1027, 16
        %s1029 = smul.addr %s1028, 4
        %s1030 = scalar_lea.vmem %s21, %s1029
        %p1031 = pneg %p588
        %p1032 = pneg %p585
        %p1033 = scmp.lt.s32.totalorder %s41, 1
        %s1034 = scalar_select %p1033, %s41, 1
        %p1035 = scmp.lt.s32.totalorder %s1034, 1
        %s1036 = scalar_select %p1035, %s1034, 1
        %s1037 = scalar_lea.vmem %s22, %s1036
        %p1038 = pneg %p618
        %p1039 = pneg %p615
        %p1040 = scmp.lt.s32.totalorder %s41, 1
        %s1041 = scalar_select %p1040, %s41, 1
        %p1042 = scmp.lt.s32.totalorder %s1041, 1
        %s1043 = scalar_select %p1042, %s1041, 1
        %s1044 = scalar_lea.vmem %s23, %s1043
        %p1045 = pneg %p648
        %p1046 = pneg %p645
        %p1047 = scmp.lt.s32.totalorder %s41, 1
        %s1048 = scalar_select %p1047, %s41, 1
        %p1049 = scmp.lt.s32.totalorder %s1048, 1
        %s1050 = scalar_select %p1049, %s1048, 1
        %s1051 = scalar_lea.vmem %s24, %s1050
        %p1052 = pneg %p678
        %p1053 = pneg %p675
        %p1054 = pneg %p699
        %p1055 = pneg %p696
        %p1056 = pneg %p720
        %p1057 = pneg %p717
        %p1058 = scmp.lt.s32.totalorder %s41, 2
        %s1059 = scalar_select %p1058, %s41, 2
        %s1060 = smul.addr %s1059, 3
        %s1061 = smul.addr %s1060, 4
        %s1062 = scalar_lea.vmem %s8, %s1061
        %p1063 = scmp.lt.s32.totalorder %s41, 2
        %s1064 = scalar_select %p1063, %s41, 2
        %s1065 = smul.addr %s1064, 16
        %s1066 = smul.addr %s1065, 4
        %s1067 = scalar_lea.vmem %s9, %s1066
        %p1068 = scmp.lt.s32.totalorder %s41, 2
        %s1069 = scalar_select %p1068, %s41, 2
        %s1070 = scalar_lea.vmem %s10, %s1069
        %p1071 = scmp.lt.s32.totalorder %s41, 2
        %s1072 = scalar_select %p1071, %s41, 2
        %s1073 = scalar_lea.vmem %s11, %s1072
        %p1074 = scmp.lt.s32.totalorder %s41, 2
        %s1075 = scalar_select %p1074, %s41, 2
        %s1076 = scalar_lea.vmem %s12, %s1075
        %p1077 = scmp.lt.s32.totalorder %s41, 2
        %s1078 = scalar_select %p1077, %s41, 2
        %s1079 = smul.addr %s1078, 16
        %s1080 = smul.addr %s1079, 4
        %s1081 = scalar_lea.vmem %s13, %s1080
        %p1082 = scmp.lt.s32.totalorder %s41, 2
        %s1083 = scalar_select %p1082, %s41, 2
        %s1084 = scalar_lea.vmem %s14, %s1083
        %p1085 = scmp.lt.s32.totalorder %s41, 2
        %s1086 = scalar_select %p1085, %s41, 2
        %s1087 = scalar_lea.vmem %s15, %s1086
        %p1088 = scmp.lt.s32.totalorder %s41, 2
        %s1089 = scalar_select %p1088, %s41, 2
        %s1090 = scalar_lea.vmem %s16, %s1089
        %p1091 = scmp.lt.s32.totalorder %s41, 1
        %s1092 = scalar_select %p1091, %s41, 1
        %p1093 = scmp.lt.s32.totalorder %s1092, 1
        %s1094 = scalar_select %p1093, %s1092, 1
        %s1095 = smul.addr %s1094, 16
        %s1096 = smul.addr %s1095, 4
        %s1097 = scalar_lea.vmem %s17, %s1096
        %p1098 = scmp.lt.s32.totalorder %s41, 1
        %s1099 = scalar_select %p1098, %s41, 1
        %p1100 = scmp.lt.s32.totalorder %s41, 1
        %s1101 = scalar_select %p1100, %s41, 1
        %p1102 = scmp.lt.s32.totalorder %s1101, 1
        %s1103 = scalar_select %p1102, %s1101, 1
        %s1104 = scalar_lea.vmem %s18, %s1103
        %p1105 = scmp.lt.s32.totalorder %s41, 1
        %s1106 = scalar_select %p1105, %s41, 1
        %p1107 = scmp.lt.s32.totalorder %s41, 1
        %s1108 = scalar_select %p1107, %s41, 1
        %p1109 = scmp.lt.s32.totalorder %s1108, 1
        %s1110 = scalar_select %p1109, %s1108, 1
        %s1111 = scalar_lea.vmem %s19, %s1110
        %p1112 = scmp.lt.s32.totalorder %s41, 1
        %s1113 = scalar_select %p1112, %s41, 1
        %p1114 = scmp.lt.s32.totalorder %s41, 1
        %s1115 = scalar_select %p1114, %s41, 1
        %p1116 = scmp.lt.s32.totalorder %s1115, 1
        %s1117 = scalar_select %p1116, %s1115, 1
        %s1118 = scalar_lea.vmem %s20, %s1117
        %p1119 = scmp.lt.s32.totalorder %s41, 1
        %s1120 = scalar_select %p1119, %s41, 1
        %p1121 = scmp.lt.s32.totalorder %s41, 1
        %s1122 = scalar_select %p1121, %s41, 1
        %p1123 = scmp.lt.s32.totalorder %s1122, 1
        %s1124 = scalar_select %p1123, %s1122, 1
        %s1125 = smul.addr %s1124, 16
        %s1126 = smul.addr %s1125, 4
        %s1127 = scalar_lea.vmem %s21, %s1126
        %p1128 = scmp.lt.s32.totalorder %s41, 1
        %s1129 = scalar_select %p1128, %s41, 1
        %p1130 = scmp.lt.s32.totalorder %s41, 1
        %s1131 = scalar_select %p1130, %s41, 1
        %p1132 = scmp.lt.s32.totalorder %s1131, 1
        %s1133 = scalar_select %p1132, %s1131, 1
        %s1134 = scalar_lea.vmem %s22, %s1133
        %p1135 = scmp.lt.s32.totalorder %s41, 1
        %s1136 = scalar_select %p1135, %s41, 1
        %p1137 = scmp.lt.s32.totalorder %s41, 1
        %s1138 = scalar_select %p1137, %s41, 1
        %p1139 = scmp.lt.s32.totalorder %s1138, 1
        %s1140 = scalar_select %p1139, %s1138, 1
        %s1141 = scalar_lea.vmem %s23, %s1140
        %p1142 = scmp.lt.s32.totalorder %s41, 1
        %s1143 = scalar_select %p1142, %s41, 1
        %p1144 = scmp.lt.s32.totalorder %s41, 1
        %s1145 = scalar_select %p1144, %s41, 1
        %p1146 = scmp.lt.s32.totalorder %s1145, 1
        %s1147 = scalar_select %p1146, %s1145, 1
        %s1148 = scalar_lea.vmem %s24, %s1147
        %p1149 = scmp.lt.s32.totalorder %s41, 1
        %s1150 = scalar_select %p1149, %s41, 1
        %p1152 = scmp.eq.s32.totalorder %s41, 2
        %p1153 = scmp.eq.s32.totalorder %s41, 0
        // Predicated region
        $region125: #{gnn_forward.1} parent=119 // pred_check
          %p1154 = pneg %p1153
        $region126: #{gnn_forward.1} parent=119 // pred_check_branch
          %1156 = sbr.rel (%p1154) target = $region128
        $region127: #{gnn_forward.1} parent=119 // pred_region
          %v1157 = vld [vmem:[%s1] sm:$0xff]
          %v1158 = vld [vmem:[%s1 + $0x8] sm:$0xff]
          %1159 = vst [vmem:[#allocation6] sm:$0xff] %v1157
          %1160 = vst [vmem:[#allocation6 + $0x8] sm:$0xff] %v1158
          %v1161 = vld [vmem:[%s2] sm:$0x3]
          %1162 = vst [vmem:[#allocation2] sm:$0x3] %v1161
        $region128: #{gnn_forward.1} parent=119 // pred_fallthru
          _
        %v1163 = vld [vmem:[#allocation6] sm:$0xff]
        %v1164 = vld [vmem:[#allocation6 + $0x8] sm:$0xff]
        %v1165 = vld [vmem:[#allocation2] sm:$0x3]
        %v1166 = vld [vmem:[%s6] sm:$0xf]
        %v1167 = vld [vmem:[%s6 + $0x4] sm:$0xf]
        %v1168 = vpack.c.bf16 %v1165, %v1165
        %v1171 = vunpack.c.l.b16 %v1166
        %v1172 = vunpack.c.l.b16 %v1167
        %v1173 = vpack.c.b16 %v1172, %v1171
        %vm1174 = vcmask 15360
        %v1176 = vsel %vm1174, %v1173, 0
        %vm1178 = vcmask 1040384
        %v1180 = vsel %vm1178, %v1168, 0
        %1182 = vmatprep.subr.bf16.mxu0 0
        %1183 = vmatpush1.bf16.msra.mxu0 %v1180
        %1184 = vmatprep.subr.bf16.mxu0 0
        %1185 = vmatpush1.bf16.msra.mxu0 0
        %1186 = vmatprep.subr.bf16.mxu0 0
        %1187 = vmatpush1.bf16.msra.mxu0 0
        %1188 = vmatprep.subr.bf16.mxu0 0
        %1189 = vmatpush1.bf16.msra.mxu0 0
        %1190 = vmatprep.subr.bf16.mxu0 0
        %1191 = vmatpush1.bf16.msra.mxu0 0
        %1192 = vmatprep.subr.bf16.mxu0 0
        %1193 = vmatpush1.bf16.msra.mxu0 0
        %1194 = vmatprep.subr.bf16.mxu0 0
        %1195 = vmatpush1.bf16.msra.mxu0 0
        %1196 = vmatprep.subr.bf16.mxu0 0
        %1197 = vmatpush1.bf16.msra.mxu0 0
        %1198 = vmatprep.subr.bf16.mxu0 0
        %1199 = vmatpush1.bf16.msra.mxu0 0
        %1200 = vmatprep.subr.bf16.mxu0 0
        %1201 = vmatpush1.bf16.msra.mxu0 0
        %1202 = vmatprep.subr.bf16.mxu0 0
        %1203 = vmatpush1.bf16.msra.mxu0 0
        %1204 = vmatprep.subr.bf16.mxu0 0
        %1205 = vmatpush1.bf16.msra.mxu0 0
        %1206 = vmatprep.subr.bf16.mxu0 0
        %1207 = vmatpush1.bf16.msra.mxu0 0
        %1208 = vmatprep.subr.bf16.mxu0 0
        %1209 = vmatpush1.bf16.msra.mxu0 0
        %1210 = vmatprep.subr.bf16.mxu0 0
        %1211 = vmatpush1.bf16.msra.mxu0 0
        %1212 = vmatprep.subr.bf16.mxu0 0
        %1213 = vmatpush1.bf16.msra.mxu0 0
        %1214 = vmatprep.mubr.bf16.mxu0 0
        %1215 = vmatmul.mubr.bf16.gmra.mrb[0].mxu0 %v1176
        %v1216 = vpop.f32.mrb[0].mxu0
        %v1217 = vadd.f32 0.0, %v1216
        %v1218 = vpop.f32.mrb[0].mxu0
        %v1219 = vpop.f32.mrb[0].mxu0
        %v1220 = vadd.f32 0.0, %v1219
        %v1221 = vpop.f32.mrb[0].mxu0
        %1222 = vdwg.mxu0
        %v1223 = vadd.f32 %v1163, %v1217
        %v1224 = vadd.f32 %v1164, %v1220
        %v1225 = vpack.c.bf16 %v1224, %v1223
        %v1226 = vld [vmem:[%s7] sm:$0xf]
        %v1227 = vld [vmem:[%s7 + $0x4] sm:$0xf]
        %v1228 = vld [vmem:[%s7 + $0x8] sm:$0xf]
        %v1229 = vld [vmem:[%s7 + $0xc] sm:$0xf]
        %v1230 = vld [vmem:[%s1062] sm:$0xf]
        %v1231 = vld [vmem:[%s1062 + $0x4] sm:$0xf]
        %v1232 = vld [vmem:[%s1062 + $0x8] sm:$0xf]
        %v1237 = vunpack.c.l.b16 %v1226
        %v1238 = vunpack.c.l.b16 %v1227
        %v1239 = vunpack.c.l.b16 %v1228
        %v1240 = vunpack.c.l.b16 %v1229
        %v1241 = vpack.c.b16 %v1238, %v1237
        %v1242 = vpack.c.b16 %v1240, %v1239
        %v1246 = vunpack.c.l.b16 %v1230
        %v1247 = vunpack.c.l.b16 %v1231
        %v1248 = vunpack.c.l.b16 %v1232
        %v1249 = vpack.c.b16 %v1247, %v1246
        %v1250 = vpack.c.b16 %v1248, %v1248
        %vm1252 = vcmask 195584
        %v1254 = vsel %vm1252, %v1241, 0
        %v1257 = vsel %vm1252, %v1242, 0
        %vm1259 = vcmask 1043456
        %v1261 = vsel %vm1259, %v1250, 0
        %1263 = vmatprep.subr.bf16.mxu0 0
        %1264 = vmatpush1.bf16.msra.mxu0 %v1249
        %1265 = vmatprep.subr.bf16.mxu0 0
        %1266 = vmatpush1.bf16.msra.mxu0 %v1261
        %1267 = vmatprep.subr.bf16.mxu0 0
        %1268 = vmatpush1.bf16.msra.mxu0 0
        %1269 = vmatprep.subr.bf16.mxu0 0
        %1270 = vmatpush1.bf16.msra.mxu0 0
        %1271 = vmatprep.subr.bf16.mxu0 0
        %1272 = vmatpush1.bf16.msra.mxu0 0
        %1273 = vmatprep.subr.bf16.mxu0 0
        %1274 = vmatpush1.bf16.msra.mxu0 0
        %1275 = vmatprep.subr.bf16.mxu0 0
        %1276 = vmatpush1.bf16.msra.mxu0 0
        %1277 = vmatprep.subr.bf16.mxu0 0
        %1278 = vmatpush1.bf16.msra.mxu0 0
        %1279 = vmatprep.subr.bf16.mxu0 0
        %1280 = vmatpush1.bf16.msra.mxu0 0
        %1281 = vmatprep.subr.bf16.mxu0 0
        %1282 = vmatpush1.bf16.msra.mxu0 0
        %1283 = vmatprep.subr.bf16.mxu0 0
        %1284 = vmatpush1.bf16.msra.mxu0 0
        %1285 = vmatprep.subr.bf16.mxu0 0
        %1286 = vmatpush1.bf16.msra.mxu0 0
        %1287 = vmatprep.subr.bf16.mxu0 0
        %1288 = vmatpush1.bf16.msra.mxu0 0
        %1289 = vmatprep.subr.bf16.mxu0 0
        %1290 = vmatpush1.bf16.msra.mxu0 0
        %1291 = vmatprep.subr.bf16.mxu0 0
        %1292 = vmatpush1.bf16.msra.mxu0 0
        %1293 = vmatprep.subr.bf16.mxu0 0
        %1294 = vmatpush1.bf16.msra.mxu0 0
        %1295 = vmatprep.mubr.bf16.mxu0 0
        %1296 = vmatmul.mubr.bf16.gmra.mrb[0].mxu0 %v1254
        %v1297 = vpop.f32.mrb[0].mxu0
        %v1298 = vadd.f32 0.0, %v1297
        %v1299 = vpop.f32.mrb[0].mxu0
        %v1300 = vpop.f32.mrb[0].mxu0
        %v1301 = vadd.f32 0.0, %v1300
        %v1302 = vpop.f32.mrb[0].mxu0
        %1303 = vmatprep.mubr.bf16.mxu0 0
        %1304 = vmatmul.mubr.bf16.gmra.mrb[0].mxu0 %v1257
        %v1305 = vpop.f32.mrb[0].mxu0
        %v1306 = vadd.f32 0.0, %v1305
        %v1307 = vpop.f32.mrb[0].mxu0
        %v1308 = vpop.f32.mrb[0].mxu0
        %v1309 = vadd.f32 0.0, %v1308
        %v1310 = vpop.f32.mrb[0].mxu0
        %1311 = vdwg.mxu0
        %v1312 = vld [vmem:[%s4] sm:$0xf]
        %v1313 = vld [vmem:[%s4 + $0x4] sm:$0xf]
        %v1314 = vld [vmem:[%s4 + $0x8] sm:$0xf]
        %v1315 = vld [vmem:[%s4 + $0xc] sm:$0xf]
        %v1320 = vunpack.c.l.b16 %v1312
        %v1321 = vunpack.c.l.b16 %v1313
        %v1322 = vunpack.c.l.b16 %v1314
        %v1323 = vunpack.c.l.b16 %v1315
        %v1324 = vpack.c.b16 %v1321, %v1320
        %v1325 = vpack.c.b16 %v1323, %v1322
        %vm1326 = vcmask 130048
        %v1328 = vsel %vm1326, %v1324, 0
        %v1331 = vsel %vm1326, %v1325, 0
        %1333 = vmatprep.subr.bf16.mxu0 0
        %1334 = vmatpush1.bf16.msra.mxu0 %v1225
        %1335 = vmatprep.subr.bf16.mxu0 0
        %1336 = vmatpush1.bf16.msra.mxu0 0
        %1337 = vmatprep.subr.bf16.mxu0 0
        %1338 = vmatpush1.bf16.msra.mxu0 0
        %1339 = vmatprep.subr.bf16.mxu0 0
        %1340 = vmatpush1.bf16.msra.mxu0 0
        %1341 = vmatprep.subr.bf16.mxu0 0
        %1342 = vmatpush1.bf16.msra.mxu0 0
        %1343 = vmatprep.subr.bf16.mxu0 0
        %1344 = vmatpush1.bf16.msra.mxu0 0
        %1345 = vmatprep.subr.bf16.mxu0 0
        %1346 = vmatpush1.bf16.msra.mxu0 0
        %1347 = vmatprep.subr.bf16.mxu0 0
        %1348 = vmatpush1.bf16.msra.mxu0 0
        %1349 = vmatprep.subr.bf16.mxu0 0
        %1350 = vmatpush1.bf16.msra.mxu0 0
        %1351 = vmatprep.subr.bf16.mxu0 0
        %1352 = vmatpush1.bf16.msra.mxu0 0
        %1353 = vmatprep.subr.bf16.mxu0 0
        %1354 = vmatpush1.bf16.msra.mxu0 0
        %1355 = vmatprep.subr.bf16.mxu0 0
        %1356 = vmatpush1.bf16.msra.mxu0 0
        %1357 = vmatprep.subr.bf16.mxu0 0
        %1358 = vmatpush1.bf16.msra.mxu0 0
        %1359 = vmatprep.subr.bf16.mxu0 0
        %1360 = vmatpush1.bf16.msra.mxu0 0
        %1361 = vmatprep.subr.bf16.mxu0 0
        %1362 = vmatpush1.bf16.msra.mxu0 0
        %1363 = vmatprep.subr.bf16.mxu0 0
        %1364 = vmatpush1.bf16.msra.mxu0 0
        %1365 = vmatprep.mubr.bf16.mxu0 0
        %1366 = vmatmul.mubr.bf16.gmra.mrb[0].mxu0 %v1328
        %v1367 = vpop.f32.mrb[0].mxu0
        %v1368 = vadd.f32 %v1298, %v1367
        %v1369 = vpop.f32.mrb[0].mxu0
        %v1370 = vpop.f32.mrb[0].mxu0
        %v1371 = vadd.f32 %v1301, %v1370
        %v1372 = vpop.f32.mrb[0].mxu0
        %1373 = vmatprep.mubr.bf16.mxu0 0
        %1374 = vmatmul.mubr.bf16.gmra.mrb[0].mxu0 %v1331
        %v1375 = vpop.f32.mrb[0].mxu0
        %v1376 = vadd.f32 %v1306, %v1375
        %v1377 = vpop.f32.mrb[0].mxu0
        %v1378 = vpop.f32.mrb[0].mxu0
        %v1379 = vadd.f32 %v1309, %v1378
        %v1380 = vpop.f32.mrb[0].mxu0
        %1381 = vdwg.mxu0
        %v1382 = vmax.f32 %v1368, 0.0
        %v1383 = vmax.f32 %v1371, 0.0
        %v1384 = vmax.f32 %v1376, 0.0
        %v1385 = vmax.f32 %v1379, 0.0
        %v1386 = vld [vmem:[%s5] sm:$0xf]
        %v1387 = vld [vmem:[%s5 + $0x4] sm:$0xf]
        %v1388 = vpack.c.bf16 %v1383, %v1382
        %v1389 = vpack.c.bf16 %v1385, %v1384
        %v1392 = vunpack.c.l.b16 %v1386
        %v1393 = vunpack.c.l.b16 %v1387
        %v1394 = vpack.c.b16 %v1393, %v1392
        %vm1395 = vcmask 261120
        %v1397 = vsel %vm1395, %v1394, 0
        %1399 = vmatprep.subr.bf16.mxu0 0
        %1400 = vmatpush1.bf16.msra.mxu0 %v1388
        %1401 = vmatprep.subr.bf16.mxu0 0
        %1402 = vmatpush1.bf16.msra.mxu0 %v1389
        %1403 = vmatprep.subr.bf16.mxu0 0
        %1404 = vmatpush1.bf16.msra.mxu0 0
        %1405 = vmatprep.subr.bf16.mxu0 0
        %1406 = vmatpush1.bf16.msra.mxu0 0
        %1407 = vmatprep.subr.bf16.mxu0 0
        %1408 = vmatpush1.bf16.msra.mxu0 0
        %1409 = vmatprep.subr.bf16.mxu0 0
        %1410 = vmatpush1.bf16.msra.mxu0 0
        %1411 = vmatprep.subr.bf16.mxu0 0
        %1412 = vmatpush1.bf16.msra.mxu0 0
        %1413 = vmatprep.subr.bf16.mxu0 0
        %1414 = vmatpush1.bf16.msra.mxu0 0
        %1415 = vmatprep.subr.bf16.mxu0 0
        %1416 = vmatpush1.bf16.msra.mxu0 0
        %1417 = vmatprep.subr.bf16.mxu0 0
        %1418 = vmatpush1.bf16.msra.mxu0 0
        %1419 = vmatprep.subr.bf16.mxu0 0
        %1420 = vmatpush1.bf16.msra.mxu0 0
        %1421 = vmatprep.subr.bf16.mxu0 0
        %1422 = vmatpush1.bf16.msra.mxu0 0
        %1423 = vmatprep.subr.bf16.mxu0 0
        %1424 = vmatpush1.bf16.msra.mxu0 0
        %1425 = vmatprep.subr.bf16.mxu0 0
        %1426 = vmatpush1.bf16.msra.mxu0 0
        %1427 = vmatprep.subr.bf16.mxu0 0
        %1428 = vmatpush1.bf16.msra.mxu0 0
        %1429 = vmatprep.subr.bf16.mxu0 0
        %1430 = vmatpush1.bf16.msra.mxu0 0
        %1431 = vmatprep.mubr.bf16.mxu0 0
        %1432 = vmatmul.mubr.bf16.gmra.mrb[0].mxu0 %v1397
        %v1433 = vpop.f32.mrb[0].mxu0
        %v1434 = vadd.f32 0.0, %v1433
        %v1435 = vpop.f32.mrb[0].mxu0
        %v1436 = vpop.f32.mrb[0].mxu0
        %v1437 = vadd.f32 0.0, %v1436
        %v1438 = vpop.f32.mrb[0].mxu0
        %1439 = vdwg.mxu0
        %s1440 = sld [smem:[#allocation3 + %s41]]
        %s1441 = sadd.f32 %s1440, 1.0
        %v1442 = vstv %s1441
        %v1443 = vmul.f32 %v1442, %v1223
        %v1444 = vmul.f32 %v1442, %v1224
        %v1445 = vadd.f32 %v1443, %v1434
        %v1446 = vadd.f32 %v1444, %v1437
        %v1447 = vpack.c.bf16 %v1446, %v1445
        %v1448 = vld [vmem:[%s1067] sm:$0xf]
        %v1449 = vld [vmem:[%s1067 + $0x4] sm:$0xf]
        %v1450 = vld [vmem:[%s1067 + $0x8] sm:$0xf]
        %v1451 = vld [vmem:[%s1067 + $0xc] sm:$0xf]
        %v1452 = vld [vmem:[%s1067 + $0x10] sm:$0xf]
        %v1453 = vld [vmem:[%s1067 + $0x14] sm:$0xf]
        %v1454 = vld [vmem:[%s1067 + $0x18] sm:$0xf]
        %v1455 = vld [vmem:[%s1067 + $0x1c] sm:$0xf]
        %v1456 = vld [vmem:[%s1067 + $0x20] sm:$0xf]
        %v1457 = vld [vmem:[%s1067 + $0x24] sm:$0xf]
        %v1458 = vld [vmem:[%s1067 + $0x28] sm:$0xf]
        %v1459 = vld [vmem:[%s1067 + $0x2c] sm:$0xf]
        %v1460 = vld [vmem:[%s1067 + $0x30] sm:$0xf]
        %v1461 = vld [vmem:[%s1067 + $0x34] sm:$0xf]
        %v1462 = vld [vmem:[%s1067 + $0x38] sm:$0xf]
        %v1463 = vld [vmem:[%s1067 + $0x3c] sm:$0xf]
        %v1464 = vld [vmem:[%s1070] sm:$0x1]
        %v1466 = vlaneseq
        %v1467 = vshrl.u32 %v1466, 7
        %v1468 = vsub.s32 0, %v1467
        %v1469 = vrot.slane %v1464, %v1468
        %v1487 = vunpack.c.l.b16 %v1448
        %v1488 = vunpack.c.l.b16 %v1449
        %v1489 = vunpack.c.l.b16 %v1450
        %v1490 = vunpack.c.l.b16 %v1451
        %v1491 = vunpack.c.l.b16 %v1452
        %v1492 = vunpack.c.l.b16 %v1453
        %v1493 = vunpack.c.l.b16 %v1454
        %v1494 = vunpack.c.l.b16 %v1455
        %v1495 = vunpack.c.l.b16 %v1456
        %v1496 = vunpack.c.l.b16 %v1457
        %v1497 = vunpack.c.l.b16 %v1458
        %v1498 = vunpack.c.l.b16 %v1459
        %v1499 = vunpack.c.l.b16 %v1460
        %v1500 = vunpack.c.l.b16 %v1461
        %v1501 = vunpack.c.l.b16 %v1462
        %v1502 = vunpack.c.l.b16 %v1463
        %v1503 = vpack.c.b16 %v1488, %v1487
        %v1504 = vpack.c.b16 %v1490, %v1489
        %v1505 = vpack.c.b16 %v1492, %v1491
        %v1506 = vpack.c.b16 %v1494, %v1493
        %v1507 = vpack.c.b16 %v1496, %v1495
        %v1508 = vpack.c.b16 %v1498, %v1497
        %v1509 = vpack.c.b16 %v1500, %v1499
        %v1510 = vpack.c.b16 %v1502, %v1501
        %1519 = vmatprep.subr.bf16.mxu0 0
        %1520 = vmatpush1.bf16.msra.mxu0 %v1503
        %1521 = vmatprep.subr.bf16.mxu0 0
        %1522 = vmatpush1.bf16.msra.mxu0 %v1504
        %1523 = vmatprep.subr.bf16.mxu0 0
        %1524 = vmatpush1.bf16.msra.mxu0 %v1505
        %1525 = vmatprep.subr.bf16.mxu0 0
        %1526 = vmatpush1.bf16.msra.mxu0 %v1506
        %1527 = vmatprep.subr.bf16.mxu0 0
        %1528 = vmatpush1.bf16.msra.mxu0 %v1507
        %1529 = vmatprep.subr.bf16.mxu0 0
        %1530 = vmatpush1.bf16.msra.mxu0 %v1508
        %1531 = vmatprep.subr.bf16.mxu0 0
        %1532 = vmatpush1.bf16.msra.mxu0 %v1509
        %1533 = vmatprep.subr.bf16.mxu0 0
        %1534 = vmatpush1.bf16.msra.mxu0 %v1510
        %1535 = vmatprep.subr.bf16.mxu0 0
        %1536 = vmatpush1.bf16.msra.mxu0 0
        %1537 = vmatprep.subr.bf16.mxu0 0
        %1538 = vmatpush1.bf16.msra.mxu0 0
        %1539 = vmatprep.subr.bf16.mxu0 0
        %1540 = vmatpush1.bf16.msra.mxu0 0
        %1541 = vmatprep.subr.bf16.mxu0 0
        %1542 = vmatpush1.bf16.msra.mxu0 0
        %1543 = vmatprep.subr.bf16.mxu0 0
        %1544 = vmatpush1.bf16.msra.mxu0 0
        %1545 = vmatprep.subr.bf16.mxu0 0
        %1546 = vmatpush1.bf16.msra.mxu0 0
        %1547 = vmatprep.subr.bf16.mxu0 0
        %1548 = vmatpush1.bf16.msra.mxu0 0
        %1549 = vmatprep.subr.bf16.mxu0 0
        %1550 = vmatpush1.bf16.msra.mxu0 0
        %1551 = vmatprep.mubr.bf16.mxu0 0
        %1552 = vmatmul.mubr.bf16.gmra.mrb[0].mxu0 %v1447
        %v1553 = vpop.f32.mrb[0].mxu0
        %v1554 = vadd.f32 %v1469, %v1553
        %v1555 = vpop.f32.mrb[0].mxu0
        %v1556 = vpop.f32.mrb[0].mxu0
        %v1557 = vadd.f32 %v1469, %v1556
        %v1558 = vpop.f32.mrb[0].mxu0
        %1559 = vdwg.mxu0
        %v1560 = vld [vmem:[%s1073] sm:$0x1]
        %v1562 = vlaneseq
        %v1563 = vshrl.u32 %v1562, 7
        %v1564 = vsub.s32 0, %v1563
        %v1565 = vrot.slane %v1560, %v1564
        %v1567 = vmul.f32 %v1554, %v1565
        %v1568 = vmul.f32 %v1557, %v1565
        %v1569 = vld [vmem:[%s1076] sm:$0x1]
        %v1571 = vlaneseq
        %v1572 = vshrl.u32 %v1571, 7
        %v1573 = vsub.s32 0, %v1572
        %v1574 = vrot.slane %v1569, %v1573
        %v1576 = vadd.f32 %v1567, %v1574
        %v1577 = vadd.f32 %v1568, %v1574
        %v1578 = vmax.f32 %v1576, 0.0
        %v1579 = vmax.f32 %v1577, 0.0
        %v1580 = vpack.c.bf16 %v1579, %v1578
        %v1581 = vld [vmem:[%s1081] sm:$0xf]
        %v1582 = vld [vmem:[%s1081 + $0x4] sm:$0xf]
        %v1583 = vld [vmem:[%s1081 + $0x8] sm:$0xf]
        %v1584 = vld [vmem:[%s1081 + $0xc] sm:$0xf]
        %v1585 = vld [vmem:[%s1081 + $0x10] sm:$0xf]
        %v1586 = vld [vmem:[%s1081 + $0x14] sm:$0xf]
        %v1587 = vld [vmem:[%s1081 + $0x18] sm:$0xf]
        %v1588 = vld [vmem:[%s1081 + $0x1c] sm:$0xf]
        %v1589 = vld [vmem:[%s1081 + $0x20] sm:$0xf]
        %v1590 = vld [vmem:[%s1081 + $0x24] sm:$0xf]
        %v1591 = vld [vmem:[%s1081 + $0x28] sm:$0xf]
        %v1592 = vld [vmem:[%s1081 + $0x2c] sm:$0xf]
        %v1593 = vld [vmem:[%s1081 + $0x30] sm:$0xf]
        %v1594 = vld [vmem:[%s1081 + $0x34] sm:$0xf]
        %v1595 = vld [vmem:[%s1081 + $0x38] sm:$0xf]
        %v1596 = vld [vmem:[%s1081 + $0x3c] sm:$0xf]
        %v1597 = vld [vmem:[%s1084] sm:$0x1]
        %v1599 = vlaneseq
        %v1600 = vshrl.u32 %v1599, 7
        %v1601 = vsub.s32 0, %v1600
        %v1602 = vrot.slane %v1597, %v1601
        %v1620 = vunpack.c.l.b16 %v1581
        %v1621 = vunpack.c.l.b16 %v1582
        %v1622 = vunpack.c.l.b16 %v1583
        %v1623 = vunpack.c.l.b16 %v1584
        %v1624 = vunpack.c.l.b16 %v1585
        %v1625 = vunpack.c.l.b16 %v1586
        %v1626 = vunpack.c.l.b16 %v1587
        %v1627 = vunpack.c.l.b16 %v1588
        %v1628 = vunpack.c.l.b16 %v1589
        %v1629 = vunpack.c.l.b16 %v1590
        %v1630 = vunpack.c.l.b16 %v1591
        %v1631 = vunpack.c.l.b16 %v1592
        %v1632 = vunpack.c.l.b16 %v1593
        %v1633 = vunpack.c.l.b16 %v1594
        %v1634 = vunpack.c.l.b16 %v1595
        %v1635 = vunpack.c.l.b16 %v1596
        %v1636 = vpack.c.b16 %v1621, %v1620
        %v1637 = vpack.c.b16 %v1623, %v1622
        %v1638 = vpack.c.b16 %v1625, %v1624
        %v1639 = vpack.c.b16 %v1627, %v1626
        %v1640 = vpack.c.b16 %v1629, %v1628
        %v1641 = vpack.c.b16 %v1631, %v1630
        %v1642 = vpack.c.b16 %v1633, %v1632
        %v1643 = vpack.c.b16 %v1635, %v1634
        %1652 = vmatprep.subr.bf16.mxu0 0
        %1653 = vmatpush1.bf16.msra.mxu0 %v1636
        %1654 = vmatprep.subr.bf16.mxu0 0
        %1655 = vmatpush1.bf16.msra.mxu0 %v1637
        %1656 = vmatprep.subr.bf16.mxu0 0
        %1657 = vmatpush1.bf16.msra.mxu0 %v1638
        %1658 = vmatprep.subr.bf16.mxu0 0
        %1659 = vmatpush1.bf16.msra.mxu0 %v1639
        %1660 = vmatprep.subr.bf16.mxu0 0
        %1661 = vmatpush1.bf16.msra.mxu0 %v1640
        %1662 = vmatprep.subr.bf16.mxu0 0
        %1663 = vmatpush1.bf16.msra.mxu0 %v1641
        %1664 = vmatprep.subr.bf16.mxu0 0
        %1665 = vmatpush1.bf16.msra.mxu0 %v1642
        %1666 = vmatprep.subr.bf16.mxu0 0
        %1667 = vmatpush1.bf16.msra.mxu0 %v1643
        %1668 = vmatprep.subr.bf16.mxu0 0
        %1669 = vmatpush1.bf16.msra.mxu0 0
        %1670 = vmatprep.subr.bf16.mxu0 0
        %1671 = vmatpush1.bf16.msra.mxu0 0
        %1672 = vmatprep.subr.bf16.mxu0 0
        %1673 = vmatpush1.bf16.msra.mxu0 0
        %1674 = vmatprep.subr.bf16.mxu0 0
        %1675 = vmatpush1.bf16.msra.mxu0 0
        %1676 = vmatprep.subr.bf16.mxu0 0
        %1677 = vmatpush1.bf16.msra.mxu0 0
        %1678 = vmatprep.subr.bf16.mxu0 0
        %1679 = vmatpush1.bf16.msra.mxu0 0
        %1680 = vmatprep.subr.bf16.mxu0 0
        %1681 = vmatpush1.bf16.msra.mxu0 0
        %1682 = vmatprep.subr.bf16.mxu0 0
        %1683 = vmatpush1.bf16.msra.mxu0 0
        %1684 = vmatprep.mubr.bf16.mxu0 0
        %1685 = vmatmul.mubr.bf16.gmra.mrb[0].mxu0 %v1580
        %v1686 = vpop.f32.mrb[0].mxu0
        %v1687 = vadd.f32 %v1602, %v1686
        %v1688 = vpop.f32.mrb[0].mxu0
        %v1689 = vpop.f32.mrb[0].mxu0
        %v1690 = vadd.f32 %v1602, %v1689
        %v1691 = vpop.f32.mrb[0].mxu0
        %1692 = vdwg.mxu0
        %v1693 = vld [vmem:[%s1087] sm:$0x1]
        %v1695 = vlaneseq
        %v1696 = vshrl.u32 %v1695, 7
        %v1697 = vsub.s32 0, %v1696
        %v1698 = vrot.slane %v1693, %v1697
        %v1700 = vmul.f32 %v1687, %v1698
        %v1701 = vmul.f32 %v1690, %v1698
        %v1702 = vld [vmem:[%s1090] sm:$0x1]
        %v1704 = vlaneseq
        %v1705 = vshrl.u32 %v1704, 7
        %v1706 = vsub.s32 0, %v1705
        %v1707 = vrot.slane %v1702, %v1706
        %v1709 = vadd.f32 %v1700, %v1707
        %v1710 = vadd.f32 %v1701, %v1707
        %v1711 = vmax.f32 %v1709, 0.0
        %v1712 = vmax.f32 %v1710, 0.0
        %s1713 = scalar_select %p1152, 1, 0
        %v1714 = vstv %s1713
        %vm1715 = vcmp.eq.s32.totalorder %v1714, 1
        %v1716 = vsel %vm1715, %v1709, %v1711
        %v1717 = vsel %vm1715, %v1710, %v1712
        %v1718 = vadd.f32 %v1716, %v1223
        %v1719 = vadd.f32 %v1717, %v1224
        %1720 = vst [vmem:[#allocation6] sm:$0xff] %v1718
        %1721 = vst [vmem:[#allocation6 + $0x8] sm:$0xff] %v1719
        %p1722 = scmp.lt.s32.totalorder %s41, 2
        // Predicated region
        $region129: #{gnn_forward.1} parent=119 // pred_check
          %p1723 = pneg %p1722
        $region130: #{gnn_forward.1} parent=119 // pred_check_branch
          %1725 = sbr.rel (%p1723) target = $region132
        $region131: #{gnn_forward.1} parent=119 // pred_region
          %1727 = vxpose.xlu0.c.b16.start [1/8] %v1173, 128
          %1728 = vxpose.xlu0.c.b16.cont [2/8] 0, 128
          %1729 = vxpose.xlu0.c.b16.cont [3/8] 0, 128
          %1730 = vxpose.xlu0.c.b16.cont [4/8] 0, 128
          %1731 = vxpose.xlu0.c.b16.cont [5/8] 0, 128
          %1732 = vxpose.xlu0.c.b16.cont [6/8] 0, 128
          %1733 = vxpose.xlu0.c.b16.cont [7/8] 0, 128
          %1734 = vxpose.xlu0.c.b16.end [8/8] 0, 128
          %v1735 = vpop.trf.xlu0
          %v1736 = vpop.trf.xlu0
          %v1737 = vpop.trf.xlu0
          %v1738 = vpop.trf.xlu0
          %v1739 = vpop.trf.xlu0
          %v1740 = vpop.trf.xlu0
          %v1741 = vpop.trf.xlu0
          %v1742 = vpop.trf.xlu0
          %v1744 = vsel %vm1326, %v1735, 0
          %1746 = vmatprep.subr.bf16.mxu0 0
          %1747 = vmatpush1.bf16.msra.mxu0 %v1225
          %1748 = vmatprep.subr.bf16.mxu0 0
          %1749 = vmatpush1.bf16.msra.mxu0 0
          %1750 = vmatprep.subr.bf16.mxu0 0
          %1751 = vmatpush1.bf16.msra.mxu0 0
          %1752 = vmatprep.subr.bf16.mxu0 0
          %1753 = vmatpush1.bf16.msra.mxu0 0
          %1754 = vmatprep.subr.bf16.mxu0 0
          %1755 = vmatpush1.bf16.msra.mxu0 0
          %1756 = vmatprep.subr.bf16.mxu0 0
          %1757 = vmatpush1.bf16.msra.mxu0 0
          %1758 = vmatprep.subr.bf16.mxu0 0
          %1759 = vmatpush1.bf16.msra.mxu0 0
          %1760 = vmatprep.subr.bf16.mxu0 0
          %1761 = vmatpush1.bf16.msra.mxu0 0
          %1762 = vmatprep.subr.bf16.mxu0 0
          %1763 = vmatpush1.bf16.msra.mxu0 0
          %1764 = vmatprep.subr.bf16.mxu0 0
          %1765 = vmatpush1.bf16.msra.mxu0 0
          %1766 = vmatprep.subr.bf16.mxu0 0
          %1767 = vmatpush1.bf16.msra.mxu0 0
          %1768 = vmatprep.subr.bf16.mxu0 0
          %1769 = vmatpush1.bf16.msra.mxu0 0
          %1770 = vmatprep.subr.bf16.mxu0 0
          %1771 = vmatpush1.bf16.msra.mxu0 0
          %1772 = vmatprep.subr.bf16.mxu0 0
          %1773 = vmatpush1.bf16.msra.mxu0 0
          %1774 = vmatprep.subr.bf16.mxu0 0
          %1775 = vmatpush1.bf16.msra.mxu0 0
          %1776 = vmatprep.subr.bf16.mxu0 0
          %1777 = vmatpush1.bf16.msra.mxu0 0
          %1778 = vmatprep.mubr.bf16.mxu0 0
          %1779 = vmatmul.mubr.bf16.gmra.mrb[0].mxu0 %v1744
          %v1780 = vpop.f32.mrb[0].mxu0
          %v1781 = vadd.f32 %v1165, %v1780
          %v1782 = vpop.f32.mrb[0].mxu0
          %v1783 = vpop.f32.mrb[0].mxu0
          %v1784 = vpop.f32.mrb[0].mxu0
          %1785 = vdwg.mxu0
          %v1786 = vpack.c.bf16 %v1781, %v1781
          %v1787 = vld [vmem:[%s1097] sm:$0xf]
          %v1788 = vld [vmem:[%s1097 + $0x4] sm:$0xf]
          %v1789 = vld [vmem:[%s1097 + $0x8] sm:$0xf]
          %v1790 = vld [vmem:[%s1097 + $0xc] sm:$0xf]
          %v1791 = vld [vmem:[%s1097 + $0x10] sm:$0xf]
          %v1792 = vld [vmem:[%s1097 + $0x14] sm:$0xf]
          %v1793 = vld [vmem:[%s1097 + $0x18] sm:$0xf]
          %v1794 = vld [vmem:[%s1097 + $0x1c] sm:$0xf]
          %v1795 = vld [vmem:[%s1097 + $0x20] sm:$0xf]
          %v1796 = vld [vmem:[%s1097 + $0x24] sm:$0xf]
          %v1797 = vld [vmem:[%s1097 + $0x28] sm:$0xf]
          %v1798 = vld [vmem:[%s1097 + $0x2c] sm:$0xf]
          %v1799 = vld [vmem:[%s1097 + $0x30] sm:$0xf]
          %v1800 = vld [vmem:[%s1097 + $0x34] sm:$0xf]
          %v1801 = vld [vmem:[%s1097 + $0x38] sm:$0xf]
          %v1802 = vld [vmem:[%s1097 + $0x3c] sm:$0xf]
          %v1803 = vld [vmem:[%s1104] sm:$0x1]
          %v1805 = vlaneseq
          %v1806 = vshrl.u32 %v1805, 7
          %v1807 = vsub.s32 0, %v1806
          %v1808 = vrot.slane %v1803, %v1807
          %v1826 = vunpack.c.l.b16 %v1787
          %v1827 = vunpack.c.l.b16 %v1788
          %v1828 = vunpack.c.l.b16 %v1789
          %v1829 = vunpack.c.l.b16 %v1790
          %v1830 = vunpack.c.l.b16 %v1791
          %v1831 = vunpack.c.l.b16 %v1792
          %v1832 = vunpack.c.l.b16 %v1793
          %v1833 = vunpack.c.l.b16 %v1794
          %v1834 = vunpack.c.l.b16 %v1795
          %v1835 = vunpack.c.l.b16 %v1796
          %v1836 = vunpack.c.l.b16 %v1797
          %v1837 = vunpack.c.l.b16 %v1798
          %v1838 = vunpack.c.l.b16 %v1799
          %v1839 = vunpack.c.l.b16 %v1800
          %v1840 = vunpack.c.l.b16 %v1801
          %v1841 = vunpack.c.l.b16 %v1802
          %v1842 = vpack.c.b16 %v1827, %v1826
          %v1843 = vpack.c.b16 %v1829, %v1828
          %v1844 = vpack.c.b16 %v1831, %v1830
          %v1845 = vpack.c.b16 %v1833, %v1832
          %v1846 = vpack.c.b16 %v1835, %v1834
          %v1847 = vpack.c.b16 %v1837, %v1836
          %v1848 = vpack.c.b16 %v1839, %v1838
          %v1849 = vpack.c.b16 %v1841, %v1840
          %1858 = vmatprep.subr.bf16.mxu0 0
          %1859 = vmatpush1.bf16.msra.mxu0 %v1842
          %1860 = vmatprep.subr.bf16.mxu0 0
          %1861 = vmatpush1.bf16.msra.mxu0 %v1843
          %1862 = vmatprep.subr.bf16.mxu0 0
          %1863 = vmatpush1.bf16.msra.mxu0 %v1844
          %1864 = vmatprep.subr.bf16.mxu0 0
          %1865 = vmatpush1.bf16.msra.mxu0 %v1845
          %1866 = vmatprep.subr.bf16.mxu0 0
          %1867 = vmatpush1.bf16.msra.mxu0 %v1846
          %1868 = vmatprep.subr.bf16.mxu0 0
          %1869 = vmatpush1.bf16.msra.mxu0 %v1847
          %1870 = vmatprep.subr.bf16.mxu0 0
          %1871 = vmatpush1.bf16.msra.mxu0 %v1848
          %1872 = vmatprep.subr.bf16.mxu0 0
          %1873 = vmatpush1.bf16.msra.mxu0 %v1849
          %1874 = vmatprep.subr.bf16.mxu0 0
          %1875 = vmatpush1.bf16.msra.mxu0 0
          %1876 = vmatprep.subr.bf16.mxu0 0
          %1877 = vmatpush1.bf16.msra.mxu0 0
          %1878 = vmatprep.subr.bf16.mxu0 0
          %1879 = vmatpush1.bf16.msra.mxu0 0
          %1880 = vmatprep.subr.bf16.mxu0 0
          %1881 = vmatpush1.bf16.msra.mxu0 0
          %1882 = vmatprep.subr.bf16.mxu0 0
          %1883 = vmatpush1.bf16.msra.mxu0 0
          %1884 = vmatprep.subr.bf16.mxu0 0
          %1885 = vmatpush1.bf16.msra.mxu0 0
          %1886 = vmatprep.subr.bf16.mxu0 0
          %1887 = vmatpush1.bf16.msra.mxu0 0
          %1888 = vmatprep.subr.bf16.mxu0 0
          %1889 = vmatpush1.bf16.msra.mxu0 0
          %1890 = vmatprep.mubr.bf16.mxu0 0
          %1891 = vmatmul.mubr.bf16.gmra.mrb[0].mxu0 %v1786
          %v1892 = vpop.f32.mrb[0].mxu0
          %v1893 = vadd.f32 %v1808, %v1892
          %v1894 = vpop.f32.mrb[0].mxu0
          %v1895 = vpop.f32.mrb[0].mxu0
          %v1896 = vpop.f32.mrb[0].mxu0
          %1897 = vdwg.mxu0
          %v1898 = vld [vmem:[%s1111] sm:$0x1]
          %v1900 = vlaneseq
          %v1901 = vshrl.u32 %v1900, 7
          %v1902 = vsub.s32 0, %v1901
          %v1903 = vrot.slane %v1898, %v1902
          %v1905 = vmul.f32 %v1893, %v1903
          %v1906 = vld [vmem:[%s1118] sm:$0x1]
          %v1908 = vlaneseq
          %v1909 = vshrl.u32 %v1908, 7
          %v1910 = vsub.s32 0, %v1909
          %v1911 = vrot.slane %v1906, %v1910
          %v1913 = vadd.f32 %v1905, %v1911
          %v1914 = vmax.f32 %v1913, 0.0
          %v1915 = vpack.c.bf16 %v1914, %v1914
          %v1916 = vld [vmem:[%s1127] sm:$0xf]
          %v1917 = vld [vmem:[%s1127 + $0x4] sm:$0xf]
          %v1918 = vld [vmem:[%s1127 + $0x8] sm:$0xf]
          %v1919 = vld [vmem:[%s1127 + $0xc] sm:$0xf]
          %v1920 = vld [vmem:[%s1127 + $0x10] sm:$0xf]
          %v1921 = vld [vmem:[%s1127 + $0x14] sm:$0xf]
          %v1922 = vld [vmem:[%s1127 + $0x18] sm:$0xf]
          %v1923 = vld [vmem:[%s1127 + $0x1c] sm:$0xf]
          %v1924 = vld [vmem:[%s1127 + $0x20] sm:$0xf]
          %v1925 = vld [vmem:[%s1127 + $0x24] sm:$0xf]
          %v1926 = vld [vmem:[%s1127 + $0x28] sm:$0xf]
          %v1927 = vld [vmem:[%s1127 + $0x2c] sm:$0xf]
          %v1928 = vld [vmem:[%s1127 + $0x30] sm:$0xf]
          %v1929 = vld [vmem:[%s1127 + $0x34] sm:$0xf]
          %v1930 = vld [vmem:[%s1127 + $0x38] sm:$0xf]
          %v1931 = vld [vmem:[%s1127 + $0x3c] sm:$0xf]
          %v1932 = vld [vmem:[%s1134] sm:$0x1]
          %v1934 = vlaneseq
          %v1935 = vshrl.u32 %v1934, 7
          %v1936 = vsub.s32 0, %v1935
          %v1937 = vrot.slane %v1932, %v1936
          %v1955 = vunpack.c.l.b16 %v1916
          %v1956 = vunpack.c.l.b16 %v1917
          %v1957 = vunpack.c.l.b16 %v1918
          %v1958 = vunpack.c.l.b16 %v1919
          %v1959 = vunpack.c.l.b16 %v1920
          %v1960 = vunpack.c.l.b16 %v1921
          %v1961 = vunpack.c.l.b16 %v1922
          %v1962 = vunpack.c.l.b16 %v1923
          %v1963 = vunpack.c.l.b16 %v1924
          %v1964 = vunpack.c.l.b16 %v1925
          %v1965 = vunpack.c.l.b16 %v1926
          %v1966 = vunpack.c.l.b16 %v1927
          %v1967 = vunpack.c.l.b16 %v1928
          %v1968 = vunpack.c.l.b16 %v1929
          %v1969 = vunpack.c.l.b16 %v1930
          %v1970 = vunpack.c.l.b16 %v1931
          %v1971 = vpack.c.b16 %v1956, %v1955
          %v1972 = vpack.c.b16 %v1958, %v1957
          %v1973 = vpack.c.b16 %v1960, %v1959
          %v1974 = vpack.c.b16 %v1962, %v1961
          %v1975 = vpack.c.b16 %v1964, %v1963
          %v1976 = vpack.c.b16 %v1966, %v1965
          %v1977 = vpack.c.b16 %v1968, %v1967
          %v1978 = vpack.c.b16 %v1970, %v1969
          %1987 = vmatprep.subr.bf16.mxu0 0
          %1988 = vmatpush1.bf16.msra.mxu0 %v1971
          %1989 = vmatprep.subr.bf16.mxu0 0
          %1990 = vmatpush1.bf16.msra.mxu0 %v1972
          %1991 = vmatprep.subr.bf16.mxu0 0
          %1992 = vmatpush1.bf16.msra.mxu0 %v1973
          %1993 = vmatprep.subr.bf16.mxu0 0
          %1994 = vmatpush1.bf16.msra.mxu0 %v1974
          %1995 = vmatprep.subr.bf16.mxu0 0
          %1996 = vmatpush1.bf16.msra.mxu0 %v1975
          %1997 = vmatprep.subr.bf16.mxu0 0
          %1998 = vmatpush1.bf16.msra.mxu0 %v1976
          %1999 = vmatprep.subr.bf16.mxu0 0
          %2000 = vmatpush1.bf16.msra.mxu0 %v1977
          %2001 = vmatprep.subr.bf16.mxu0 0
          %2002 = vmatpush1.bf16.msra.mxu0 %v1978
          %2003 = vmatprep.subr.bf16.mxu0 0
          %2004 = vmatpush1.bf16.msra.mxu0 0
          %2005 = vmatprep.subr.bf16.mxu0 0
          %2006 = vmatpush1.bf16.msra.mxu0 0
          %2007 = vmatprep.subr.bf16.mxu0 0
          %2008 = vmatpush1.bf16.msra.mxu0 0
          %2009 = vmatprep.subr.bf16.mxu0 0
          %2010 = vmatpush1.bf16.msra.mxu0 0
          %2011 = vmatprep.subr.bf16.mxu0 0
          %2012 = vmatpush1.bf16.msra.mxu0 0
          %2013 = vmatprep.subr.bf16.mxu0 0
          %2014 = vmatpush1.bf16.msra.mxu0 0
          %2015 = vmatprep.subr.bf16.mxu0 0
          %2016 = vmatpush1.bf16.msra.mxu0 0
          %2017 = vmatprep.subr.bf16.mxu0 0
          %2018 = vmatpush1.bf16.msra.mxu0 0
          %2019 = vmatprep.mubr.bf16.mxu0 0
          %2020 = vmatmul.mubr.bf16.gmra.mrb[0].mxu0 %v1915
          %v2021 = vpop.f32.mrb[0].mxu0
          %v2022 = vadd.f32 %v1937, %v2021
          %v2023 = vpop.f32.mrb[0].mxu0
          %v2024 = vpop.f32.mrb[0].mxu0
          %v2025 = vpop.f32.mrb[0].mxu0
          %2026 = vdwg.mxu0
          %v2027 = vld [vmem:[%s1141] sm:$0x1]
          %v2029 = vlaneseq
          %v2030 = vshrl.u32 %v2029, 7
          %v2031 = vsub.s32 0, %v2030
          %v2032 = vrot.slane %v2027, %v2031
          %v2034 = vmul.f32 %v2022, %v2032
          %v2035 = vld [vmem:[%s1148] sm:$0x1]
          %v2037 = vlaneseq
          %v2038 = vshrl.u32 %v2037, 7
          %v2039 = vsub.s32 0, %v2038
          %v2040 = vrot.slane %v2035, %v2039
          %v2042 = vadd.f32 %v2034, %v2040
          %v2043 = vmax.f32 %v2042, 0.0
          %v2044 = vadd.f32 %v1165, %v2043
          %2045 = vst [vmem:[#allocation2] sm:$0x3] %v2044
        $region132: #{gnn_forward.1} parent=119 // pred_fallthru
          _
        // Predicated region
        $region133: #{gnn_forward.1} parent=119 // pred_check
          %p2046 = pneg %p1152
        $region134: #{gnn_forward.1} parent=119 // pred_check_branch
          %2048 = sbr.rel (%p2046) target = $region136
        $region135: #{gnn_forward.1} parent=119 // pred_region
          %v2049 = vld [vmem:[%s3] sm:$0xff]
          %v2050 = vld [vmem:[%s3 + $0x8] sm:$0xff]
          %vm2051 = vcmp.eq.f32.partialorder %v2049, 0.0
          %vm2052 = vcmp.eq.f32.partialorder %v2050, 0.0
          %v2053 = vsel %vm2051, 1, 0
          %v2054 = vsel %vm2052, 1, 0
          %2055 = vset.pattern.permute.xlu0 0
          %2056 = vperm.xlu0 %2055, %v2053
          %v2057 = vpop.permute.xlu0 %2056
          %2058 = vset.pattern.permute.xlu0 0
          %2059 = vperm.xlu0 %2058, %v2054
          %v2060 = vpop.permute.xlu0 %2059
          %vm2061 = vcmp.eq.s32.totalorder %v2057, 1
          %vm2062 = vcmp.eq.s32.totalorder %v2060, 1
          %v2063 = vsel %vm2061, %v1718, -3.4028235e+38
          %v2064 = vsel %vm2062, %v1719, -3.4028235e+38
          %v2065 = vmax.f32 %v2063, %v2064
          %v2066 = vrot.slane %v2065, 4
          %v2067 = vmax.f32 %v2065, %v2066
          %v2068 = vrot.slane %v2067, 2
          %v2069 = vmax.f32 %v2067, %v2068
          %v2070 = vrot.slane %v2069, 1
          %v2071 = vmax.f32 %v2069, %v2070
          %2072 = vst [vmem:[#allocation7] sm:$0x1] %v2071
          %vm2073 = vcmp.eq.f32.partialorder %v2049, 1.0
          %vm2074 = vcmp.eq.f32.partialorder %v2050, 1.0
          %v2075 = vsel %vm2073, 1, 0
          %v2076 = vsel %vm2074, 1, 0
          %2077 = vset.pattern.permute.xlu0 0
          %2078 = vperm.xlu0 %2077, %v2075
          %v2079 = vpop.permute.xlu0 %2078
          %2080 = vset.pattern.permute.xlu0 0
          %2081 = vperm.xlu0 %2080, %v2076
          %v2082 = vpop.permute.xlu0 %2081
          %vm2083 = vcmp.eq.s32.totalorder %v2079, 1
          %vm2084 = vcmp.eq.s32.totalorder %v2082, 1
          %v2085 = vsel %vm2083, %v1718, -3.4028235e+38
          %v2086 = vsel %vm2084, %v1719, -3.4028235e+38
          %v2087 = vmax.f32 %v2085, %v2086
          %v2088 = vrot.slane %v2087, 4
          %v2089 = vmax.f32 %v2087, %v2088
          %v2090 = vrot.slane %v2089, 2
          %v2091 = vmax.f32 %v2089, %v2090
          %v2092 = vrot.slane %v2091, 1
          %v2093 = vmax.f32 %v2091, %v2092
          %2094 = vst [vmem:[#allocation7 + $0x1] sm:$0x1] %v2093
        $region136: #{gnn_forward.1} parent=119 // pred_fallthru
          _
        // Predicated region
        $region137: #{gnn_forward.1} parent=119 // pred_check
          %p2095 = pneg %p696
        $region138: #{gnn_forward.1} parent=119 // pred_check_branch
          %2097 = sbr.rel (%p2095) target = $region140
        $region139: #{gnn_forward.1} parent=119 // pred_region
          %s2099 = ssub.s32 256, 256
          %2100 = vsyncadd [#allocation4], %s2099
          %s2101 = sshll.u32 [#allocation6], 4
          %s2102 = int_to_ptr.vmem [resolvable:$true] %s2101
          %2107 = dma.vmem_to_hbm [thread:$0]  %s2102, 256, %s25, [#allocation4], 128, 128, 8
        $region140: #{gnn_forward.1} parent=119 // pred_fallthru
          _
        // Predicated region
        $region141: #{gnn_forward.1} parent=119 // pred_check
          %p2108 = pneg %p717
        $region142: #{gnn_forward.1} parent=119 // pred_check_branch
          %2110 = sbr.rel (%p2108) target = $region144
        $region143: #{gnn_forward.1} parent=119 // pred_region
          %s2112 = ssub.s32 32, 32
          %2113 = vsyncadd [#allocation8], %s2112
          %s2115 = sshll.u32 [#allocation7], 4
          %s2116 = int_to_ptr.vmem [resolvable:$true] %s2115
          %2118 = dma.vmem_to_hbm [thread:$0]  %s2116, 32, %s26, [#allocation8]
        $region144: #{gnn_forward.1} parent=119 // pred_fallthru
          _
        // Predicated region
        $region145: #{gnn_forward.1} parent=119 // pred_check
          %p2119 = pneg %p696
        $region146: #{gnn_forward.1} parent=119 // pred_check_branch
          %2121 = sbr.rel (%p2119) target = $region148
        $region147: #{gnn_forward.1} parent=119 // pred_region
          %2122 = dma.done [#allocation4], 256
        $region148: #{gnn_forward.1} parent=119 // pred_fallthru
          _
        // Predicated region
        $region149: #{gnn_forward.1} parent=119 // pred_check
          %p2123 = pneg %p717
        $region150: #{gnn_forward.1} parent=119 // pred_check_branch
          %2125 = sbr.rel (%p2123) target = $region152
        $region151: #{gnn_forward.1} parent=119 // pred_region
          %2126 = dma.done [#allocation8], 32
        $region152: #{gnn_forward.1} parent=119 // pred_fallthru
          _
      $region120: #{gnn_forward.1} parent=5 // pred_fallthru
        _
      %p2127 = scmp.le.s32.totalorder 2, %s36
      // Predicated region
      $region153: #{gnn_forward.1} parent=5 // pred_check
        %p2128 = pneg %p2127
      $region154: #{gnn_forward.1} parent=5 // pred_check_branch
        %2130 = sbr.rel (%p2128) target = $region156
      $region155: #{gnn_forward.1} parent=5 // pred_region
        %s2131 = ssub.s32 %s36, 2
      $region156: #{gnn_forward.1} parent=5 // pred_fallthru
        _
    $region6: #{gnn_forward.1} parent=1 // loop_footer
      %s40 = sadd.s32 1, %s36
    $region7: #{gnn_forward.1} parent=1 // loop_footer_branch
      %35 = sbr.rel target = $region3
    $region8: #{gnn_forward.1} parent=1 // loop_exit
      _
    %2132 = vsyncpa [#allocation4], 1
    %s2133 = scalar_lea.sflag [#allocation4], 1
    %2134 = vsyncpa %s2133, 1
    %2135 = vsyncpa [#allocation8], 1
    %2136 = vsyncpa [#allocation5], 1
    %s2137 = scalar_lea.sflag [#allocation5], 1
    %2138 = vsyncpa %s2137, 1

// kernel: gnn_forward.1
$region0: #{gnn_forward.1}
  #allocation0 [shape = 'u32[]', space=smem, size = 0x4, offset = 0x4, fixed_abs, tag = 'smem constant byte address 0x4 - core index']
  #allocation1 [shape = 'u32[144,128]{1,0:T(1,128)}', space=vmem, size = 0x12000, scoped, tag = 'internal scratch']
  #allocation2 [shape = 'f32[2,128]{1,0:T(2,128)}', space=vmem, size = 0x400, scoped, tag = 'scratch operand']
  %s0 = inlined_call_operand.vmem [shape: f32[3], index: 0, kind: input, shape index: {}]
  %s1 = inlined_call_operand.vmem [shape: f32[16,128], index: 1, kind: input, shape index: {}]
  %s2 = inlined_call_operand.vmem [shape: f32[2,128], index: 2, kind: input, shape index: {}]
  %s3 = inlined_call_operand.vmem [shape: f32[16,1], index: 3, kind: input, shape index: {}]
  %s4 = inlined_call_operand.vmem [shape: bf16[32,16], index: 4, kind: input, shape index: {}]
  %s5 = inlined_call_operand.vmem [shape: bf16[16,32], index: 5, kind: input, shape index: {}]
  %s6 = inlined_call_operand.vmem [shape: bf16[16,2], index: 6, kind: input, shape index: {}]
  %s7 = inlined_call_operand.vmem [shape: bf16[32,24], index: 7, kind: input, shape index: {}]
  %s8 = inlined_call_operand.vmem [shape: bf16[3,24,128], index: 8, kind: input, shape index: {}]
  %s9 = inlined_call_operand.vmem [shape: bf16[3,128,128], index: 9, kind: input, shape index: {}]
  %s10 = inlined_call_operand.vmem [shape: f32[3,1,128], index: 10, kind: input, shape index: {}]
  %s11 = inlined_call_operand.vmem [shape: f32[3,1,128], index: 11, kind: input, shape index: {}]
  %s12 = inlined_call_operand.vmem [shape: f32[3,1,128], index: 12, kind: input, shape index: {}]
  %s13 = inlined_call_operand.vmem [shape: bf16[3,128,128], index: 13, kind: input, shape index: {}]
  %s14 = inlined_call_operand.vmem [shape: f32[3,1,128], index: 14, kind: input, shape index: {}]
  %s15 = inlined_call_operand.vmem [shape: f32[3,1,128], index: 15, kind: input, shape index: {}]
  %s16 = inlined_call_operand.vmem [shape: f32[3,1,128], index: 16, kind: input, shape index: {}]
  %s17 = inlined_call_operand.vmem [shape: bf16[2,128,128], index: 17, kind: input, shape index: {}]
  %s18 = inlined_call_operand.vmem [shape: f32[2,1,128], index: 18, kind: input, shape index: {}]
  %s19 = inlined_call_operand.vmem [shape: f32[2,1,128], index: 19, kind: input, shape index: {}]
  %s20 = inlined_call_operand.vmem [shape: f32[2,1,128], index: 20, kind: input, shape index: {}]
  %s21 = inlined_call_operand.vmem [shape: bf16[2,128,128], index: 21, kind: input, shape index: {}]
  %s22 = inlined_call_operand.vmem [shape: f32[2,1,128], index: 22, kind: input, shape index: {}]
  %s23 = inlined_call_operand.vmem [shape: f32[2,1,128], index: 23, kind: input, shape index: {}]
  %s24 = inlined_call_operand.vmem [shape: f32[2,1,128], index: 24, kind: input, shape index: {}]
  %s25 = inlined_call_operand.hbm [shape: f32[16,128], index: 25, kind: output, shape index: {0}]
  %s26 = inlined_call_operand.hbm [shape: f32[2,128], index: 26, kind: output, shape index: {1}]
  %27 = xla_tuple %s25, %s26
  %s28 = sld [smem:[#allocation0]]
  $region157: #{gnn_forward.1} parent=0
    _
  %s30 = ssub.s32 1, %s28
  %s31 = scalar_select 0, %s30, %s28
  $region1: #{gnn_forward.1} parent=0
    #allocation3 [shape = 'u8[512]{0}', space=smem, size = 0x200, scoped, tag = 'input window, operand 0, single buffered']
    #allocation4 [shape = 's32[2]{0}', space=sflag, size = 0x8, scoped, tag = 'scoped memory for gnn_forward.1']
    #allocation5 [shape = 's32[2]{0}', space=sflag, size = 0x8, scoped, tag = 'scoped memory for gnn_forward.1']
    #allocation6 [shape = 'u8[8192]{0}', space=vmem, size = 0x2000, scoped, tag = 'output window, operand 0, single buffered']
    #allocation7 [shape = 'u8[1024]{0}', space=vmem, size = 0x400, scoped, tag = 'output window, operand 1, single buffered']
    #allocation8 [shape = 's32[1]{0}', space=sflag, size = 0x4, scoped, tag = 'scoped memory for gnn_forward.1']
    %32 = vsyncpa [#allocation5], 0
    %33 = vsyncpa [#allocation4], 0
    %34 = vsyncpa [#allocation8], 0
    loop: start=0, step=1, limit=5
    $region2: #{gnn_forward.1} parent=1 // loop_pre_header
      _
    $region3: #{gnn_forward.1} parent=1 // loop_header
      %s36 = sphi 0, %s40
      %p37 = scmp.ge.s32.totalorder %s36, 5
      %s44 = sphi 0, %s44
      %s46 = sphi 0, %s44
      %s47 = sphi 0, %s46
      %s61 = sphi 0, %s47
      %s65 = sphi 0, %s65
      %s67 = sphi 0, %s65
      %s68 = sphi 0, %s67
      %s82 = sphi 0, %s68
      %s86 = sphi 0, %s86
      %s88 = sphi 0, %s86
      %s89 = sphi 0, %s88
      %s103 = sphi 0, %s89
      %s107 = sphi 0, %s107
      %s109 = sphi 0, %s107
      %s110 = sphi 0, %s109
      %s124 = sphi 0, %s110
      %s128 = sphi 0, %s128
      %s130 = sphi 0, %s128
      %s131 = sphi 0, %s130
      %s145 = sphi 0, %s131
      %s149 = sphi 0, %s149
      %s151 = sphi 0, %s149
      %s152 = sphi 0, %s151
      %s166 = sphi 0, %s152
      %s170 = sphi 0, %s170
      %s172 = sphi 0, %s170
      %s173 = sphi 0, %s172
      %s187 = sphi 0, %s173
      %s191 = sphi 0, %s191
      %s193 = sphi 0, %s191
      %s194 = sphi 0, %s193
      %s208 = sphi 0, %s194
      %s214 = sphi 0, %s216
      %s217 = sphi 0, %s214
      %s218 = sphi 0, %s217
      %s234 = sphi 0, %s218
      %s240 = sphi 0, %s242
      %s243 = sphi 0, %s240
      %s244 = sphi 0, %s243
      %s260 = sphi 0, %s244
      %s266 = sphi 0, %s268
      %s269 = sphi 0, %s266
      %s270 = sphi 0, %s269
      %s286 = sphi 0, %s270
      %s292 = sphi 0, %s294
      %s295 = sphi 0, %s292
      %s296 = sphi 0, %s295
      %s312 = sphi 0, %s296
      %s318 = sphi 0, %s320
      %s321 = sphi 0, %s318
      %s322 = sphi 0, %s321
      %s338 = sphi 0, %s322
      %s344 = sphi 0, %s346
      %s347 = sphi 0, %s344
      %s348 = sphi 0, %s347
      %s364 = sphi 0, %s348
      %s370 = sphi 0, %s372
      %s373 = sphi 0, %s370
      %s374 = sphi 0, %s373
      %s390 = sphi 0, %s374
      %s396 = sphi 0, %s398
      %s399 = sphi 0, %s396
      %s400 = sphi 0, %s399
      %s416 = sphi 0, %s400
      %s422 = sphi 0, %s424
      %s425 = sphi 0, %s422
      %s426 = sphi 0, %s425
      %s442 = sphi 0, %s426
      %s452 = sphi 0, %s454
      %s455 = sphi 0, %s452
      %s456 = sphi 0, %s455
      %s472 = sphi 0, %s456
      %s482 = sphi 0, %s484
      %s485 = sphi 0, %s482
      %s486 = sphi 0, %s485
      %s502 = sphi 0, %s486
      %s512 = sphi 0, %s514
      %s515 = sphi 0, %s512
      %s516 = sphi 0, %s515
      %s532 = sphi 0, %s516
      %s542 = sphi 0, %s544
      %s545 = sphi 0, %s542
      %s546 = sphi 0, %s545
      %s562 = sphi 0, %s546
      %s572 = sphi 0, %s574
      %s575 = sphi 0, %s572
      %s576 = sphi 0, %s575
      %s592 = sphi 0, %s576
      %s602 = sphi 0, %s604
      %s605 = sphi 0, %s602
      %s606 = sphi 0, %s605
      %s622 = sphi 0, %s606
      %s632 = sphi 0, %s634
      %s635 = sphi 0, %s632
      %s636 = sphi 0, %s635
      %s652 = sphi 0, %s636
      %s662 = sphi 0, %s664
      %s665 = sphi 0, %s662
      %s666 = sphi 0, %s665
      %s682 = sphi 0, %s666
      %s686 = sphi 0, %s686
      %s688 = sphi 0, %s686
      %s689 = sphi 0, %s688
      %s703 = sphi 0, %s689
      %s707 = sphi 0, %s707
      %s709 = sphi 0, %s707
      %s710 = sphi 0, %s709
      %s724 = sphi 0, %s710
    $region4: #{gnn_forward.1} parent=1 // loop_header_branch
      %39 = sbr.rel (%p37) target = $region8
    $region5: #{gnn_forward.1} parent=1 // loop_body
      %s41 = ssub.s32 %s36, 1
      %s42 = ssub.s32 %s36, 2
      %s43 = sadd.s32 %s36, 1
      %s45 = sadd.s32 %s44, 1
      %p48 = scmp.eq.s32.totalorder %s36, 2
      %p49 = scmp.ne.s32.totalorder %s44, %s46
      %p50 = scmp.eq.s32.totalorder %s36, 0
      %p51 = por %p49, %p50
      %p52 = scmp.ne.s32.totalorder %s44, %s46
      %p53 = scmp.eq.s32.totalorder %s41, 2
      %p54 = por %p52, %p53
      %p55 = scmp.ne.s32.totalorder %s46, %s47
      %p56 = scmp.eq.s32.totalorder %s41, 0
      %p57 = por %p55, %p56
      %p58 = scmp.ne.s32.totalorder %s46, %s47
      %p59 = scmp.eq.s32.totalorder %s42, 2
      %p60 = por %p58, %p59
      %p62 = scmp.ne.s32.totalorder %s47, %s61
      %p63 = scmp.eq.s32.totalorder %s42, 0
      %p64 = por %p62, %p63
      %s66 = sadd.s32 %s65, 1
      %p69 = scmp.eq.s32.totalorder %s36, 2
      %p70 = scmp.ne.s32.totalorder %s65, %s67
      %p71 = scmp.eq.s32.totalorder %s36, 0
      %p72 = por %p70, %p71
      %p73 = scmp.ne.s32.totalorder %s65, %s67
      %p74 = scmp.eq.s32.totalorder %s41, 2
      %p75 = por %p73, %p74
      %p76 = scmp.ne.s32.totalorder %s67, %s68
      %p77 = scmp.eq.s32.totalorder %s41, 0
      %p78 = por %p76, %p77
      %p79 = scmp.ne.s32.totalorder %s67, %s68
      %p80 = scmp.eq.s32.totalorder %s42, 2
      %p81 = por %p79, %p80
      %p83 = scmp.ne.s32.totalorder %s68, %s82
      %p84 = scmp.eq.s32.totalorder %s42, 0
      %p85 = por %p83, %p84
      %s87 = sadd.s32 %s86, 1
      %p90 = scmp.eq.s32.totalorder %s36, 2
      %p91 = scmp.ne.s32.totalorder %s86, %s88
      %p92 = scmp.eq.s32.totalorder %s36, 0
      %p93 = por %p91, %p92
      %p94 = scmp.ne.s32.totalorder %s86, %s88
      %p95 = scmp.eq.s32.totalorder %s41, 2
      %p96 = por %p94, %p95
      %p97 = scmp.ne.s32.totalorder %s88, %s89
      %p98 = scmp.eq.s32.totalorder %s41, 0
      %p99 = por %p97, %p98
      %p100 = scmp.ne.s32.totalorder %s88, %s89
      %p101 = scmp.eq.s32.totalorder %s42, 2
      %p102 = por %p100, %p101
      %p104 = scmp.ne.s32.totalorder %s89, %s103
      %p105 = scmp.eq.s32.totalorder %s42, 0
      %p106 = por %p104, %p105
      %s108 = sadd.s32 %s107, 1
      %p111 = scmp.eq.s32.totalorder %s36, 2
      %p112 = scmp.ne.s32.totalorder %s107, %s109
      %p113 = scmp.eq.s32.totalorder %s36, 0
      %p114 = por %p112, %p113
      %p115 = scmp.ne.s32.totalorder %s107, %s109
      %p116 = scmp.eq.s32.totalorder %s41, 2
      %p117 = por %p115, %p116
      %p118 = scmp.ne.s32.totalorder %s109, %s110
      %p119 = scmp.eq.s32.totalorder %s41, 0
      %p120 = por %p118, %p119
      %p121 = scmp.ne.s32.totalorder %s109, %s110
      %p122 = scmp.eq.s32.totalorder %s42, 2
      %p123 = por %p121, %p122
      %p125 = scmp.ne.s32.totalorder %s110, %s124
      %p126 = scmp.eq.s32.totalorder %s42, 0
      %p127 = por %p125, %p126
      %s129 = sadd.s32 %s128, 1
      %p132 = scmp.eq.s32.totalorder %s36, 2
      %p133 = scmp.ne.s32.totalorder %s128, %s130
      %p134 = scmp.eq.s32.totalorder %s36, 0
      %p135 = por %p133, %p134
      %p136 = scmp.ne.s32.totalorder %s128, %s130
      %p137 = scmp.eq.s32.totalorder %s41, 2
      %p138 = por %p136, %p137
      %p139 = scmp.ne.s32.totalorder %s130, %s131
      %p140 = scmp.eq.s32.totalorder %s41, 0
      %p141 = por %p139, %p140
      %p142 = scmp.ne.s32.totalorder %s130, %s131
      %p143 = scmp.eq.s32.totalorder %s42, 2
      %p144 = por %p142, %p143
      %p146 = scmp.ne.s32.totalorder %s131, %s145
      %p147 = scmp.eq.s32.totalorder %s42, 0
      %p148 = por %p146, %p147
      %s150 = sadd.s32 %s149, 1
      %p153 = scmp.eq.s32.totalorder %s36, 2
      %p154 = scmp.ne.s32.totalorder %s149, %s151
      %p155 = scmp.eq.s32.totalorder %s36, 0
      %p156 = por %p154, %p155
      %p157 = scmp.ne.s32.totalorder %s149, %s151
      %p158 = scmp.eq.s32.totalorder %s41, 2
      %p159 = por %p157, %p158
      %p160 = scmp.ne.s32.totalorder %s151, %s152
      %p161 = scmp.eq.s32.totalorder %s41, 0
      %p162 = por %p160, %p161
      %p163 = scmp.ne.s32.totalorder %s151, %s152
      %p164 = scmp.eq.s32.totalorder %s42, 2
      %p165 = por %p163, %p164
      %p167 = scmp.ne.s32.totalorder %s152, %s166
      %p168 = scmp.eq.s32.totalorder %s42, 0
      %p169 = por %p167, %p168
      %s171 = sadd.s32 %s170, 1
      %p174 = scmp.eq.s32.totalorder %s36, 2
      %p175 = scmp.ne.s32.totalorder %s170, %s172
      %p176 = scmp.eq.s32.totalorder %s36, 0
      %p177 = por %p175, %p176
      %p178 = scmp.ne.s32.totalorder %s170, %s172
      %p179 = scmp.eq.s32.totalorder %s41, 2
      %p180 = por %p178, %p179
      %p181 = scmp.ne.s32.totalorder %s172, %s173
      %p182 = scmp.eq.s32.totalorder %s41, 0
      %p183 = por %p181, %p182
      %p184 = scmp.ne.s32.totalorder %s172, %s173
      %p185 = scmp.eq.s32.totalorder %s42, 2
      %p186 = por %p184, %p185
      %p188 = scmp.ne.s32.totalorder %s173, %s187
      %p189 = scmp.eq.s32.totalorder %s42, 0
      %p190 = por %p188, %p189
      %s192 = sadd.s32 %s191, 1
      %p195 = scmp.eq.s32.totalorder %s36, 2
      %p196 = scmp.ne.s32.totalorder %s191, %s193
      %p197 = scmp.eq.s32.totalorder %s36, 0
      %p198 = por %p196, %p197
      %p199 = scmp.ne.s32.totalorder %s191, %s193
      %p200 = scmp.eq.s32.totalorder %s41, 2
      %p201 = por %p199, %p200
      %p202 = scmp.ne.s32.totalorder %s193, %s194
      %p203 = scmp.eq.s32.totalorder %s41, 0
      %p204 = por %p202, %p203
      %p205 = scmp.ne.s32.totalorder %s193, %s194
      %p206 = scmp.eq.s32.totalorder %s42, 2
      %p207 = por %p205, %p206
      %p209 = scmp.ne.s32.totalorder %s194, %s208
      %p210 = scmp.eq.s32.totalorder %s42, 0
      %p211 = por %p209, %p210
      %s212 = ssub.s32 %s36, %s43
      %p213 = scmp.eq.s32.totalorder %s212, 0
      %s215 = sadd.s32 %s214, 1
      %s216 = scalar_select %p213, %s214, %s215
      %p219 = pneg %p213
      %p220 = scmp.eq.s32.totalorder %s36, 2
      %p221 = por %p219, %p220
      %p222 = scmp.ne.s32.totalorder %s214, %s217
      %p223 = scmp.eq.s32.totalorder %s36, 0
      %p224 = por %p222, %p223
      %p225 = scmp.ne.s32.totalorder %s214, %s217
      %p226 = scmp.eq.s32.totalorder %s41, 2
      %p227 = por %p225, %p226
      %p228 = scmp.ne.s32.totalorder %s217, %s218
      %p229 = scmp.eq.s32.totalorder %s41, 0
      %p230 = por %p228, %p229
      %p231 = scmp.ne.s32.totalorder %s217, %s218
      %p232 = scmp.eq.s32.totalorder %s42, 2
      %p233 = por %p231, %p232
      %p235 = scmp.ne.s32.totalorder %s218, %s234
      %p236 = scmp.eq.s32.totalorder %s42, 0
      %p237 = por %p235, %p236
      %s238 = ssub.s32 %s36, %s43
      %p239 = scmp.eq.s32.totalorder %s238, 0
      %s241 = sadd.s32 %s240, 1
      %s242 = scalar_select %p239, %s240, %s241
      %p245 = pneg %p239
      %p246 = scmp.eq.s32.totalorder %s36, 2
      %p247 = por %p245, %p246
      %p248 = scmp.ne.s32.totalorder %s240, %s243
      %p249 = scmp.eq.s32.totalorder %s36, 0
      %p250 = por %p248, %p249
      %p251 = scmp.ne.s32.totalorder %s240, %s243
      %p252 = scmp.eq.s32.totalorder %s41, 2
      %p253 = por %p251, %p252
      %p254 = scmp.ne.s32.totalorder %s243, %s244
      %p255 = scmp.eq.s32.totalorder %s41, 0
      %p256 = por %p254, %p255
      %p257 = scmp.ne.s32.totalorder %s243, %s244
      %p258 = scmp.eq.s32.totalorder %s42, 2
      %p259 = por %p257, %p258
      %p261 = scmp.ne.s32.totalorder %s244, %s260
      %p262 = scmp.eq.s32.totalorder %s42, 0
      %p263 = por %p261, %p262
      %s264 = ssub.s32 %s36, %s43
      %p265 = scmp.eq.s32.totalorder %s264, 0
      %s267 = sadd.s32 %s266, 1
      %s268 = scalar_select %p265, %s266, %s267
      %p271 = pneg %p265
      %p272 = scmp.eq.s32.totalorder %s36, 2
      %p273 = por %p271, %p272
      %p274 = scmp.ne.s32.totalorder %s266, %s269
      %p275 = scmp.eq.s32.totalorder %s36, 0
      %p276 = por %p274, %p275
      %p277 = scmp.ne.s32.totalorder %s266, %s269
      %p278 = scmp.eq.s32.totalorder %s41, 2
      %p279 = por %p277, %p278
      %p280 = scmp.ne.s32.totalorder %s269, %s270
      %p281 = scmp.eq.s32.totalorder %s41, 0
      %p282 = por %p280, %p281
      %p283 = scmp.ne.s32.totalorder %s269, %s270
      %p284 = scmp.eq.s32.totalorder %s42, 2
      %p285 = por %p283, %p284
      %p287 = scmp.ne.s32.totalorder %s270, %s286
      %p288 = scmp.eq.s32.totalorder %s42, 0
      %p289 = por %p287, %p288
      %s290 = ssub.s32 %s36, %s43
      %p291 = scmp.eq.s32.totalorder %s290, 0
      %s293 = sadd.s32 %s292, 1
      %s294 = scalar_select %p291, %s292, %s293
      %p297 = pneg %p291
      %p298 = scmp.eq.s32.totalorder %s36, 2
      %p299 = por %p297, %p298
      %p300 = scmp.ne.s32.totalorder %s292, %s295
      %p301 = scmp.eq.s32.totalorder %s36, 0
      %p302 = por %p300, %p301
      %p303 = scmp.ne.s32.totalorder %s292, %s295
      %p304 = scmp.eq.s32.totalorder %s41, 2
      %p305 = por %p303, %p304
      %p306 = scmp.ne.s32.totalorder %s295, %s296
      %p307 = scmp.eq.s32.totalorder %s41, 0
      %p308 = por %p306, %p307
      %p309 = scmp.ne.s32.totalorder %s295, %s296
      %p310 = scmp.eq.s32.totalorder %s42, 2
      %p311 = por %p309, %p310
      %p313 = scmp.ne.s32.totalorder %s296, %s312
      %p314 = scmp.eq.s32.totalorder %s42, 0
      %p315 = por %p313, %p314
      %s316 = ssub.s32 %s36, %s43
      %p317 = scmp.eq.s32.totalorder %s316, 0
      %s319 = sadd.s32 %s318, 1
      %s320 = scalar_select %p317, %s318, %s319
      %p323 = pneg %p317
      %p324 = scmp.eq.s32.totalorder %s36, 2
      %p325 = por %p323, %p324
      %p326 = scmp.ne.s32.totalorder %s318, %s321
      %p327 = scmp.eq.s32.totalorder %s36, 0
      %p328 = por %p326, %p327
      %p329 = scmp.ne.s32.totalorder %s318, %s321
      %p330 = scmp.eq.s32.totalorder %s41, 2
      %p331 = por %p329, %p330
      %p332 = scmp.ne.s32.totalorder %s321, %s322
      %p333 = scmp.eq.s32.totalorder %s41, 0
      %p334 = por %p332, %p333
      %p335 = scmp.ne.s32.totalorder %s321, %s322
      %p336 = scmp.eq.s32.totalorder %s42, 2
      %p337 = por %p335, %p336
      %p339 = scmp.ne.s32.totalorder %s322, %s338
      %p340 = scmp.eq.s32.totalorder %s42, 0
      %p341 = por %p339, %p340
      %s342 = ssub.s32 %s36, %s43
      %p343 = scmp.eq.s32.totalorder %s342, 0
      %s345 = sadd.s32 %s344, 1
      %s346 = scalar_select %p343, %s344, %s345
      %p349 = pneg %p343
      %p350 = scmp.eq.s32.totalorder %s36, 2
      %p351 = por %p349, %p350
      %p352 = scmp.ne.s32.totalorder %s344, %s347
      %p353 = scmp.eq.s32.totalorder %s36, 0
      %p354 = por %p352, %p353
      %p355 = scmp.ne.s32.totalorder %s344, %s347
      %p356 = scmp.eq.s32.totalorder %s41, 2
      %p357 = por %p355, %p356
      %p358 = scmp.ne.s32.totalorder %s347, %s348
      %p359 = scmp.eq.s32.totalorder %s41, 0
      %p360 = por %p358, %p359
      %p361 = scmp.ne.s32.totalorder %s347, %s348
      %p362 = scmp.eq.s32.totalorder %s42, 2
      %p363 = por %p361, %p362
      %p365 = scmp.ne.s32.totalorder %s348, %s364
      %p366 = scmp.eq.s32.totalorder %s42, 0
      %p367 = por %p365, %p366
      %s368 = ssub.s32 %s36, %s43
      %p369 = scmp.eq.s32.totalorder %s368, 0
      %s371 = sadd.s32 %s370, 1
      %s372 = scalar_select %p369, %s370, %s371
      %p375 = pneg %p369
      %p376 = scmp.eq.s32.totalorder %s36, 2
      %p377 = por %p375, %p376
      %p378 = scmp.ne.s32.totalorder %s370, %s373
      %p379 = scmp.eq.s32.totalorder %s36, 0
      %p380 = por %p378, %p379
      %p381 = scmp.ne.s32.totalorder %s370, %s373
      %p382 = scmp.eq.s32.totalorder %s41, 2
      %p383 = por %p381, %p382
      %p384 = scmp.ne.s32.totalorder %s373, %s374
      %p385 = scmp.eq.s32.totalorder %s41, 0
      %p386 = por %p384, %p385
      %p387 = scmp.ne.s32.totalorder %s373, %s374
      %p388 = scmp.eq.s32.totalorder %s42, 2
      %p389 = por %p387, %p388
      %p391 = scmp.ne.s32.totalorder %s374, %s390
      %p392 = scmp.eq.s32.totalorder %s42, 0
      %p393 = por %p391, %p392
      %s394 = ssub.s32 %s36, %s43
      %p395 = scmp.eq.s32.totalorder %s394, 0
      %s397 = sadd.s32 %s396, 1
      %s398 = scalar_select %p395, %s396, %s397
      %p401 = pneg %p395
      %p402 = scmp.eq.s32.totalorder %s36, 2
      %p403 = por %p401, %p402
      %p404 = scmp.ne.s32.totalorder %s396, %s399
      %p405 = scmp.eq.s32.totalorder %s36, 0
      %p406 = por %p404, %p405
      %p407 = scmp.ne.s32.totalorder %s396, %s399
      %p408 = scmp.eq.s32.totalorder %s41, 2
      %p409 = por %p407, %p408
      %p410 = scmp.ne.s32.totalorder %s399, %s400
      %p411 = scmp.eq.s32.totalorder %s41, 0
      %p412 = por %p410, %p411
      %p413 = scmp.ne.s32.totalorder %s399, %s400
      %p414 = scmp.eq.s32.totalorder %s42, 2
      %p415 = por %p413, %p414
      %p417 = scmp.ne.s32.totalorder %s400, %s416
      %p418 = scmp.eq.s32.totalorder %s42, 0
      %p419 = por %p417, %p418
      %s420 = ssub.s32 %s36, %s43
      %p421 = scmp.eq.s32.totalorder %s420, 0
      %s423 = sadd.s32 %s422, 1
      %s424 = scalar_select %p421, %s422, %s423
      %p427 = pneg %p421
      %p428 = scmp.eq.s32.totalorder %s36, 2
      %p429 = por %p427, %p428
      %p430 = scmp.ne.s32.totalorder %s422, %s425
      %p431 = scmp.eq.s32.totalorder %s36, 0
      %p432 = por %p430, %p431
      %p433 = scmp.ne.s32.totalorder %s422, %s425
      %p434 = scmp.eq.s32.totalorder %s41, 2
      %p435 = por %p433, %p434
      %p436 = scmp.ne.s32.totalorder %s425, %s426
      %p437 = scmp.eq.s32.totalorder %s41, 0
      %p438 = por %p436, %p437
      %p439 = scmp.ne.s32.totalorder %s425, %s426
      %p440 = scmp.eq.s32.totalorder %s42, 2
      %p441 = por %p439, %p440
      %p443 = scmp.ne.s32.totalorder %s426, %s442
      %p444 = scmp.eq.s32.totalorder %s42, 0
      %p445 = por %p443, %p444
      %p446 = scmp.lt.s32.totalorder %s36, 1
      %s447 = scalar_select %p446, %s36, 1
      %p448 = scmp.lt.s32.totalorder %s43, 1
      %s449 = scalar_select %p448, %s43, 1
      %s450 = ssub.s32 %s447, %s449
      %p451 = scmp.eq.s32.totalorder %s450, 0
      %s453 = sadd.s32 %s452, 1
      %s454 = scalar_select %p451, %s452, %s453
      %p457 = pneg %p451
      %p458 = scmp.eq.s32.totalorder %s36, 2
      %p459 = por %p457, %p458
      %p460 = scmp.ne.s32.totalorder %s452, %s455
      %p461 = scmp.eq.s32.totalorder %s36, 0
      %p462 = por %p460, %p461
      %p463 = scmp.ne.s32.totalorder %s452, %s455
      %p464 = scmp.eq.s32.totalorder %s41, 2
      %p465 = por %p463, %p464
      %p466 = scmp.ne.s32.totalorder %s455, %s456
      %p467 = scmp.eq.s32.totalorder %s41, 0
      %p468 = por %p466, %p467
      %p469 = scmp.ne.s32.totalorder %s455, %s456
      %p470 = scmp.eq.s32.totalorder %s42, 2
      %p471 = por %p469, %p470
      %p473 = scmp.ne.s32.totalorder %s456, %s472
      %p474 = scmp.eq.s32.totalorder %s42, 0
      %p475 = por %p473, %p474
      %p476 = scmp.lt.s32.totalorder %s36, 1
      %s477 = scalar_select %p476, %s36, 1
      %p478 = scmp.lt.s32.totalorder %s43, 1
      %s479 = scalar_select %p478, %s43, 1
      %s480 = ssub.s32 %s477, %s479
      %p481 = scmp.eq.s32.totalorder %s480, 0
      %s483 = sadd.s32 %s482, 1
      %s484 = scalar_select %p481, %s482, %s483
      %p487 = pneg %p481
      %p488 = scmp.eq.s32.totalorder %s36, 2
      %p489 = por %p487, %p488
      %p490 = scmp.ne.s32.totalorder %s482, %s485
      %p491 = scmp.eq.s32.totalorder %s36, 0
      %p492 = por %p490, %p491
      %p493 = scmp.ne.s32.totalorder %s482, %s485
      %p494 = scmp.eq.s32.totalorder %s41, 2
      %p495 = por %p493, %p494
      %p496 = scmp.ne.s32.totalorder %s485, %s486
      %p497 = scmp.eq.s32.totalorder %s41, 0
      %p498 = por %p496, %p497
      %p499 = scmp.ne.s32.totalorder %s485, %s486
      %p500 = scmp.eq.s32.totalorder %s42, 2
      %p501 = por %p499, %p500
      %p503 = scmp.ne.s32.totalorder %s486, %s502
      %p504 = scmp.eq.s32.totalorder %s42, 0
      %p505 = por %p503, %p504
      %p506 = scmp.lt.s32.totalorder %s36, 1
      %s507 = scalar_select %p506, %s36, 1
      %p508 = scmp.lt.s32.totalorder %s43, 1
      %s509 = scalar_select %p508, %s43, 1
      %s510 = ssub.s32 %s507, %s509
      %p511 = scmp.eq.s32.totalorder %s510, 0
      %s513 = sadd.s32 %s512, 1
      %s514 = scalar_select %p511, %s512, %s513
      %p517 = pneg %p511
      %p518 = scmp.eq.s32.totalorder %s36, 2
      %p519 = por %p517, %p518
      %p520 = scmp.ne.s32.totalorder %s512, %s515
      %p521 = scmp.eq.s32.totalorder %s36, 0
      %p522 = por %p520, %p521
      %p523 = scmp.ne.s32.totalorder %s512, %s515
      %p524 = scmp.eq.s32.totalorder %s41, 2
      %p525 = por %p523, %p524
      %p526 = scmp.ne.s32.totalorder %s515, %s516
      %p527 = scmp.eq.s32.totalorder %s41, 0
      %p528 = por %p526, %p527
      %p529 = scmp.ne.s32.totalorder %s515, %s516
      %p530 = scmp.eq.s32.totalorder %s42, 2
      %p531 = por %p529, %p530
      %p533 = scmp.ne.s32.totalorder %s516, %s532
      %p534 = scmp.eq.s32.totalorder %s42, 0
      %p535 = por %p533, %p534
      %p536 = scmp.lt.s32.totalorder %s36, 1
      %s537 = scalar_select %p536, %s36, 1
      %p538 = scmp.lt.s32.totalorder %s43, 1
      %s539 = scalar_select %p538, %s43, 1
      %s540 = ssub.s32 %s537, %s539
      %p541 = scmp.eq.s32.totalorder %s540, 0
      %s543 = sadd.s32 %s542, 1
      %s544 = scalar_select %p541, %s542, %s543
      %p547 = pneg %p541
      %p548 = scmp.eq.s32.totalorder %s36, 2
      %p549 = por %p547, %p548
      %p550 = scmp.ne.s32.totalorder %s542, %s545
      %p551 = scmp.eq.s32.totalorder %s36, 0
      %p552 = por %p550, %p551
      %p553 = scmp.ne.s32.totalorder %s542, %s545
      %p554 = scmp.eq.s32.totalorder %s41, 2
      %p555 = por %p553, %p554
      %p556 = scmp.ne.s32.totalorder %s545, %s546
      %p557 = scmp.eq.s32.totalorder %s41, 0
      %p558 = por %p556, %p557
      %p559 = scmp.ne.s32.totalorder %s545, %s546
      %p560 = scmp.eq.s32.totalorder %s42, 2
      %p561 = por %p559, %p560
      %p563 = scmp.ne.s32.totalorder %s546, %s562
      %p564 = scmp.eq.s32.totalorder %s42, 0
      %p565 = por %p563, %p564
      %p566 = scmp.lt.s32.totalorder %s36, 1
      %s567 = scalar_select %p566, %s36, 1
      %p568 = scmp.lt.s32.totalorder %s43, 1
      %s569 = scalar_select %p568, %s43, 1
      %s570 = ssub.s32 %s567, %s569
      %p571 = scmp.eq.s32.totalorder %s570, 0
      %s573 = sadd.s32 %s572, 1
      %s574 = scalar_select %p571, %s572, %s573
      %p577 = pneg %p571
      %p578 = scmp.eq.s32.totalorder %s36, 2
      %p579 = por %p577, %p578
      %p580 = scmp.ne.s32.totalorder %s572, %s575
      %p581 = scmp.eq.s32.totalorder %s36, 0
      %p582 = por %p580, %p581
      %p583 = scmp.ne.s32.totalorder %s572, %s575
      %p584 = scmp.eq.s32.totalorder %s41, 2
      %p585 = por %p583, %p584
      %p586 = scmp.ne.s32.totalorder %s575, %s576
      %p587 = scmp.eq.s32.totalorder %s41, 0
      %p588 = por %p586, %p587
      %p589 = scmp.ne.s32.totalorder %s575, %s576
      %p590 = scmp.eq.s32.totalorder %s42, 2
      %p591 = por %p589, %p590
      %p593 = scmp.ne.s32.totalorder %s576, %s592
      %p594 = scmp.eq.s32.totalorder %s42, 0
      %p595 = por %p593, %p594
      %p596 = scmp.lt.s32.totalorder %s36, 1
      %s597 = scalar_select %p596, %s36, 1
      %p598 = scmp.lt.s32.totalorder %s43, 1
      %s599 = scalar_select %p598, %s43, 1
      %s600 = ssub.s32 %s597, %s599
      %p601 = scmp.eq.s32.totalorder %s600, 0
      %s603 = sadd.s32 %s602, 1
      %s604 = scalar_select %p601, %s602, %s603
      %p607 = pneg %p601
      %p608 = scmp.eq.s32.totalorder %s36, 2
      %p609 = por %p607, %p608
      %p610 = scmp.ne.s32.totalorder %s602, %s605
      %p611 = scmp.eq.s32.totalorder %s36, 0
      %p612 = por %p610, %p611
      %p613 = scmp.ne.s32.totalorder %s602, %s605
      %p614 = scmp.eq.s32.totalorder %s41, 2
      %p615 = por %p613, %p614
      %p616 = scmp.ne.s32.totalorder %s605, %s606
      %p617 = scmp.eq.s32.totalorder %s41, 0
      %p618 = por %p616, %p617
      %p619 = scmp.ne.s32.totalorder %s605, %s606
      %p620 = scmp.eq.s32.totalorder %s42, 2
      %p621 = por %p619, %p620
      %p623 = scmp.ne.s32.totalorder %s606, %s622
      %p624 = scmp.eq.s32.totalorder %s42, 0
      %p625 = por %p623, %p624
      %p626 = scmp.lt.s32.totalorder %s36, 1
      %s627 = scalar_select %p626, %s36, 1
      %p628 = scmp.lt.s32.totalorder %s43, 1
      %s629 = scalar_select %p628, %s43, 1
      %s630 = ssub.s32 %s627, %s629
      %p631 = scmp.eq.s32.totalorder %s630, 0
      %s633 = sadd.s32 %s632, 1
      %s634 = scalar_select %p631, %s632, %s633
      %p637 = pneg %p631
      %p638 = scmp.eq.s32.totalorder %s36, 2
      %p639 = por %p637, %p638
      %p640 = scmp.ne.s32.totalorder %s632, %s635
      %p641 = scmp.eq.s32.totalorder %s36, 0
      %p642 = por %p640, %p641
      %p643 = scmp.ne.s32.totalorder %s632, %s635
      %p644 = scmp.eq.s32.totalorder %s41, 2
      %p645 = por %p643, %p644
      %p646 = scmp.ne.s32.totalorder %s635, %s636
      %p647 = scmp.eq.s32.totalorder %s41, 0
      %p648 = por %p646, %p647
      %p649 = scmp.ne.s32.totalorder %s635, %s636
      %p650 = scmp.eq.s32.totalorder %s42, 2
      %p651 = por %p649, %p650
      %p653 = scmp.ne.s32.totalorder %s636, %s652
      %p654 = scmp.eq.s32.totalorder %s42, 0
      %p655 = por %p653, %p654
      %p656 = scmp.lt.s32.totalorder %s36, 1
      %s657 = scalar_select %p656, %s36, 1
      %p658 = scmp.lt.s32.totalorder %s43, 1
      %s659 = scalar_select %p658, %s43, 1
      %s660 = ssub.s32 %s657, %s659
      %p661 = scmp.eq.s32.totalorder %s660, 0
      %s663 = sadd.s32 %s662, 1
      %s664 = scalar_select %p661, %s662, %s663
      %p667 = pneg %p661
      %p668 = scmp.eq.s32.totalorder %s36, 2
      %p669 = por %p667, %p668
      %p670 = scmp.ne.s32.totalorder %s662, %s665
      %p671 = scmp.eq.s32.totalorder %s36, 0
      %p672 = por %p670, %p671
      %p673 = scmp.ne.s32.totalorder %s662, %s665
      %p674 = scmp.eq.s32.totalorder %s41, 2
      %p675 = por %p673, %p674
      %p676 = scmp.ne.s32.totalorder %s665, %s666
      %p677 = scmp.eq.s32.totalorder %s41, 0
      %p678 = por %p676, %p677
      %p679 = scmp.ne.s32.totalorder %s665, %s666
      %p680 = scmp.eq.s32.totalorder %s42, 2
      %p681 = por %p679, %p680
      %p683 = scmp.ne.s32.totalorder %s666, %s682
      %p684 = scmp.eq.s32.totalorder %s42, 0
      %p685 = por %p683, %p684
      %s687 = sadd.s32 %s686, 1
      %p690 = scmp.eq.s32.totalorder %s36, 2
      %p691 = scmp.ne.s32.totalorder %s686, %s688
      %p692 = scmp.eq.s32.totalorder %s36, 0
      %p693 = por %p691, %p692
      %p694 = scmp.ne.s32.totalorder %s686, %s688
      %p695 = scmp.eq.s32.totalorder %s41, 2
      %p696 = por %p694, %p695
      %p697 = scmp.ne.s32.totalorder %s688, %s689
      %p698 = scmp.eq.s32.totalorder %s41, 0
      %p699 = por %p697, %p698
      %p700 = scmp.ne.s32.totalorder %s688, %s689
      %p701 = scmp.eq.s32.totalorder %s42, 2
      %p702 = por %p700, %p701
      %p704 = scmp.ne.s32.totalorder %s689, %s703
      %p705 = scmp.eq.s32.totalorder %s42, 0
      %p706 = por %p704, %p705
      %s708 = sadd.s32 %s707, 1
      %p711 = scmp.eq.s32.totalorder %s36, 2
      %p712 = scmp.ne.s32.totalorder %s707, %s709
      %p713 = scmp.eq.s32.totalorder %s36, 0
      %p714 = por %p712, %p713
      %p715 = scmp.ne.s32.totalorder %s707, %s709
      %p716 = scmp.eq.s32.totalorder %s41, 2
      %p717 = por %p715, %p716
      %p718 = scmp.ne.s32.totalorder %s709, %s710
      %p719 = scmp.eq.s32.totalorder %s41, 0
      %p720 = por %p718, %p719
      %p721 = scmp.ne.s32.totalorder %s709, %s710
      %p722 = scmp.eq.s32.totalorder %s42, 2
      %p723 = por %p721, %p722
      %p725 = scmp.ne.s32.totalorder %s710, %s724
      %p726 = scmp.eq.s32.totalorder %s42, 0
      %p727 = por %p725, %p726
      %p728 = scmp.le.s32.totalorder 1, %s36
      %p729 = scmp.lt.s32.totalorder %s36, 4
      %p730 = pnand %p728, %p729
      %p731 = pneg %p730
      // Predicated region
      $region9: #{gnn_forward.1} parent=5 // pred_check
        _
      $region10: #{gnn_forward.1} parent=5 // pred_check_branch
        %733 = sbr.rel (%p730) target = $region12
      $region11: #{gnn_forward.1} parent=5 // pred_region
        %s734 = ssub.s32 %s36, 1
        // Predicated region
        $region13: #{gnn_forward.1} parent=11 // pred_check
          %p735 = pneg %p57
        $region14: #{gnn_forward.1} parent=11 // pred_check_branch
          %737 = sbr.rel (%p735) target = $region16
        $region15: #{gnn_forward.1} parent=11 // pred_region
          %s739 = ssub.s32 16, 16
          %740 = vsyncadd [#allocation5], %s739
          %s742 = sshll.u32 %s0, 4
          %s743 = int_to_ptr.vmem [resolvable:$true] %s742
          %745 = dma.vmem_to_smem %s743, 16, [#allocation3], [#allocation5]
        $region16: #{gnn_forward.1} parent=11 // pred_fallthru
          _
        // Predicated region
        $region17: #{gnn_forward.1} parent=11 // pred_check
          %p746 = pneg %p78
        $region18: #{gnn_forward.1} parent=11 // pred_check_branch
          %748 = sbr.rel (%p746) target = $region20
        $region19: #{gnn_forward.1} parent=11 // pred_region
          _
        $region20: #{gnn_forward.1} parent=11 // pred_fallthru
          _
        // Predicated region
        $region21: #{gnn_forward.1} parent=11 // pred_check
          %p749 = pneg %p99
        $region22: #{gnn_forward.1} parent=11 // pred_check_branch
          %751 = sbr.rel (%p749) target = $region24
        $region23: #{gnn_forward.1} parent=11 // pred_region
          _
        $region24: #{gnn_forward.1} parent=11 // pred_fallthru
          _
        // Predicated region
        $region25: #{gnn_forward.1} parent=11 // pred_check
          %p752 = pneg %p120
        $region26: #{gnn_forward.1} parent=11 // pred_check_branch
          %754 = sbr.rel (%p752) target = $region28
        $region27: #{gnn_forward.1} parent=11 // pred_region
          _
        $region28: #{gnn_forward.1} parent=11 // pred_fallthru
          _
        // Predicated region
        $region29: #{gnn_forward.1} parent=11 // pred_check
          %p755 = pneg %p141
        $region30: #{gnn_forward.1} parent=11 // pred_check_branch
          %757 = sbr.rel (%p755) target = $region32
        $region31: #{gnn_forward.1} parent=11 // pred_region
          _
        $region32: #{gnn_forward.1} parent=11 // pred_fallthru
          _
        // Predicated region
        $region33: #{gnn_forward.1} parent=11 // pred_check
          %p758 = pneg %p162
        $region34: #{gnn_forward.1} parent=11 // pred_check_branch
          %760 = sbr.rel (%p758) target = $region36
        $region35: #{gnn_forward.1} parent=11 // pred_region
          _
        $region36: #{gnn_forward.1} parent=11 // pred_fallthru
          _
        // Predicated region
        $region37: #{gnn_forward.1} parent=11 // pred_check
          %p761 = pneg %p183
        $region38: #{gnn_forward.1} parent=11 // pred_check_branch
          %763 = sbr.rel (%p761) target = $region40
        $region39: #{gnn_forward.1} parent=11 // pred_region
          _
        $region40: #{gnn_forward.1} parent=11 // pred_fallthru
          _
        // Predicated region
        $region41: #{gnn_forward.1} parent=11 // pred_check
          %p764 = pneg %p204
        $region42: #{gnn_forward.1} parent=11 // pred_check_branch
          %766 = sbr.rel (%p764) target = $region44
        $region43: #{gnn_forward.1} parent=11 // pred_region
          _
        $region44: #{gnn_forward.1} parent=11 // pred_fallthru
          _
      $region12: #{gnn_forward.1} parent=5 // pred_fallthru
        _
      %p767 = scmp.lt.s32.totalorder %s36, 3
      // Predicated region
      $region45: #{gnn_forward.1} parent=5 // pred_check
        %p768 = pneg %p767
      $region46: #{gnn_forward.1} parent=5 // pred_check_branch
        %770 = sbr.rel (%p768) target = $region48
      $region47: #{gnn_forward.1} parent=5 // pred_region
        // Predicated region
        $region49: #{gnn_forward.1} parent=47 // pred_check
          %p771 = pneg %p224
        $region50: #{gnn_forward.1} parent=47 // pred_check_branch
          %773 = sbr.rel (%p771) target = $region52
        $region51: #{gnn_forward.1} parent=47 // pred_region
          %p774 = scmp.lt.s32.totalorder %s36, 2
          %s775 = scalar_select %p774, %s36, 2
          %s776 = smul.addr %s775, 3
          %s777 = smul.addr %s776, 4
          %s778 = scalar_lea.vmem %s8, %s777
        $region52: #{gnn_forward.1} parent=47 // pred_fallthru
          _
        // Predicated region
        $region53: #{gnn_forward.1} parent=47 // pred_check
          %p779 = pneg %p250
        $region54: #{gnn_forward.1} parent=47 // pred_check_branch
          %781 = sbr.rel (%p779) target = $region56
        $region55: #{gnn_forward.1} parent=47 // pred_region
          %p782 = scmp.lt.s32.totalorder %s36, 2
          %s783 = scalar_select %p782, %s36, 2
          %s784 = smul.addr %s783, 16
          %s785 = smul.addr %s784, 4
          %s786 = scalar_lea.vmem %s9, %s785
        $region56: #{gnn_forward.1} parent=47 // pred_fallthru
          _
        // Predicated region
        $region57: #{gnn_forward.1} parent=47 // pred_check
          %p787 = pneg %p276
        $region58: #{gnn_forward.1} parent=47 // pred_check_branch
          %789 = sbr.rel (%p787) target = $region60
        $region59: #{gnn_forward.1} parent=47 // pred_region
          %p790 = scmp.lt.s32.totalorder %s36, 2
          %s791 = scalar_select %p790, %s36, 2
          %s792 = scalar_lea.vmem %s10, %s791
        $region60: #{gnn_forward.1} parent=47 // pred_fallthru
          _
        // Predicated region
        $region61: #{gnn_forward.1} parent=47 // pred_check
          %p793 = pneg %p302
        $region62: #{gnn_forward.1} parent=47 // pred_check_branch
          %795 = sbr.rel (%p793) target = $region64
        $region63: #{gnn_forward.1} parent=47 // pred_region
          %p796 = scmp.lt.s32.totalorder %s36, 2
          %s797 = scalar_select %p796, %s36, 2
          %s798 = scalar_lea.vmem %s11, %s797
        $region64: #{gnn_forward.1} parent=47 // pred_fallthru
          _
        // Predicated region
        $region65: #{gnn_forward.1} parent=47 // pred_check
          %p799 = pneg %p328
        $region66: #{gnn_forward.1} parent=47 // pred_check_branch
          %801 = sbr.rel (%p799) target = $region68
        $region67: #{gnn_forward.1} parent=47 // pred_region
          %p802 = scmp.lt.s32.totalorder %s36, 2
          %s803 = scalar_select %p802, %s36, 2
          %s804 = scalar_lea.vmem %s12, %s803
        $region68: #{gnn_forward.1} parent=47 // pred_fallthru
          _
        // Predicated region
        $region69: #{gnn_forward.1} parent=47 // pred_check
          %p805 = pneg %p354
        $region70: #{gnn_forward.1} parent=47 // pred_check_branch
          %807 = sbr.rel (%p805) target = $region72
        $region71: #{gnn_forward.1} parent=47 // pred_region
          %p808 = scmp.lt.s32.totalorder %s36, 2
          %s809 = scalar_select %p808, %s36, 2
          %s810 = smul.addr %s809, 16
          %s811 = smul.addr %s810, 4
          %s812 = scalar_lea.vmem %s13, %s811
        $region72: #{gnn_forward.1} parent=47 // pred_fallthru
          _
        // Predicated region
        $region73: #{gnn_forward.1} parent=47 // pred_check
          %p813 = pneg %p380
        $region74: #{gnn_forward.1} parent=47 // pred_check_branch
          %815 = sbr.rel (%p813) target = $region76
        $region75: #{gnn_forward.1} parent=47 // pred_region
          %p816 = scmp.lt.s32.totalorder %s36, 2
          %s817 = scalar_select %p816, %s36, 2
          %s818 = scalar_lea.vmem %s14, %s817
        $region76: #{gnn_forward.1} parent=47 // pred_fallthru
          _
        // Predicated region
        $region77: #{gnn_forward.1} parent=47 // pred_check
          %p819 = pneg %p406
        $region78: #{gnn_forward.1} parent=47 // pred_check_branch
          %821 = sbr.rel (%p819) target = $region80
        $region79: #{gnn_forward.1} parent=47 // pred_region
          %p822 = scmp.lt.s32.totalorder %s36, 2
          %s823 = scalar_select %p822, %s36, 2
          %s824 = scalar_lea.vmem %s15, %s823
        $region80: #{gnn_forward.1} parent=47 // pred_fallthru
          _
        // Predicated region
        $region81: #{gnn_forward.1} parent=47 // pred_check
          %p825 = pneg %p432
        $region82: #{gnn_forward.1} parent=47 // pred_check_branch
          %827 = sbr.rel (%p825) target = $region84
        $region83: #{gnn_forward.1} parent=47 // pred_region
          %p828 = scmp.lt.s32.totalorder %s36, 2
          %s829 = scalar_select %p828, %s36, 2
          %s830 = scalar_lea.vmem %s16, %s829
        $region84: #{gnn_forward.1} parent=47 // pred_fallthru
          _
        // Predicated region
        $region85: #{gnn_forward.1} parent=47 // pred_check
          %p831 = pneg %p462
        $region86: #{gnn_forward.1} parent=47 // pred_check_branch
          %833 = sbr.rel (%p831) target = $region88
        $region87: #{gnn_forward.1} parent=47 // pred_region
          %p834 = scmp.lt.s32.totalorder %s36, 1
          %s835 = scalar_select %p834, %s36, 1
          %p836 = scmp.lt.s32.totalorder %s835, 1
          %s837 = scalar_select %p836, %s835, 1
          %s838 = smul.addr %s837, 16
          %s839 = smul.addr %s838, 4
          %s840 = scalar_lea.vmem %s17, %s839
          %p841 = scmp.lt.s32.totalorder %s36, 1
          %s842 = scalar_select %p841, %s36, 1
        $region88: #{gnn_forward.1} parent=47 // pred_fallthru
          _
        // Predicated region
        $region89: #{gnn_forward.1} parent=47 // pred_check
          %p843 = pneg %p492
        $region90: #{gnn_forward.1} parent=47 // pred_check_branch
          %845 = sbr.rel (%p843) target = $region92
        $region91: #{gnn_forward.1} parent=47 // pred_region
          %p846 = scmp.lt.s32.totalorder %s36, 1
          %s847 = scalar_select %p846, %s36, 1
          %p848 = scmp.lt.s32.totalorder %s847, 1
          %s849 = scalar_select %p848, %s847, 1
          %s850 = scalar_lea.vmem %s18, %s849
          %p851 = scmp.lt.s32.totalorder %s36, 1
          %s852 = scalar_select %p851, %s36, 1
        $region92: #{gnn_forward.1} parent=47 // pred_fallthru
          _
        // Predicated region
        $region93: #{gnn_forward.1} parent=47 // pred_check
          %p853 = pneg %p522
        $region94: #{gnn_forward.1} parent=47 // pred_check_branch
          %855 = sbr.rel (%p853) target = $region96
        $region95: #{gnn_forward.1} parent=47 // pred_region
          %p856 = scmp.lt.s32.totalorder %s36, 1
          %s857 = scalar_select %p856, %s36, 1
          %p858 = scmp.lt.s32.totalorder %s857, 1
          %s859 = scalar_select %p858, %s857, 1
          %s860 = scalar_lea.vmem %s19, %s859
          %p861 = scmp.lt.s32.totalorder %s36, 1
          %s862 = scalar_select %p861, %s36, 1
        $region96: #{gnn_forward.1} parent=47 // pred_fallthru
          _
        // Predicated region
        $region97: #{gnn_forward.1} parent=47 // pred_check
          %p863 = pneg %p552
        $region98: #{gnn_forward.1} parent=47 // pred_check_branch
          %865 = sbr.rel (%p863) target = $region100
        $region99: #{gnn_forward.1} parent=47 // pred_region
          %p866 = scmp.lt.s32.totalorder %s36, 1
          %s867 = scalar_select %p866, %s36, 1
          %p868 = scmp.lt.s32.totalorder %s867, 1
          %s869 = scalar_select %p868, %s867, 1
          %s870 = scalar_lea.vmem %s20, %s869
          %p871 = scmp.lt.s32.totalorder %s36, 1
          %s872 = scalar_select %p871, %s36, 1
        $region100: #{gnn_forward.1} parent=47 // pred_fallthru
          _
        // Predicated region
        $region101: #{gnn_forward.1} parent=47 // pred_check
          %p873 = pneg %p582
        $region102: #{gnn_forward.1} parent=47 // pred_check_branch
          %875 = sbr.rel (%p873) target = $region104
        $region103: #{gnn_forward.1} parent=47 // pred_region
          %p876 = scmp.lt.s32.totalorder %s36, 1
          %s877 = scalar_select %p876, %s36, 1
          %p878 = scmp.lt.s32.totalorder %s877, 1
          %s879 = scalar_select %p878, %s877, 1
          %s880 = smul.addr %s879, 16
          %s881 = smul.addr %s880, 4
          %s882 = scalar_lea.vmem %s21, %s881
          %p883 = scmp.lt.s32.totalorder %s36, 1
          %s884 = scalar_select %p883, %s36, 1
        $region104: #{gnn_forward.1} parent=47 // pred_fallthru
          _
        // Predicated region
        $region105: #{gnn_forward.1} parent=47 // pred_check
          %p885 = pneg %p612
        $region106: #{gnn_forward.1} parent=47 // pred_check_branch
          %887 = sbr.rel (%p885) target = $region108
        $region107: #{gnn_forward.1} parent=47 // pred_region
          %p888 = scmp.lt.s32.totalorder %s36, 1
          %s889 = scalar_select %p888, %s36, 1
          %p890 = scmp.lt.s32.totalorder %s889, 1
          %s891 = scalar_select %p890, %s889, 1
          %s892 = scalar_lea.vmem %s22, %s891
          %p893 = scmp.lt.s32.totalorder %s36, 1
          %s894 = scalar_select %p893, %s36, 1
        $region108: #{gnn_forward.1} parent=47 // pred_fallthru
          _
        // Predicated region
        $region109: #{gnn_forward.1} parent=47 // pred_check
          %p895 = pneg %p642
        $region110: #{gnn_forward.1} parent=47 // pred_check_branch
          %897 = sbr.rel (%p895) target = $region112
        $region111: #{gnn_forward.1} parent=47 // pred_region
          %p898 = scmp.lt.s32.totalorder %s36, 1
          %s899 = scalar_select %p898, %s36, 1
          %p900 = scmp.lt.s32.totalorder %s899, 1
          %s901 = scalar_select %p900, %s899, 1
          %s902 = scalar_lea.vmem %s23, %s901
          %p903 = scmp.lt.s32.totalorder %s36, 1
          %s904 = scalar_select %p903, %s36, 1
        $region112: #{gnn_forward.1} parent=47 // pred_fallthru
          _
        // Predicated region
        $region113: #{gnn_forward.1} parent=47 // pred_check
          %p905 = pneg %p672
        $region114: #{gnn_forward.1} parent=47 // pred_check_branch
          %907 = sbr.rel (%p905) target = $region116
        $region115: #{gnn_forward.1} parent=47 // pred_region
          %p908 = scmp.lt.s32.totalorder %s36, 1
          %s909 = scalar_select %p908, %s36, 1
          %p910 = scmp.lt.s32.totalorder %s909, 1
          %s911 = scalar_select %p910, %s909, 1
          %s912 = scalar_lea.vmem %s24, %s911
          %p913 = scmp.lt.s32.totalorder %s36, 1
          %s914 = scalar_select %p913, %s36, 1
        $region116: #{gnn_forward.1} parent=47 // pred_fallthru
          _
      $region48: #{gnn_forward.1} parent=5 // pred_fallthru
        _
      %p915 = scmp.le.s32.totalorder 1, %s36
      %p916 = scmp.lt.s32.totalorder %s36, 4
      %p917 = pnand %p915, %p916
      %p918 = pneg %p917
      // Predicated region
      $region117: #{gnn_forward.1} parent=5 // pred_check
        _
      $region118: #{gnn_forward.1} parent=5 // pred_check_branch
        %920 = sbr.rel (%p917) target = $region120
      $region119: #{gnn_forward.1} parent=5 // pred_region
        %s921 = ssub.s32 %s36, 1
        // Predicated region
        $region121: #{gnn_forward.1} parent=119 // pred_check
          %p922 = pneg %p57
        $region122: #{gnn_forward.1} parent=119 // pred_check_branch
          %924 = sbr.rel (%p922) target = $region124
        $region123: #{gnn_forward.1} parent=119 // pred_region
          %925 = dma.done [#allocation5], 16
        $region124: #{gnn_forward.1} parent=119 // pred_fallthru
          _
        %926 = sfence
        %p927 = pneg %p57
        %p928 = pneg %p54
        %p929 = pneg %p78
        %p930 = pneg %p75
        %p931 = pneg %p99
        %p932 = pneg %p96
        %p933 = pneg %p120
        %p934 = pneg %p117
        %p935 = pneg %p141
        %p936 = pneg %p138
        %p937 = pneg %p162
        %p938 = pneg %p159
        %p939 = pneg %p183
        %p940 = pneg %p180
        %p941 = pneg %p204
        %p942 = pneg %p201
        %p943 = scmp.lt.s32.totalorder %s41, 2
        %s944 = scalar_select %p943, %s41, 2
        %s945 = smul.addr %s944, 3
        %s946 = smul.addr %s945, 4
        %s947 = scalar_lea.vmem %s8, %s946
        %p948 = pneg %p230
        %p949 = pneg %p227
        %p950 = scmp.lt.s32.totalorder %s41, 2
        %s951 = scalar_select %p950, %s41, 2
        %s952 = smul.addr %s951, 16
        %s953 = smul.addr %s952, 4
        %s954 = scalar_lea.vmem %s9, %s953
        %p955 = pneg %p256
        %p956 = pneg %p253
        %p957 = scmp.lt.s32.totalorder %s41, 2
        %s958 = scalar_select %p957, %s41, 2
        %s959 = scalar_lea.vmem %s10, %s958
        %p960 = pneg %p282
        %p961 = pneg %p279
        %p962 = scmp.lt.s32.totalorder %s41, 2
        %s963 = scalar_select %p962, %s41, 2
        %s964 = scalar_lea.vmem %s11, %s963
        %p965 = pneg %p308
        %p966 = pneg %p305
        %p967 = scmp.lt.s32.totalorder %s41, 2
        %s968 = scalar_select %p967, %s41, 2
        %s969 = scalar_lea.vmem %s12, %s968
        %p970 = pneg %p334
        %p971 = pneg %p331
        %p972 = scmp.lt.s32.totalorder %s41, 2
        %s973 = scalar_select %p972, %s41, 2
        %s974 = smul.addr %s973, 16
        %s975 = smul.addr %s974, 4
        %s976 = scalar_lea.vmem %s13, %s975
        %p977 = pneg %p360
        %p978 = pneg %p357
        %p979 = scmp.lt.s32.totalorder %s41, 2
        %s980 = scalar_select %p979, %s41, 2
        %s981 = scalar_lea.vmem %s14, %s980
        %p982 = pneg %p386
        %p983 = pneg %p383
        %p984 = scmp.lt.s32.totalorder %s41, 2
        %s985 = scalar_select %p984, %s41, 2
        %s986 = scalar_lea.vmem %s15, %s985
        %p987 = pneg %p412
        %p988 = pneg %p409
        %p989 = scmp.lt.s32.totalorder %s41, 2
        %s990 = scalar_select %p989, %s41, 2
        %s991 = scalar_lea.vmem %s16, %s990
        %p992 = pneg %p438
        %p993 = pneg %p435
        %p994 = scmp.lt.s32.totalorder %s41, 1
        %s995 = scalar_select %p994, %s41, 1
        %p996 = scmp.lt.s32.totalorder %s995, 1
        %s997 = scalar_select %p996, %s995, 1
        %s998 = smul.addr %s997, 16
        %s999 = smul.addr %s998, 4
        %s1000 = scalar_lea.vmem %s17, %s999
        %p1001 = pneg %p468
        %p1002 = pneg %p465
        %p1003 = scmp.lt.s32.totalorder %s41, 1
        %s1004 = scalar_select %p1003, %s41, 1
        %p1005 = scmp.lt.s32.totalorder %s1004, 1
        %s1006 = scalar_select %p1005, %s1004, 1
        %s1007 = scalar_lea.vmem %s18, %s1006
        %p1008 = pneg %p498
        %p1009 = pneg %p495
        %p1010 = scmp.lt.s32.totalorder %s41, 1
        %s1011 = scalar_select %p1010, %s41, 1
        %p1012 = scmp.lt.s32.totalorder %s1011, 1
        %s1013 = scalar_select %p1012, %s1011, 1
        %s1014 = scalar_lea.vmem %s19, %s1013
        %p1015 = pneg %p528
        %p1016 = pneg %p525
        %p1017 = scmp.lt.s32.totalorder %s41, 1
        %s1018 = scalar_select %p1017, %s41, 1
        %p1019 = scmp.lt.s32.totalorder %s1018, 1
        %s1020 = scalar_select %p1019, %s1018, 1
        %s1021 = scalar_lea.vmem %s20, %s1020
        %p1022 = pneg %p558
        %p1023 = pneg %p555
        %p1024 = scmp.lt.s32.totalorder %s41, 1
        %s1025 = scalar_select %p1024, %s41, 1
        %p1026 = scmp.lt.s32.totalorder %s1025, 1
        %s1027 = scalar_select %p1026, %s1025, 1
        %s1028 = smul.addr %s1027, 16
        %s1029 = smul.addr %s1028, 4
        %s1030 = scalar_lea.vmem %s21, %s1029
        %p1031 = pneg %p588
        %p1032 = pneg %p585
        %p1033 = scmp.lt.s32.totalorder %s41, 1
        %s1034 = scalar_select %p1033, %s41, 1
        %p1035 = scmp.lt.s32.totalorder %s1034, 1
        %s1036 = scalar_select %p1035, %s1034, 1
        %s1037 = scalar_lea.vmem %s22, %s1036
        %p1038 = pneg %p618
        %p1039 = pneg %p615
        %p1040 = scmp.lt.s32.totalorder %s41, 1
        %s1041 = scalar_select %p1040, %s41, 1
        %p1042 = scmp.lt.s32.totalorder %s1041, 1
        %s1043 = scalar_select %p1042, %s1041, 1
        %s1044 = scalar_lea.vmem %s23, %s1043
        %p1045 = pneg %p648
        %p1046 = pneg %p645
        %p1047 = scmp.lt.s32.totalorder %s41, 1
        %s1048 = scalar_select %p1047, %s41, 1
        %p1049 = scmp.lt.s32.totalorder %s1048, 1
        %s1050 = scalar_select %p1049, %s1048, 1
        %s1051 = scalar_lea.vmem %s24, %s1050
        %p1052 = pneg %p678
        %p1053 = pneg %p675
        %p1054 = pneg %p699
        %p1055 = pneg %p696
        %p1056 = pneg %p720
        %p1057 = pneg %p717
        %p1058 = scmp.lt.s32.totalorder %s41, 2
        %s1059 = scalar_select %p1058, %s41, 2
        %s1060 = smul.addr %s1059, 3
        %s1061 = smul.addr %s1060, 4
        %s1062 = scalar_lea.vmem %s8, %s1061
        %p1063 = scmp.lt.s32.totalorder %s41, 2
        %s1064 = scalar_select %p1063, %s41, 2
        %s1065 = smul.addr %s1064, 16
        %s1066 = smul.addr %s1065, 4
        %s1067 = scalar_lea.vmem %s9, %s1066
        %p1068 = scmp.lt.s32.totalorder %s41, 2
        %s1069 = scalar_select %p1068, %s41, 2
        %s1070 = scalar_lea.vmem %s10, %s1069
        %p1071 = scmp.lt.s32.totalorder %s41, 2
        %s1072 = scalar_select %p1071, %s41, 2
        %s1073 = scalar_lea.vmem %s11, %s1072
        %p1074 = scmp.lt.s32.totalorder %s41, 2
        %s1075 = scalar_select %p1074, %s41, 2
        %s1076 = scalar_lea.vmem %s12, %s1075
        %p1077 = scmp.lt.s32.totalorder %s41, 2
        %s1078 = scalar_select %p1077, %s41, 2
        %s1079 = smul.addr %s1078, 16
        %s1080 = smul.addr %s1079, 4
        %s1081 = scalar_lea.vmem %s13, %s1080
        %p1082 = scmp.lt.s32.totalorder %s41, 2
        %s1083 = scalar_select %p1082, %s41, 2
        %s1084 = scalar_lea.vmem %s14, %s1083
        %p1085 = scmp.lt.s32.totalorder %s41, 2
        %s1086 = scalar_select %p1085, %s41, 2
        %s1087 = scalar_lea.vmem %s15, %s1086
        %p1088 = scmp.lt.s32.totalorder %s41, 2
        %s1089 = scalar_select %p1088, %s41, 2
        %s1090 = scalar_lea.vmem %s16, %s1089
        %p1091 = scmp.lt.s32.totalorder %s41, 1
        %s1092 = scalar_select %p1091, %s41, 1
        %p1093 = scmp.lt.s32.totalorder %s1092, 1
        %s1094 = scalar_select %p1093, %s1092, 1
        %s1095 = smul.addr %s1094, 16
        %s1096 = smul.addr %s1095, 4
        %s1097 = scalar_lea.vmem %s17, %s1096
        %p1098 = scmp.lt.s32.totalorder %s41, 1
        %s1099 = scalar_select %p1098, %s41, 1
        %p1100 = scmp.lt.s32.totalorder %s41, 1
        %s1101 = scalar_select %p1100, %s41, 1
        %p1102 = scmp.lt.s32.totalorder %s1101, 1
        %s1103 = scalar_select %p1102, %s1101, 1
        %s1104 = scalar_lea.vmem %s18, %s1103
        %p1105 = scmp.lt.s32.totalorder %s41, 1
        %s1106 = scalar_select %p1105, %s41, 1
        %p1107 = scmp.lt.s32.totalorder %s41, 1
        %s1108 = scalar_select %p1107, %s41, 1
        %p1109 = scmp.lt.s32.totalorder %s1108, 1
        %s1110 = scalar_select %p1109, %s1108, 1
        %s1111 = scalar_lea.vmem %s19, %s1110
        %p1112 = scmp.lt.s32.totalorder %s41, 1
        %s1113 = scalar_select %p1112, %s41, 1
        %p1114 = scmp.lt.s32.totalorder %s41, 1
        %s1115 = scalar_select %p1114, %s41, 1
        %p1116 = scmp.lt.s32.totalorder %s1115, 1
        %s1117 = scalar_select %p1116, %s1115, 1
        %s1118 = scalar_lea.vmem %s20, %s1117
        %p1119 = scmp.lt.s32.totalorder %s41, 1
        %s1120 = scalar_select %p1119, %s41, 1
        %p1121 = scmp.lt.s32.totalorder %s41, 1
        %s1122 = scalar_select %p1121, %s41, 1
        %p1123 = scmp.lt.s32.totalorder %s1122, 1
        %s1124 = scalar_select %p1123, %s1122, 1
        %s1125 = smul.addr %s1124, 16
        %s1126 = smul.addr %s1125, 4
        %s1127 = scalar_lea.vmem %s21, %s1126
        %p1128 = scmp.lt.s32.totalorder %s41, 1
        %s1129 = scalar_select %p1128, %s41, 1
        %p1130 = scmp.lt.s32.totalorder %s41, 1
        %s1131 = scalar_select %p1130, %s41, 1
        %p1132 = scmp.lt.s32.totalorder %s1131, 1
        %s1133 = scalar_select %p1132, %s1131, 1
        %s1134 = scalar_lea.vmem %s22, %s1133
        %p1135 = scmp.lt.s32.totalorder %s41, 1
        %s1136 = scalar_select %p1135, %s41, 1
        %p1137 = scmp.lt.s32.totalorder %s41, 1
        %s1138 = scalar_select %p1137, %s41, 1
        %p1139 = scmp.lt.s32.totalorder %s1138, 1
        %s1140 = scalar_select %p1139, %s1138, 1
        %s1141 = scalar_lea.vmem %s23, %s1140
        %p1142 = scmp.lt.s32.totalorder %s41, 1
        %s1143 = scalar_select %p1142, %s41, 1
        %p1144 = scmp.lt.s32.totalorder %s41, 1
        %s1145 = scalar_select %p1144, %s41, 1
        %p1146 = scmp.lt.s32.totalorder %s1145, 1
        %s1147 = scalar_select %p1146, %s1145, 1
        %s1148 = scalar_lea.vmem %s24, %s1147
        %p1149 = scmp.lt.s32.totalorder %s41, 1
        %s1150 = scalar_select %p1149, %s41, 1
        %p1152 = scmp.eq.s32.totalorder %s41, 2
        %p1153 = scmp.eq.s32.totalorder %s41, 0
        // Predicated region
        $region125: #{gnn_forward.1} parent=119 // pred_check
          %p1154 = pneg %p1153
        $region126: #{gnn_forward.1} parent=119 // pred_check_branch
          %1156 = sbr.rel (%p1154) target = $region128
        $region127: #{gnn_forward.1} parent=119 // pred_region
          %v1157 = vld [vmem:[%s1] sm:$0xff]
          %v1158 = vld [vmem:[%s1 + $0x8] sm:$0xff]
          %1159 = vst [vmem:[#allocation6] sm:$0xff] %v1157
          %1160 = vst [vmem:[#allocation6 + $0x8] sm:$0xff] %v1158
          %v1161 = vld [vmem:[%s2] sm:$0x3]
          %1162 = vst [vmem:[#allocation2] sm:$0x3] %v1161
        $region128: #{gnn_forward.1} parent=119 // pred_fallthru
          _
        %v1163 = vld [vmem:[#allocation6] sm:$0xff]
        %v1164 = vld [vmem:[#allocation6 + $0x8] sm:$0xff]
        %v1165 = vld [vmem:[#allocation2] sm:$0x3]
        %v1166 = vld [vmem:[%s6] sm:$0xf]
        %v1167 = vld [vmem:[%s6 + $0x4] sm:$0xf]
        %v1168 = vpack.c.bf16 %v1165, %v1165
        %v1171 = vunpack.c.l.b16 %v1166
        %v1172 = vunpack.c.l.b16 %v1167
        %v1173 = vpack.c.b16 %v1172, %v1171
        %vm1174 = vcmask 15360
        %v1176 = vsel %vm1174, %v1173, 0
        %vm1178 = vcmask 1040384
        %v1180 = vsel %vm1178, %v1168, 0
        %1182 = vmatprep.subr.bf16.mxu0 0
        %1183 = vmatpush1.bf16.msra.mxu0 %v1180
        %1184 = vmatprep.subr.bf16.mxu0 0
        %1185 = vmatpush1.bf16.msra.mxu0 0
        %1186 = vmatprep.subr.bf16.mxu0 0
        %1187 = vmatpush1.bf16.msra.mxu0 0
        %1188 = vmatprep.subr.bf16.mxu0 0
        %1189 = vmatpush1.bf16.msra.mxu0 0
        %1190 = vmatprep.subr.bf16.mxu0 0
        %1191 = vmatpush1.bf16.msra.mxu0 0
        %1192 = vmatprep.subr.bf16.mxu0 0
        %1193 = vmatpush1.bf16.msra.mxu0 0
        %1194 = vmatprep.subr.bf16.mxu0 0
        %1195 = vmatpush1.bf16.msra.mxu0 0
        %1196 = vmatprep.subr.bf16.mxu0 0
        %1197 = vmatpush1.bf16.msra.mxu0 0
        %1198 = vmatprep.subr.bf16.mxu0 0
        %1199 = vmatpush1.bf16.msra.mxu0 0
        %1200 = vmatprep.subr.bf16.mxu0 0
        %1201 = vmatpush1.bf16.msra.mxu0 0
        %1202 = vmatprep.subr.bf16.mxu0 0
        %1203 = vmatpush1.bf16.msra.mxu0 0
        %1204 = vmatprep.subr.bf16.mxu0 0
        %1205 = vmatpush1.bf16.msra.mxu0 0
        %1206 = vmatprep.subr.bf16.mxu0 0
        %1207 = vmatpush1.bf16.msra.mxu0 0
        %1208 = vmatprep.subr.bf16.mxu0 0
        %1209 = vmatpush1.bf16.msra.mxu0 0
        %1210 = vmatprep.subr.bf16.mxu0 0
        %1211 = vmatpush1.bf16.msra.mxu0 0
        %1212 = vmatprep.subr.bf16.mxu0 0
        %1213 = vmatpush1.bf16.msra.mxu0 0
        %1214 = vmatprep.mubr.bf16.mxu0 0
        %1215 = vmatmul.mubr.bf16.gmra.mrb[0].mxu0 %v1176
        %v1216 = vpop.f32.mrb[0].mxu0
        %v1217 = vadd.f32 0.0, %v1216
        %v1218 = vpop.f32.mrb[0].mxu0
        %v1219 = vpop.f32.mrb[0].mxu0
        %v1220 = vadd.f32 0.0, %v1219
        %v1221 = vpop.f32.mrb[0].mxu0
        %1222 = vdwg.mxu0
        %v1223 = vadd.f32 %v1163, %v1217
        %v1224 = vadd.f32 %v1164, %v1220
        %v1225 = vpack.c.bf16 %v1224, %v1223
        %v1226 = vld [vmem:[%s7] sm:$0xf]
        %v1227 = vld [vmem:[%s7 + $0x4] sm:$0xf]
        %v1228 = vld [vmem:[%s7 + $0x8] sm:$0xf]
        %v1229 = vld [vmem:[%s7 + $0xc] sm:$0xf]
        %v1230 = vld [vmem:[%s1062] sm:$0xf]
        %v1231 = vld [vmem:[%s1062 + $0x4] sm:$0xf]
        %v1232 = vld [vmem:[%s1062 + $0x8] sm:$0xf]
        %v1237 = vunpack.c.l.b16 %v1226
        %v1238 = vunpack.c.l.b16 %v1227
        %v1239 = vunpack.c.l.b16 %v1228
        %v1240 = vunpack.c.l.b16 %v1229
        %v1241 = vpack.c.b16 %v1238, %v1237
        %v1242 = vpack.c.b16 %v1240, %v1239
        %v1246 = vunpack.c.l.b16 %v1230
        %v1247 = vunpack.c.l.b16 %v1231
        %v1248 = vunpack.c.l.b16 %v1232
        %v1249 = vpack.c.b16 %v1247, %v1246
        %v1250 = vpack.c.b16 %v1248, %v1248
        %vm1252 = vcmask 195584
        %v1254 = vsel %vm1252, %v1241, 0
        %v1257 = vsel %vm1252, %v1242, 0
        %vm1259 = vcmask 1043456
        %v1261 = vsel %vm1259, %v1250, 0
        %1263 = vmatprep.subr.bf16.mxu0 0
        %1264 = vmatpush1.bf16.msra.mxu0 %v1249
        %1265 = vmatprep.subr.bf16.mxu0 0
        %1266 = vmatpush1.bf16.msra.mxu0 %v1261
        %1267 = vmatprep.subr.bf16.mxu0 0
        %1268 = vmatpush1.bf16.msra.mxu0 0
        %1269 = vmatprep.subr.bf16.mxu0 0
        %1270 = vmatpush1.bf16.msra.mxu0 0
        %1271 = vmatprep.subr.bf16.mxu0 0
        %1272 = vmatpush1.bf16.msra.mxu0 0
        %1273 = vmatprep.subr.bf16.mxu0 0
        %1274 = vmatpush1.bf16.msra.mxu0 0
        %1275 = vmatprep.subr.bf16.mxu0 0
        %1276 = vmatpush1.bf16.msra.mxu0 0
        %1277 = vmatprep.subr.bf16.mxu0 0
        %1278 = vmatpush1.bf16.msra.mxu0 0
        %1279 = vmatprep.subr.bf16.mxu0 0
        %1280 = vmatpush1.bf16.msra.mxu0 0
        %1281 = vmatprep.subr.bf16.mxu0 0
        %1282 = vmatpush1.bf16.msra.mxu0 0
        %1283 = vmatprep.subr.bf16.mxu0 0
        %1284 = vmatpush1.bf16.msra.mxu0 0
        %1285 = vmatprep.subr.bf16.mxu0 0
        %1286 = vmatpush1.bf16.msra.mxu0 0
        %1287 = vmatprep.subr.bf16.mxu0 0
        %1288 = vmatpush1.bf16.msra.mxu0 0
        %1289 = vmatprep.subr.bf16.mxu0 0
        %1290 = vmatpush1.bf16.msra.mxu0 0
        %1291 = vmatprep.subr.bf16.mxu0 0
        %1292 = vmatpush1.bf16.msra.mxu0 0
        %1293 = vmatprep.subr.bf16.mxu0 0
        %1294 = vmatpush1.bf16.msra.mxu0 0
        %1295 = vmatprep.mubr.bf16.mxu0 0
        %1296 = vmatmul.mubr.bf16.gmra.mrb[0].mxu0 %v1254
        %v1297 = vpop.f32.mrb[0].mxu0
        %v1298 = vadd.f32 0.0, %v1297
        %v1299 = vpop.f32.mrb[0].mxu0
        %v1300 = vpop.f32.mrb[0].mxu0
        %v1301 = vadd.f32 0.0, %v1300
        %v1302 = vpop.f32.mrb[0].mxu0
        %1303 = vmatprep.mubr.bf16.mxu0 0
        %1304 = vmatmul.mubr.bf16.gmra.mrb[0].mxu0 %v1257
        %v1305 = vpop.f32.mrb[0].mxu0
        %v1306 = vadd.f32 0.0, %v1305
        %v1307 = vpop.f32.mrb[0].mxu0
        %v1308 = vpop.f32.mrb[0].mxu0
        %v1309 = vadd.f32 0.0, %v1308
        %v1310 = vpop.f32.mrb[0].mxu0
        %1311 = vdwg.mxu0
        %v1312 = vld [vmem:[%s4] sm:$0xf]
        %v1313 = vld [vmem:[%s4 + $0x4] sm:$0xf]
        %v1314 = vld [vmem:[%s4 + $0x8] sm:$0xf]
        %v1315 = vld [vmem:[%s4 + $0xc] sm:$0xf]
        %v1320 = vunpack.c.l.b16 %v1312
        %v1321 = vunpack.c.l.b16 %v1313
        %v1322 = vunpack.c.l.b16 %v1314
        %v1323 = vunpack.c.l.b16 %v1315
        %v1324 = vpack.c.b16 %v1321, %v1320
        %v1325 = vpack.c.b16 %v1323, %v1322
        %vm1326 = vcmask 130048
        %v1328 = vsel %vm1326, %v1324, 0
        %v1331 = vsel %vm1326, %v1325, 0
        %1333 = vmatprep.subr.bf16.mxu0 0
        %1334 = vmatpush1.bf16.msra.mxu0 %v1225
        %1335 = vmatprep.subr.bf16.mxu0 0
        %1336 = vmatpush1.bf16.msra.mxu0 0
        %1337 = vmatprep.subr.bf16.mxu0 0
        %1338 = vmatpush1.bf16.msra.mxu0 0
        %1339 = vmatprep.subr.bf16.mxu0 0
        %1340 = vmatpush1.bf16.msra.mxu0 0
        %1341 = vmatprep.subr.bf16.mxu0 0
        %1342 = vmatpush1.bf16.msra.mxu0 0
        %1343 = vmatprep.subr.bf16.mxu0 0
        %1344 = vmatpush1.bf16.msra.mxu0 0
        %1345 = vmatprep.subr.bf16.mxu0 0
        %1346 = vmatpush1.bf16.msra.mxu0 0
        %1347 = vmatprep.subr.bf16.mxu0 0
        %1348 = vmatpush1.bf16.msra.mxu0 0
        %1349 = vmatprep.subr.bf16.mxu0 0
        %1350 = vmatpush1.bf16.msra.mxu0 0
        %1351 = vmatprep.subr.bf16.mxu0 0
        %1352 = vmatpush1.bf16.msra.mxu0 0
        %1353 = vmatprep.subr.bf16.mxu0 0
        %1354 = vmatpush1.bf16.msra.mxu0 0
        %1355 = vmatprep.subr.bf16.mxu0 0
        %1356 = vmatpush1.bf16.msra.mxu0 0
        %1357 = vmatprep.subr.bf16.mxu0 0
        %1358 = vmatpush1.bf16.msra.mxu0 0
        %1359 = vmatprep.subr.bf16.mxu0 0
        %1360 = vmatpush1.bf16.msra.mxu0 0
        %1361 = vmatprep.subr.bf16.mxu0 0
        %1362 = vmatpush1.bf16.msra.mxu0 0
        %1363 = vmatprep.subr.bf16.mxu0 0
        %1364 = vmatpush1.bf16.msra.mxu0 0
        %1365 = vmatprep.mubr.bf16.mxu0 0
        %1366 = vmatmul.mubr.bf16.gmra.mrb[0].mxu0 %v1328
        %v1367 = vpop.f32.mrb[0].mxu0
        %v1368 = vadd.f32 %v1298, %v1367
        %v1369 = vpop.f32.mrb[0].mxu0
        %v1370 = vpop.f32.mrb[0].mxu0
        %v1371 = vadd.f32 %v1301, %v1370
        %v1372 = vpop.f32.mrb[0].mxu0
        %1373 = vmatprep.mubr.bf16.mxu0 0
        %1374 = vmatmul.mubr.bf16.gmra.mrb[0].mxu0 %v1331
        %v1375 = vpop.f32.mrb[0].mxu0
        %v1376 = vadd.f32 %v1306, %v1375
        %v1377 = vpop.f32.mrb[0].mxu0
        %v1378 = vpop.f32.mrb[0].mxu0
        %v1379 = vadd.f32 %v1309, %v1378
        %v1380 = vpop.f32.mrb[0].mxu0
        %1381 = vdwg.mxu0
        %v1382 = vmax.f32 %v1368, 0.0
        %v1383 = vmax.f32 %v1371, 0.0
        %v1384 = vmax.f32 %v1376, 0.0
        %v1385 = vmax.f32 %v1379, 0.0
        %v1386 = vld [vmem:[%s5] sm:$0xf]
        %v1387 = vld [vmem:[%s5 + $0x4] sm:$0xf]
        %v1388 = vpack.c.bf16 %v1383, %v1382
        %v1389 = vpack.c.bf16 %v1385, %v1384
        %v1392 = vunpack.c.l.b16 %v1386
        %v1393 = vunpack.c.l.b16 %v1387
        %v1394 = vpack.c.b16 %v1393, %v1392
        %vm1395 = vcmask 261120
        %v1397 = vsel %vm1395, %v1394, 0
        %1399 = vmatprep.subr.bf16.mxu0 0
        %1400 = vmatpush1.bf16.msra.mxu0 %v1388
        %1401 = vmatprep.subr.bf16.mxu0 0
        %1402 = vmatpush1.bf16.msra.mxu0 %v1389
        %1403 = vmatprep.subr.bf16.mxu0 0
        %1404 = vmatpush1.bf16.msra.mxu0 0
        %1405 = vmatprep.subr.bf16.mxu0 0
        %1406 = vmatpush1.bf16.msra.mxu0 0
        %1407 = vmatprep.subr.bf16.mxu0 0
        %1408 = vmatpush1.bf16.msra.mxu0 0
        %1409 = vmatprep.subr.bf16.mxu0 0
        %1410 = vmatpush1.bf16.msra.mxu0 0
        %1411 = vmatprep.subr.bf16.mxu0 0
        %1412 = vmatpush1.bf16.msra.mxu0 0
        %1413 = vmatprep.subr.bf16.mxu0 0
        %1414 = vmatpush1.bf16.msra.mxu0 0
        %1415 = vmatprep.subr.bf16.mxu0 0
        %1416 = vmatpush1.bf16.msra.mxu0 0
        %1417 = vmatprep.subr.bf16.mxu0 0
        %1418 = vmatpush1.bf16.msra.mxu0 0
        %1419 = vmatprep.subr.bf16.mxu0 0
        %1420 = vmatpush1.bf16.msra.mxu0 0
        %1421 = vmatprep.subr.bf16.mxu0 0
        %1422 = vmatpush1.bf16.msra.mxu0 0
        %1423 = vmatprep.subr.bf16.mxu0 0
        %1424 = vmatpush1.bf16.msra.mxu0 0
        %1425 = vmatprep.subr.bf16.mxu0 0
        %1426 = vmatpush1.bf16.msra.mxu0 0
        %1427 = vmatprep.subr.bf16.mxu0 0
        %1428 = vmatpush1.bf16.msra.mxu0 0
        %1429 = vmatprep.subr.bf16.mxu0 0
        %1430 = vmatpush1.bf16.msra.mxu0 0
        %1431 = vmatprep.mubr.bf16.mxu0 0
        %1432 = vmatmul.mubr.bf16.gmra.mrb[0].mxu0 %v1397
        %v1433 = vpop.f32.mrb[0].mxu0
        %v1434 = vadd.f32 0.0, %v1433
        %v1435 = vpop.f32.mrb[0].mxu0
        %v1436 = vpop.f32.mrb[0].mxu0
        %v1437 = vadd.f32 0.0, %v1436
        %v1438 = vpop.f32.mrb[0].mxu0
        %1439 = vdwg.mxu0
        %s1440 = sld [smem:[#allocation3 + %s41]]
        %s1441 = sadd.f32 %s1440, 1.0
        %v1442 = vstv %s1441
        %v1443 = vmul.f32 %v1442, %v1223
        %v1444 = vmul.f32 %v1442, %v1224
        %v1445 = vadd.f32 %v1443, %v1434
        %v1446 = vadd.f32 %v1444, %v1437
        %v1447 = vpack.c.bf16 %v1446, %v1445
        %v1448 = vld [vmem:[%s1067] sm:$0xf]
        %v1449 = vld [vmem:[%s1067 + $0x4] sm:$0xf]
        %v1450 = vld [vmem:[%s1067 + $0x8] sm:$0xf]
        %v1451 = vld [vmem:[%s1067 + $0xc] sm:$0xf]
        %v1452 = vld [vmem:[%s1067 + $0x10] sm:$0xf]
        %v1453 = vld [vmem:[%s1067 + $0x14] sm:$0xf]
        %v1454 = vld [vmem:[%s1067 + $0x18] sm:$0xf]
        %v1455 = vld [vmem:[%s1067 + $0x1c] sm:$0xf]
        %v1456 = vld [vmem:[%s1067 + $0x20] sm:$0xf]
        %v1457 = vld [vmem:[%s1067 + $0x24] sm:$0xf]
        %v1458 = vld [vmem:[%s1067 + $0x28] sm:$0xf]
        %v1459 = vld [vmem:[%s1067 + $0x2c] sm:$0xf]
        %v1460 = vld [vmem:[%s1067 + $0x30] sm:$0xf]
        %v1461 = vld [vmem:[%s1067 + $0x34] sm:$0xf]
        %v1462 = vld [vmem:[%s1067 + $0x38] sm:$0xf]
        %v1463 = vld [vmem:[%s1067 + $0x3c] sm:$0xf]
        %v1464 = vld [vmem:[%s1070] sm:$0x1]
        %v1466 = vlaneseq
        %v1467 = vshrl.u32 %v1466, 7
        %v1468 = vsub.s32 0, %v1467
        %v1469 = vrot.slane %v1464, %v1468
        %v1487 = vunpack.c.l.b16 %v1448
        %v1488 = vunpack.c.l.b16 %v1449
        %v1489 = vunpack.c.l.b16 %v1450
        %v1490 = vunpack.c.l.b16 %v1451
        %v1491 = vunpack.c.l.b16 %v1452
        %v1492 = vunpack.c.l.b16 %v1453
        %v1493 = vunpack.c.l.b16 %v1454
        %v1494 = vunpack.c.l.b16 %v1455
        %v1495 = vunpack.c.l.b16 %v1456
        %v1496 = vunpack.c.l.b16 %v1457
        %v1497 = vunpack.c.l.b16 %v1458
        %v1498 = vunpack.c.l.b16 %v1459
        %v1499 = vunpack.c.l.b16 %v1460
        %v1500 = vunpack.c.l.b16 %v1461
        %v1501 = vunpack.c.l.b16 %v1462
        %v1502 = vunpack.c.l.b16 %v1463
        %v1503 = vpack.c.b16 %v1488, %v1487
        %v1504 = vpack.c.b16 %v1490, %v1489
        %v1505 = vpack.c.b16 %v1492, %v1491
        %v1506 = vpack.c.b16 %v1494, %v1493
        %v1507 = vpack.c.b16 %v1496, %v1495
        %v1508 = vpack.c.b16 %v1498, %v1497
        %v1509 = vpack.c.b16 %v1500, %v1499
        %v1510 = vpack.c.b16 %v1502, %v1501
        %1519 = vmatprep.subr.bf16.mxu0 0
        %1520 = vmatpush1.bf16.msra.mxu0 %v1503
        %1521 = vmatprep.subr.bf16.mxu0 0
        %1522 = vmatpush1.bf16.msra.mxu0 %v1504
        %1523 = vmatprep.subr.bf16.mxu0 0
        %1524 = vmatpush1.bf16.msra.mxu0 %v1505
        %1525 = vmatprep.subr.bf16.mxu0 0
        %1526 = vmatpush1.bf16.msra.mxu0 %v1506
        %1527 = vmatprep.subr.bf16.mxu0 0
        %1528 = vmatpush1.bf16.msra.mxu0 %v1507
        %1529 = vmatprep.subr.bf16.mxu0 0
        %1530 = vmatpush1.bf16.msra.mxu0 %v1508
        %1531 = vmatprep.subr.bf16.mxu0 0
        %1532 = vmatpush1.bf16.msra.mxu0 %v1509
        %1533 = vmatprep.subr.bf16.mxu0 0
        %1534 = vmatpush1.bf16.msra.mxu0 %v1510
        %1535 = vmatprep.subr.bf16.mxu0 0
        %1536 = vmatpush1.bf16.msra.mxu0 0
        %1537 = vmatprep.subr.bf16.mxu0 0
        %1538 = vmatpush1.bf16.msra.mxu0 0
        %1539 = vmatprep.subr.bf16.mxu0 0
        %1540 = vmatpush1.bf16.msra.mxu0 0
        %1541 = vmatprep.subr.bf16.mxu0 0
        %1542 = vmatpush1.bf16.msra.mxu0 0
        %1543 = vmatprep.subr.bf16.mxu0 0
        %1544 = vmatpush1.bf16.msra.mxu0 0
        %1545 = vmatprep.subr.bf16.mxu0 0
        %1546 = vmatpush1.bf16.msra.mxu0 0
        %1547 = vmatprep.subr.bf16.mxu0 0
        %1548 = vmatpush1.bf16.msra.mxu0 0
        %1549 = vmatprep.subr.bf16.mxu0 0
        %1550 = vmatpush1.bf16.msra.mxu0 0
        %1551 = vmatprep.mubr.bf16.mxu0 0
        %1552 = vmatmul.mubr.bf16.gmra.mrb[0].mxu0 %v1447
        %v1553 = vpop.f32.mrb[0].mxu0
        %v1554 = vadd.f32 %v1469, %v1553
        %v1555 = vpop.f32.mrb[0].mxu0
        %v1556 = vpop.f32.mrb[0].mxu0
        %v1557 = vadd.f32 %v1469, %v1556
        %v1558 = vpop.f32.mrb[0].mxu0
        %1559 = vdwg.mxu0
        %v1560 = vld [vmem:[%s1073] sm:$0x1]
        %v1562 = vlaneseq
        %v1563 = vshrl.u32 %v1562, 7
        %v1564 = vsub.s32 0, %v1563
        %v1565 = vrot.slane %v1560, %v1564
        %v1567 = vmul.f32 %v1554, %v1565
        %v1568 = vmul.f32 %v1557, %v1565
        %v1569 = vld [vmem:[%s1076] sm:$0x1]
        %v1571 = vlaneseq
        %v1572 = vshrl.u32 %v1571, 7
        %v1573 = vsub.s32 0, %v1572
        %v1574 = vrot.slane %v1569, %v1573
        %v1576 = vadd.f32 %v1567, %v1574
        %v1577 = vadd.f32 %v1568, %v1574
        %v1578 = vmax.f32 %v1576, 0.0
        %v1579 = vmax.f32 %v1577, 0.0
        %v1580 = vpack.c.bf16 %v1579, %v1578
        %v1581 = vld [vmem:[%s1081] sm:$0xf]
        %v1582 = vld [vmem:[%s1081 + $0x4] sm:$0xf]
        %v1583 = vld [vmem:[%s1081 + $0x8] sm:$0xf]
        %v1584 = vld [vmem:[%s1081 + $0xc] sm:$0xf]
        %v1585 = vld [vmem:[%s1081 + $0x10] sm:$0xf]
        %v1586 = vld [vmem:[%s1081 + $0x14] sm:$0xf]
        %v1587 = vld [vmem:[%s1081 + $0x18] sm:$0xf]
        %v1588 = vld [vmem:[%s1081 + $0x1c] sm:$0xf]
        %v1589 = vld [vmem:[%s1081 + $0x20] sm:$0xf]
        %v1590 = vld [vmem:[%s1081 + $0x24] sm:$0xf]
        %v1591 = vld [vmem:[%s1081 + $0x28] sm:$0xf]
        %v1592 = vld [vmem:[%s1081 + $0x2c] sm:$0xf]
        %v1593 = vld [vmem:[%s1081 + $0x30] sm:$0xf]
        %v1594 = vld [vmem:[%s1081 + $0x34] sm:$0xf]
        %v1595 = vld [vmem:[%s1081 + $0x38] sm:$0xf]
        %v1596 = vld [vmem:[%s1081 + $0x3c] sm:$0xf]
        %v1597 = vld [vmem:[%s1084] sm:$0x1]
        %v1599 = vlaneseq
        %v1600 = vshrl.u32 %v1599, 7
        %v1601 = vsub.s32 0, %v1600
        %v1602 = vrot.slane %v1597, %v1601
        %v1620 = vunpack.c.l.b16 %v1581
        %v1621 = vunpack.c.l.b16 %v1582
        %v1622 = vunpack.c.l.b16 %v1583
        %v1623 = vunpack.c.l.b16 %v1584
        %v1624 = vunpack.c.l.b16 %v1585
        %v1625 = vunpack.c.l.b16 %v1586
        %v1626 = vunpack.c.l.b16 %v1587
        %v1627 = vunpack.c.l.b16 %v1588
        %v1628 = vunpack.c.l.b16 %v1589
        %v1629 = vunpack.c.l.b16 %v1590
        %v1630 = vunpack.c.l.b16 %v1591
        %v1631 = vunpack.c.l.b16 %v1592
        %v1632 = vunpack.c.l.b16 %v1593
        %v1633 = vunpack.c.l.b16 %v1594
        %v1634 = vunpack.c.l.b16 %v1595
        %v1635 = vunpack.c.l.b16 %v1596
        %v1636 = vpack.c.b16 %v1621, %v1620
        %v1637 = vpack.c.b16 %v1623, %v1622
        %v1638 = vpack.c.b16 %v1625, %v1624
        %v1639 = vpack.c.b16 %v1627, %v1626
        %v1640 = vpack.c.b16 %v1629, %v1628
        %v1641 = vpack.c.b16 %v1631, %v1630
        %v1642 = vpack.c.b16 %v1633, %v1632
        %v1643 = vpack.c.b16 %v1635, %v1634
        %1652 = vmatprep.subr.bf16.mxu0 0
        %1653 = vmatpush1.bf16.msra.mxu0 %v1636
        %1654 = vmatprep.subr.bf16.mxu0 0
        %1655 = vmatpush1.bf16.msra.mxu0 %v1637
        %1656 = vmatprep.subr.bf16.mxu0 0
        %1657 = vmatpush1.bf16.msra.mxu0 %v1638
        %1658 = vmatprep.subr.bf16.mxu0 0
        %1659 = vmatpush1.bf16.msra.mxu0 %v1639
        %1660 = vmatprep.subr.bf16.mxu0 0
        %1661 = vmatpush1.bf16.msra.mxu0 %v1640
        %1662 = vmatprep.subr.bf16.mxu0 0
        %1663 = vmatpush1.bf16.msra.mxu0 %v1641
        %1664 = vmatprep.subr.bf16.mxu0 0
        %1665 = vmatpush1.bf16.msra.mxu0 %v1642
        %1666 = vmatprep.subr.bf16.mxu0 0
        %1667 = vmatpush1.bf16.msra.mxu0 %v1643
        %1668 = vmatprep.subr.bf16.mxu0 0
        %1669 = vmatpush1.bf16.msra.mxu0 0
        %1670 = vmatprep.subr.bf16.mxu0 0
        %1671 = vmatpush1.bf16.msra.mxu0 0
        %1672 = vmatprep.subr.bf16.mxu0 0
        %1673 = vmatpush1.bf16.msra.mxu0 0
        %1674 = vmatprep.subr.bf16.mxu0 0
        %1675 = vmatpush1.bf16.msra.mxu0 0
        %1676 = vmatprep.subr.bf16.mxu0 0
        %1677 = vmatpush1.bf16.msra.mxu0 0
        %1678 = vmatprep.subr.bf16.mxu0 0
        %1679 = vmatpush1.bf16.msra.mxu0 0
        %1680 = vmatprep.subr.bf16.mxu0 0
        %1681 = vmatpush1.bf16.msra.mxu0 0
        %1682 = vmatprep.subr.bf16.mxu0 0
        %1683 = vmatpush1.bf16.msra.mxu0 0
        %1684 = vmatprep.mubr.bf16.mxu0 0
        %1685 = vmatmul.mubr.bf16.gmra.mrb[0].mxu0 %v1580
        %v1686 = vpop.f32.mrb[0].mxu0
        %v1687 = vadd.f32 %v1602, %v1686
        %v1688 = vpop.f32.mrb[0].mxu0
        %v1689 = vpop.f32.mrb[0].mxu0
        %v1690 = vadd.f32 %v1602, %v1689
        %v1691 = vpop.f32.mrb[0].mxu0
        %1692 = vdwg.mxu0
        %v1693 = vld [vmem:[%s1087] sm:$0x1]
        %v1695 = vlaneseq
        %v1696 = vshrl.u32 %v1695, 7
        %v1697 = vsub.s32 0, %v1696
        %v1698 = vrot.slane %v1693, %v1697
        %v1700 = vmul.f32 %v1687, %v1698
        %v1701 = vmul.f32 %v1690, %v1698
        %v1702 = vld [vmem:[%s1090] sm:$0x1]
        %v1704 = vlaneseq
        %v1705 = vshrl.u32 %v1704, 7
        %v1706 = vsub.s32 0, %v1705
        %v1707 = vrot.slane %v1702, %v1706
        %v1709 = vadd.f32 %v1700, %v1707
        %v1710 = vadd.f32 %v1701, %v1707
        %v1711 = vmax.f32 %v1709, 0.0
        %v1712 = vmax.f32 %v1710, 0.0
        %s1713 = scalar_select %p1152, 1, 0
        %v1714 = vstv %s1713
        %vm1715 = vcmp.eq.s32.totalorder %v1714, 1
        %v1716 = vsel %vm1715, %v1709, %v1711
        %v1717 = vsel %vm1715, %v1710, %v1712
        %v1718 = vadd.f32 %v1716, %v1223
        %v1719 = vadd.f32 %v1717, %v1224
        %1720 = vst [vmem:[#allocation6] sm:$0xff] %v1718
        %1721 = vst [vmem:[#allocation6 + $0x8] sm:$0xff] %v1719
        %p1722 = scmp.lt.s32.totalorder %s41, 2
        // Predicated region
        $region129: #{gnn_forward.1} parent=119 // pred_check
          %p1723 = pneg %p1722
        $region130: #{gnn_forward.1} parent=119 // pred_check_branch
          %1725 = sbr.rel (%p1723) target = $region132
        $region131: #{gnn_forward.1} parent=119 // pred_region
          %1727 = vxpose.xlu0.c.b16.start [1/8] %v1173, 128
          %1728 = vxpose.xlu0.c.b16.cont [2/8] 0, 128
          %1729 = vxpose.xlu0.c.b16.cont [3/8] 0, 128
          %1730 = vxpose.xlu0.c.b16.cont [4/8] 0, 128
          %1731 = vxpose.xlu0.c.b16.cont [5/8] 0, 128
          %1732 = vxpose.xlu0.c.b16.cont [6/8] 0, 128
          %1733 = vxpose.xlu0.c.b16.cont [7/8] 0, 128
          %1734 = vxpose.xlu0.c.b16.end [8/8] 0, 128
          %v1735 = vpop.trf.xlu0
          %v1736 = vpop.trf.xlu0
          %v1737 = vpop.trf.xlu0
          %v1738 = vpop.trf.xlu0
          %v1739 = vpop.trf.xlu0
          %v1740 = vpop.trf.xlu0
          %v1741 = vpop.trf.xlu0
          %v1742 = vpop.trf.xlu0
          %v1744 = vsel %vm1326, %v1735, 0
          %1746 = vmatprep.subr.bf16.mxu0 0
          %1747 = vmatpush1.bf16.msra.mxu0 %v1225
          %1748 = vmatprep.subr.bf16.mxu0 0
          %1749 = vmatpush1.bf16.msra.mxu0 0
          %1750 = vmatprep.subr.bf16.mxu0 0
          %1751 = vmatpush1.bf16.msra.mxu0 0
          %1752 = vmatprep.subr.bf16.mxu0 0
          %1753 = vmatpush1.bf16.msra.mxu0 0
          %1754 = vmatprep.subr.bf16.mxu0 0
          %1755 = vmatpush1.bf16.msra.mxu0 0
          %1756 = vmatprep.subr.bf16.mxu0 0
          %1757 = vmatpush1.bf16.msra.mxu0 0
          %1758 = vmatprep.subr.bf16.mxu0 0
          %1759 = vmatpush1.bf16.msra.mxu0 0
          %1760 = vmatprep.subr.bf16.mxu0 0
          %1761 = vmatpush1.bf16.msra.mxu0 0
          %1762 = vmatprep.subr.bf16.mxu0 0
          %1763 = vmatpush1.bf16.msra.mxu0 0
          %1764 = vmatprep.subr.bf16.mxu0 0
          %1765 = vmatpush1.bf16.msra.mxu0 0
          %1766 = vmatprep.subr.bf16.mxu0 0
          %1767 = vmatpush1.bf16.msra.mxu0 0
          %1768 = vmatprep.subr.bf16.mxu0 0
          %1769 = vmatpush1.bf16.msra.mxu0 0
          %1770 = vmatprep.subr.bf16.mxu0 0
          %1771 = vmatpush1.bf16.msra.mxu0 0
          %1772 = vmatprep.subr.bf16.mxu0 0
          %1773 = vmatpush1.bf16.msra.mxu0 0
          %1774 = vmatprep.subr.bf16.mxu0 0
          %1775 = vmatpush1.bf16.msra.mxu0 0
          %1776 = vmatprep.subr.bf16.mxu0 0
          %1777 = vmatpush1.bf16.msra.mxu0 0
          %1778 = vmatprep.mubr.bf16.mxu0 0
          %1779 = vmatmul.mubr.bf16.gmra.mrb[0].mxu0 %v1744
          %v1780 = vpop.f32.mrb[0].mxu0
          %v1781 = vadd.f32 %v1165, %v1780
          %v1782 = vpop.f32.mrb[0].mxu0
          %v1783 = vpop.f32.mrb[0].mxu0
          %v1784 = vpop.f32.mrb[0].mxu0
          %1785 = vdwg.mxu0
          %v1786 = vpack.c.bf16 %v1781, %v1781
          %v1787 = vld [vmem:[%s1097] sm:$0xf]
          %v1788 = vld [vmem:[%s1097 + $0x4] sm:$0xf]
          %v1789 = vld [vmem:[%s1097 + $0x8] sm:$0xf]
          %v1790 = vld [vmem:[%s1097 + $0xc] sm:$0xf]
          %v1791 = vld [vmem:[%s1097 + $0x10] sm:$0xf]
          %v1792 = vld [vmem:[%s1097 + $0x14] sm:$0xf]
          %v1793 = vld [vmem:[%s1097 + $0x18] sm:$0xf]
          %v1794 = vld [vmem:[%s1097 + $0x1c] sm:$0xf]
          %v1795 = vld [vmem:[%s1097 + $0x20] sm:$0xf]
          %v1796 = vld [vmem:[%s1097 + $0x24] sm:$0xf]
          %v1797 = vld [vmem:[%s1097 + $0x28] sm:$0xf]
          %v1798 = vld [vmem:[%s1097 + $0x2c] sm:$0xf]
          %v1799 = vld [vmem:[%s1097 + $0x30] sm:$0xf]
          %v1800 = vld [vmem:[%s1097 + $0x34] sm:$0xf]
          %v1801 = vld [vmem:[%s1097 + $0x38] sm:$0xf]
          %v1802 = vld [vmem:[%s1097 + $0x3c] sm:$0xf]
          %v1803 = vld [vmem:[%s1104] sm:$0x1]
          %v1805 = vlaneseq
          %v1806 = vshrl.u32 %v1805, 7
          %v1807 = vsub.s32 0, %v1806
          %v1808 = vrot.slane %v1803, %v1807
          %v1826 = vunpack.c.l.b16 %v1787
          %v1827 = vunpack.c.l.b16 %v1788
          %v1828 = vunpack.c.l.b16 %v1789
          %v1829 = vunpack.c.l.b16 %v1790
          %v1830 = vunpack.c.l.b16 %v1791
          %v1831 = vunpack.c.l.b16 %v1792
          %v1832 = vunpack.c.l.b16 %v1793
          %v1833 = vunpack.c.l.b16 %v1794
          %v1834 = vunpack.c.l.b16 %v1795
          %v1835 = vunpack.c.l.b16 %v1796
          %v1836 = vunpack.c.l.b16 %v1797
          %v1837 = vunpack.c.l.b16 %v1798
          %v1838 = vunpack.c.l.b16 %v1799
          %v1839 = vunpack.c.l.b16 %v1800
          %v1840 = vunpack.c.l.b16 %v1801
          %v1841 = vunpack.c.l.b16 %v1802
          %v1842 = vpack.c.b16 %v1827, %v1826
          %v1843 = vpack.c.b16 %v1829, %v1828
          %v1844 = vpack.c.b16 %v1831, %v1830
          %v1845 = vpack.c.b16 %v1833, %v1832
          %v1846 = vpack.c.b16 %v1835, %v1834
          %v1847 = vpack.c.b16 %v1837, %v1836
          %v1848 = vpack.c.b16 %v1839, %v1838
          %v1849 = vpack.c.b16 %v1841, %v1840
          %1858 = vmatprep.subr.bf16.mxu0 0
          %1859 = vmatpush1.bf16.msra.mxu0 %v1842
          %1860 = vmatprep.subr.bf16.mxu0 0
          %1861 = vmatpush1.bf16.msra.mxu0 %v1843
          %1862 = vmatprep.subr.bf16.mxu0 0
          %1863 = vmatpush1.bf16.msra.mxu0 %v1844
          %1864 = vmatprep.subr.bf16.mxu0 0
          %1865 = vmatpush1.bf16.msra.mxu0 %v1845
          %1866 = vmatprep.subr.bf16.mxu0 0
          %1867 = vmatpush1.bf16.msra.mxu0 %v1846
          %1868 = vmatprep.subr.bf16.mxu0 0
          %1869 = vmatpush1.bf16.msra.mxu0 %v1847
          %1870 = vmatprep.subr.bf16.mxu0 0
          %1871 = vmatpush1.bf16.msra.mxu0 %v1848
          %1872 = vmatprep.subr.bf16.mxu0 0
          %1873 = vmatpush1.bf16.msra.mxu0 %v1849
          %1874 = vmatprep.subr.bf16.mxu0 0
          %1875 = vmatpush1.bf16.msra.mxu0 0
          %1876 = vmatprep.subr.bf16.mxu0 0
          %1877 = vmatpush1.bf16.msra.mxu0 0
          %1878 = vmatprep.subr.bf16.mxu0 0
          %1879 = vmatpush1.bf16.msra.mxu0 0
          %1880 = vmatprep.subr.bf16.mxu0 0
          %1881 = vmatpush1.bf16.msra.mxu0 0
          %1882 = vmatprep.subr.bf16.mxu0 0
          %1883 = vmatpush1.bf16.msra.mxu0 0
          %1884 = vmatprep.subr.bf16.mxu0 0
          %1885 = vmatpush1.bf16.msra.mxu0 0
          %1886 = vmatprep.subr.bf16.mxu0 0
          %1887 = vmatpush1.bf16.msra.mxu0 0
          %1888 = vmatprep.subr.bf16.mxu0 0
          %1889 = vmatpush1.bf16.msra.mxu0 0
          %1890 = vmatprep.mubr.bf16.mxu0 0
          %1891 = vmatmul.mubr.bf16.gmra.mrb[0].mxu0 %v1786
          %v1892 = vpop.f32.mrb[0].mxu0
          %v1893 = vadd.f32 %v1808, %v1892
          %v1894 = vpop.f32.mrb[0].mxu0
          %v1895 = vpop.f32.mrb[0].mxu0
          %v1896 = vpop.f32.mrb[0].mxu0
          %1897 = vdwg.mxu0
          %v1898 = vld [vmem:[%s1111] sm:$0x1]
          %v1900 = vlaneseq
          %v1901 = vshrl.u32 %v1900, 7
          %v1902 = vsub.s32 0, %v1901
          %v1903 = vrot.slane %v1898, %v1902
          %v1905 = vmul.f32 %v1893, %v1903
          %v1906 = vld [vmem:[%s1118] sm:$0x1]
          %v1908 = vlaneseq
          %v1909 = vshrl.u32 %v1908, 7
          %v1910 = vsub.s32 0, %v1909
          %v1911 = vrot.slane %v1906, %v1910
          %v1913 = vadd.f32 %v1905, %v1911
          %v1914 = vmax.f32 %v1913, 0.0
          %v1915 = vpack.c.bf16 %v1914, %v1914
          %v1916 = vld [vmem:[%s1127] sm:$0xf]
          %v1917 = vld [vmem:[%s1127 + $0x4] sm:$0xf]
          %v1918 = vld [vmem:[%s1127 + $0x8] sm:$0xf]
          %v1919 = vld [vmem:[%s1127 + $0xc] sm:$0xf]
          %v1920 = vld [vmem:[%s1127 + $0x10] sm:$0xf]
          %v1921 = vld [vmem:[%s1127 + $0x14] sm:$0xf]
          %v1922 = vld [vmem:[%s1127 + $0x18] sm:$0xf]
          %v1923 = vld [vmem:[%s1127 + $0x1c] sm:$0xf]
          %v1924 = vld [vmem:[%s1127 + $0x20] sm:$0xf]
          %v1925 = vld [vmem:[%s1127 + $0x24] sm:$0xf]
          %v1926 = vld [vmem:[%s1127 + $0x28] sm:$0xf]
          %v1927 = vld [vmem:[%s1127 + $0x2c] sm:$0xf]
          %v1928 = vld [vmem:[%s1127 + $0x30] sm:$0xf]
          %v1929 = vld [vmem:[%s1127 + $0x34] sm:$0xf]
          %v1930 = vld [vmem:[%s1127 + $0x38] sm:$0xf]
          %v1931 = vld [vmem:[%s1127 + $0x3c] sm:$0xf]
          %v1932 = vld [vmem:[%s1134] sm:$0x1]
          %v1934 = vlaneseq
          %v1935 = vshrl.u32 %v1934, 7
          %v1936 = vsub.s32 0, %v1935
          %v1937 = vrot.slane %v1932, %v1936
          %v1955 = vunpack.c.l.b16 %v1916
          %v1956 = vunpack.c.l.b16 %v1917
          %v1957 = vunpack.c.l.b16 %v1918
          %v1958 = vunpack.c.l.b16 %v1919
          %v1959 = vunpack.c.l.b16 %v1920
          %v1960 = vunpack.c.l.b16 %v1921
          %v1961 = vunpack.c.l.b16 %v1922
          %v1962 = vunpack.c.l.b16 %v1923
          %v1963 = vunpack.c.l.b16 %v1924
          %v1964 = vunpack.c.l.b16 %v1925
          %v1965 = vunpack.c.l.b16 %v1926
          %v1966 = vunpack.c.l.b16 %v1927
          %v1967 = vunpack.c.l.b16 %v1928
          %v1968 = vunpack.c.l.b16 %v1929
          %v1969 = vunpack.c.l.b16 %v1930
          %v1970 = vunpack.c.l.b16 %v1931
          %v1971 = vpack.c.b16 %v1956, %v1955
          %v1972 = vpack.c.b16 %v1958, %v1957
          %v1973 = vpack.c.b16 %v1960, %v1959
          %v1974 = vpack.c.b16 %v1962, %v1961
          %v1975 = vpack.c.b16 %v1964, %v1963
          %v1976 = vpack.c.b16 %v1966, %v1965
          %v1977 = vpack.c.b16 %v1968, %v1967
          %v1978 = vpack.c.b16 %v1970, %v1969
          %1987 = vmatprep.subr.bf16.mxu0 0
          %1988 = vmatpush1.bf16.msra.mxu0 %v1971
          %1989 = vmatprep.subr.bf16.mxu0 0
          %1990 = vmatpush1.bf16.msra.mxu0 %v1972
          %1991 = vmatprep.subr.bf16.mxu0 0
          %1992 = vmatpush1.bf16.msra.mxu0 %v1973
          %1993 = vmatprep.subr.bf16.mxu0 0
          %1994 = vmatpush1.bf16.msra.mxu0 %v1974
          %1995 = vmatprep.subr.bf16.mxu0 0
          %1996 = vmatpush1.bf16.msra.mxu0 %v1975
          %1997 = vmatprep.subr.bf16.mxu0 0
          %1998 = vmatpush1.bf16.msra.mxu0 %v1976
          %1999 = vmatprep.subr.bf16.mxu0 0
          %2000 = vmatpush1.bf16.msra.mxu0 %v1977
          %2001 = vmatprep.subr.bf16.mxu0 0
          %2002 = vmatpush1.bf16.msra.mxu0 %v1978
          %2003 = vmatprep.subr.bf16.mxu0 0
          %2004 = vmatpush1.bf16.msra.mxu0 0
          %2005 = vmatprep.subr.bf16.mxu0 0
          %2006 = vmatpush1.bf16.msra.mxu0 0
          %2007 = vmatprep.subr.bf16.mxu0 0
          %2008 = vmatpush1.bf16.msra.mxu0 0
          %2009 = vmatprep.subr.bf16.mxu0 0
          %2010 = vmatpush1.bf16.msra.mxu0 0
          %2011 = vmatprep.subr.bf16.mxu0 0
          %2012 = vmatpush1.bf16.msra.mxu0 0
          %2013 = vmatprep.subr.bf16.mxu0 0
          %2014 = vmatpush1.bf16.msra.mxu0 0
          %2015 = vmatprep.subr.bf16.mxu0 0
          %2016 = vmatpush1.bf16.msra.mxu0 0
          %2017 = vmatprep.subr.bf16.mxu0 0
          %2018 = vmatpush1.bf16.msra.mxu0 0
          %2019 = vmatprep.mubr.bf16.mxu0 0
          %2020 = vmatmul.mubr.bf16.gmra.mrb[0].mxu0 %v1915
          %v2021 = vpop.f32.mrb[0].mxu0
          %v2022 = vadd.f32 %v1937, %v2021
          %v2023 = vpop.f32.mrb[0].mxu0
          %v2024 = vpop.f32.mrb[0].mxu0
          %v2025 = vpop.f32.mrb[0].mxu0
          %2026 = vdwg.mxu0
          %v2027 = vld [vmem:[%s1141] sm:$0x1]
          %v2029 = vlaneseq
          %v2030 = vshrl.u32 %v2029, 7
          %v2031 = vsub.s32 0, %v2030
          %v2032 = vrot.slane %v2027, %v2031
          %v2034 = vmul.f32 %v2022, %v2032
          %v2035 = vld [vmem:[%s1148] sm:$0x1]
          %v2037 = vlaneseq
          %v2038 = vshrl.u32 %v2037, 7
          %v2039 = vsub.s32 0, %v2038
          %v2040 = vrot.slane %v2035, %v2039
          %v2042 = vadd.f32 %v2034, %v2040
          %v2043 = vmax.f32 %v2042, 0.0
          %v2044 = vadd.f32 %v1165, %v2043
          %2045 = vst [vmem:[#allocation2] sm:$0x3] %v2044
        $region132: #{gnn_forward.1} parent=119 // pred_fallthru
          _
        // Predicated region
        $region133: #{gnn_forward.1} parent=119 // pred_check
          %p2046 = pneg %p1152
        $region134: #{gnn_forward.1} parent=119 // pred_check_branch
          %2048 = sbr.rel (%p2046) target = $region136
        $region135: #{gnn_forward.1} parent=119 // pred_region
          %v2049 = vld [vmem:[%s3] sm:$0xff]
          %v2050 = vld [vmem:[%s3 + $0x8] sm:$0xff]
          %vm2051 = vcmp.eq.f32.partialorder %v2049, 0.0
          %vm2052 = vcmp.eq.f32.partialorder %v2050, 0.0
          %v2053 = vsel %vm2051, 1, 0
          %v2054 = vsel %vm2052, 1, 0
          %2055 = vset.pattern.permute.xlu0 0
          %2056 = vperm.xlu0 %2055, %v2053
          %v2057 = vpop.permute.xlu0 %2056
          %2058 = vset.pattern.permute.xlu0 0
          %2059 = vperm.xlu0 %2058, %v2054
          %v2060 = vpop.permute.xlu0 %2059
          %vm2061 = vcmp.eq.s32.totalorder %v2057, 1
          %vm2062 = vcmp.eq.s32.totalorder %v2060, 1
          %v2063 = vsel %vm2061, %v1718, -3.4028235e+38
          %v2064 = vsel %vm2062, %v1719, -3.4028235e+38
          %v2065 = vmax.f32 %v2063, %v2064
          %v2066 = vrot.slane %v2065, 4
          %v2067 = vmax.f32 %v2065, %v2066
          %v2068 = vrot.slane %v2067, 2
          %v2069 = vmax.f32 %v2067, %v2068
          %v2070 = vrot.slane %v2069, 1
          %v2071 = vmax.f32 %v2069, %v2070
          %2072 = vst [vmem:[#allocation7] sm:$0x1] %v2071
          %vm2073 = vcmp.eq.f32.partialorder %v2049, 1.0
          %vm2074 = vcmp.eq.f32.partialorder %v2050, 1.0
          %v2075 = vsel %vm2073, 1, 0
          %v2076 = vsel %vm2074, 1, 0
          %2077 = vset.pattern.permute.xlu0 0
          %2078 = vperm.xlu0 %2077, %v2075
          %v2079 = vpop.permute.xlu0 %2078
          %2080 = vset.pattern.permute.xlu0 0
          %2081 = vperm.xlu0 %2080, %v2076
          %v2082 = vpop.permute.xlu0 %2081
          %vm2083 = vcmp.eq.s32.totalorder %v2079, 1
          %vm2084 = vcmp.eq.s32.totalorder %v2082, 1
          %v2085 = vsel %vm2083, %v1718, -3.4028235e+38
          %v2086 = vsel %vm2084, %v1719, -3.4028235e+38
          %v2087 = vmax.f32 %v2085, %v2086
          %v2088 = vrot.slane %v2087, 4
          %v2089 = vmax.f32 %v2087, %v2088
          %v2090 = vrot.slane %v2089, 2
          %v2091 = vmax.f32 %v2089, %v2090
          %v2092 = vrot.slane %v2091, 1
          %v2093 = vmax.f32 %v2091, %v2092
          %2094 = vst [vmem:[#allocation7 + $0x1] sm:$0x1] %v2093
        $region136: #{gnn_forward.1} parent=119 // pred_fallthru
          _
        // Predicated region
        $region137: #{gnn_forward.1} parent=119 // pred_check
          %p2095 = pneg %p696
        $region138: #{gnn_forward.1} parent=119 // pred_check_branch
          %2097 = sbr.rel (%p2095) target = $region140
        $region139: #{gnn_forward.1} parent=119 // pred_region
          %s2099 = ssub.s32 256, 256
          %2100 = vsyncadd [#allocation4], %s2099
          %s2101 = sshll.u32 [#allocation6], 4
          %s2102 = int_to_ptr.vmem [resolvable:$true] %s2101
          %2107 = dma.vmem_to_hbm [thread:$0]  %s2102, 256, %s25, [#allocation4], 128, 128, 8
        $region140: #{gnn_forward.1} parent=119 // pred_fallthru
          _
        // Predicated region
        $region141: #{gnn_forward.1} parent=119 // pred_check
          %p2108 = pneg %p717
        $region142: #{gnn_forward.1} parent=119 // pred_check_branch
          %2110 = sbr.rel (%p2108) target = $region144
        $region143: #{gnn_forward.1} parent=119 // pred_region
          %s2112 = ssub.s32 32, 32
          %2113 = vsyncadd [#allocation8], %s2112
          %s2115 = sshll.u32 [#allocation7], 4
          %s2116 = int_to_ptr.vmem [resolvable:$true] %s2115
          %2118 = dma.vmem_to_hbm [thread:$0]  %s2116, 32, %s26, [#allocation8]
        $region144: #{gnn_forward.1} parent=119 // pred_fallthru
          _
        // Predicated region
        $region145: #{gnn_forward.1} parent=119 // pred_check
          %p2119 = pneg %p696
        $region146: #{gnn_forward.1} parent=119 // pred_check_branch
          %2121 = sbr.rel (%p2119) target = $region148
        $region147: #{gnn_forward.1} parent=119 // pred_region
          %2122 = dma.done [#allocation4], 256
        $region148: #{gnn_forward.1} parent=119 // pred_fallthru
          _
        // Predicated region
        $region149: #{gnn_forward.1} parent=119 // pred_check
          %p2123 = pneg %p717
        $region150: #{gnn_forward.1} parent=119 // pred_check_branch
          %2125 = sbr.rel (%p2123) target = $region152
        $region151: #{gnn_forward.1} parent=119 // pred_region
          %2126 = dma.done [#allocation8], 32
        $region152: #{gnn_forward.1} parent=119 // pred_fallthru
          _
      $region120: #{gnn_forward.1} parent=5 // pred_fallthru
        _
      %p2127 = scmp.le.s32.totalorder 2, %s36
      // Predicated region
      $region153: #{gnn_forward.1} parent=5 // pred_check
        %p2128 = pneg %p2127
      $region154: #{gnn_forward.1} parent=5 // pred_check_branch
        %2130 = sbr.rel (%p2128) target = $region156
      $region155: #{gnn_forward.1} parent=5 // pred_region
        %s2131 = ssub.s32 %s36, 2
      $region156: #{gnn_forward.1} parent=5 // pred_fallthru
        _
    $region6: #{gnn_forward.1} parent=1 // loop_footer
      %s40 = sadd.s32 1, %s36
    $region7: #{gnn_forward.1} parent=1 // loop_footer_branch
      %35 = sbr.rel target = $region3
    $region8: #{gnn_forward.1} parent=1 // loop_exit
      _
    %2132 = vsyncpa [#allocation4], 1
    %s2133 = scalar_lea.sflag [#allocation4], 1
    %2134 = vsyncpa %s2133, 1
    %2135 = vsyncpa [#allocation8], 1
    %2136 = vsyncpa [#allocation5], 1
    %s2137 = scalar_lea.sflag [#allocation5], 1
    %2138 = vsyncpa %s2137, 1

</llo_original>
